<compile_context>
chip_gen: v6e
topology: v6e:2x2x1
jax: 0.10.0
libtpu: 0.0.40
codegen_flags: <defaults>
</compile_context>

<pallas_src>
import functools

import jax
import jax.numpy as jnp
from jax.experimental import pallas as pl
from jax.experimental.pallas import tpu as pltpu


def calc_convolution_output(input_size, kernel_size, padding=0, stride=1, dilation=1):
    return int((input_size + 2 * padding - dilation * (kernel_size - 1) - 1) / stride + 1)


def _round_up(x, m):
    return ((x + m - 1) // m) * m


# ---------------------------------------------------------------------------
# Fused Pallas kernel (one grid step == one batch element, all layers fused)
# ---------------------------------------------------------------------------
def _fused_cnn_kernel(patches_ref,  # [1, KKp, Pp]  im2col'd image (+ ones row = bias tap)
                      wconv_ref,    # [OCp, KKp]    conv weight (+ bias column)
                      w1_ref,       # [L, OCp, Pp]  linear1 weight, (l, c, p) lane-dense
                      b1_ref,       # [L, 1]
                      w2t_ref,      # [O, L]        linear2 weight, transposed
                      b2_ref,       # [O, 1]
                      o_ref):       # [1, O, 1]
    # Conv + bias + ReLU as one MXU matmul: [OCp, KKp] @ [KKp, Pp] -> [OCp, Pp].
    conv = jnp.dot(wconv_ref[...], patches_ref[0],
                   preferred_element_type=jnp.float32)
    conv = jnp.maximum(conv, 0.0)

    # Flatten + linear1 as a single contraction over (channel, pixel):
    #   h1[l] = sum_{c,p} conv[c,p] * w1[l,c,p]
    # conv is broadcast along the (free) leading L dim; both reductions are
    # last-axis (lane) sums.  Zero-padded channels / pixels / taps contribute 0.
    prod = w1_ref[...] * conv[None, :, :]                       # [L, OCp, Pp]
    s = jnp.sum(prod, axis=2)                                   # [L, OCp]
    h1 = jnp.sum(s, axis=1, keepdims=True) + b1_ref[...]        # [L, 1]
    h1 = jnp.maximum(h1, 0.0)

    # Linear2 + ReLU, kept column-oriented so no in-kernel transpose is needed.
    out = jnp.dot(w2t_ref[...], h1,
                  preferred_element_type=jnp.float32) + b2_ref[...]   # [O, 1]
    o_ref[0] = jnp.maximum(out, 0.0).astype(o_ref.dtype)


# ---------------------------------------------------------------------------
# Model definition (mirrors the PyTorch Cnn module)
# ---------------------------------------------------------------------------
class CnnPallas:
    def __init__(self, kernel_number=42, kernel_size=(10, 10), linear_size=40,
                 output_size=10, image_size=(28, 28), key=None):
        self.kernel_number = kernel_number
        self.kernel_size = kernel_size
        self.linear_size = linear_size
        self.output_size = output_size
        self.image_size = image_size
        self.oh = calc_convolution_output(image_size[0], kernel_size[0])
        self.ow = calc_convolution_output(image_size[1], kernel_size[1])
        self.linear_input_size = self.oh * self.ow * kernel_number

        kh, kw = kernel_size
        oc = kernel_number
        kk = kh * kw
        p = self.oh * self.ow
        L = linear_size
        O = output_size

        # Deterministic synthetic parameter init (shapes follow nn.Conv2d / nn.Linear).
        key = jax.random.PRNGKey(0) if key is None else key
        k = jax.random.split(key, 6)
        self.conv_w = jax.random.normal(k[0], (oc, 1, kh, kw), jnp.float32) * 0.05
        self.conv_b = jax.random.normal(k[1], (oc,), jnp.float32) * 0.05
        self.w1 = jax.random.normal(k[2], (self.linear_input_size, L), jnp.float32) * 0.02
        self.b1 = jax.random.normal(k[3], (L,), jnp.float32) * 0.02
        self.w2 = jax.random.normal(k[4], (L, O), jnp.float32) * 0.1
        self.b2 = jax.random.normal(k[5], (O,), jnp.float32) * 0.1

        # ---- one-time kernel-friendly parameter layouts ----
        self.oc_pad = _round_up(oc, 8)            # 42 -> 48 channels
        self.kk_aug = kk + 1                      # extra "ones" tap carries the conv bias
        self.kk_pad = _round_up(self.kk_aug, 8)   # 101 -> 104 taps (sublane dim)
        self.p_pad = _round_up(p, 128)            # 361 -> 384 pixels (lane dim)

        # Conv weight [oc, kh*kw] + bias column, zero-padded to [oc_pad, kk_pad].
        wconv = self.conv_w.reshape(oc, kk)
        wconv_aug = jnp.concatenate([wconv, self.conv_b.reshape(oc, 1)], axis=1)
        self._wconv = jnp.pad(
            wconv_aug, ((0, self.oc_pad - oc), (0, self.kk_pad - self.kk_aug)))

        # w1 rows are indexed c*OH*OW + h*OW + w (PyTorch .view order) -> [oc, P, L],
        # zero-padded, then laid out as [L, oc_pad, P_pad] (lane-dense trailing dims).
        w1_3 = self.w1.reshape(oc, p, L)
        w1_3 = jnp.pad(w1_3, ((0, self.oc_pad - oc), (0, self.p_pad - p), (0, 0)))
        self._w1_lcp = jnp.transpose(w1_3, (2, 0, 1))           # [L, oc_pad, p_pad]

        self._b1_col = self.b1.reshape(L, 1)
        self._w2t = self.w2.T                                   # [O, L]
        self._b2_col = self.b2.reshape(O, 1)

    # ---- glue: im2col, rows = kernel tap (+ ones row), cols = output pixel ----
    def _im2col(self, x_nhw):
        B = x_nhw.shape[0]
        kh, kw = self.kernel_size
        oh, ow = self.oh, self.ow
        rows = []
        for i in range(kh):
            for j in range(kw):
                rows.append(x_nhw[:, i:i + oh, j:j + ow].reshape(B, oh * ow))
        patches = jnp.stack(rows, axis=1)                       # [B, kh*kw, P]
        ones = jnp.ones((B, 1, oh * ow), jnp.float32)           # bias tap row
        patches = jnp.concatenate([patches, ones], axis=1)      # [B, kk+1, P]
        return jnp.pad(patches, ((0, 0),
                                 (0, self.kk_pad - self.kk_aug),
                                 (0, self.p_pad - oh * ow)))    # [B, kk_pad, p_pad]

    def _fused_forward(self, patches):
        B = patches.shape[0]
        kkp, pp, ocp = self.kk_pad, self.p_pad, self.oc_pad
        L, O = self.linear_size, self.output_size

        out = pl.pallas_call(
            _fused_cnn_kernel,
            out_shape=jax.ShapeDtypeStruct((B, O, 1), jnp.float32),
            grid=(B,),
            in_specs=[
                pl.BlockSpec((1, kkp, pp), lambda b: (b, 0, 0)),   # patches (per image)
                pl.BlockSpec((ocp, kkp), lambda b: (0, 0)),        # conv weight (+bias)
                pl.BlockSpec((L, ocp, pp), lambda b: (0, 0, 0)),   # w1: constant -> 1 DMA
                pl.BlockSpec((L, 1), lambda b: (0, 0)),            # b1
                pl.BlockSpec((O, L), lambda b: (0, 0)),            # w2^T
                pl.BlockSpec((O, 1), lambda b: (0, 0)),            # b2
            ],
            out_specs=pl.BlockSpec((1, O, 1), lambda b: (b, 0, 0)),
            compiler_params=pltpu.CompilerParams(
                dimension_semantics=("parallel",),
                vmem_limit_bytes=32 * 1024 * 1024),
        )(patches, self._wconv, self._w1_lcp, self._b1_col, self._w2t, self._b2_col)
        return out[:, :, 0]                                     # [B, O]

    @functools.partial(jax.jit, static_argnums=0)
    def __call__(self, x):
        # x: [B, 1, H, W] float32 (NCHW, single input channel)
        x_nhw = x[:, 0, :, :]                                   # [B, H, W]
        patches = self._im2col(x_nhw)                           # [B, kk_pad, p_pad]
        return self._fused_forward(patches)                     # [B, output_size]


# ---------------------------------------------------------------------------
# Pure-JAX reference for a correctness sanity check
# ---------------------------------------------------------------------------
def reference_forward(model, x):
    lhs = x.astype(jnp.float32)
    conv = jax.lax.conv_general_dilated(
        lhs, model.conv_w, window_strides=(1, 1), padding="VALID",
        dimension_numbers=("NCHW", "OIHW", "NCHW"))
    conv = jnp.maximum(conv + model.conv_b[None, :, None, None], 0.0)
    flat = conv.reshape(x.shape[0], model.linear_input_size)    # PyTorch .view order
    h1 = jnp.maximum(flat @ model.w1 + model.b1, 0.0)
    return jnp.maximum(h1 @ model.w2 + model.b2, 0.0)


if __name__ == "__main__":
    key = jax.random.PRNGKey(0)
    k_param, k_input = jax.random.split(key)

    model = CnnPallas(kernel_number=42, kernel_size=(10, 10), linear_size=40,
                      output_size=10, image_size=(28, 28), key=k_param)

    x = jax.random.normal(k_input, (2, 1, 28, 28), jnp.float32)

    out = jax.block_until_ready(model(x))
    ref = jax.block_until_ready(reference_forward(model, x))

    assert out.shape == (2, 10), out.shape
    max_err = float(jnp.max(jnp.abs(out - ref)))
    assert jnp.allclose(out, ref, atol=1e-3, rtol=1e-3), f"max abs err {max_err}"

    print("KERNEL_OK")
</pallas_src>

<mosaic_0001>
module attributes {stable_mosaic.version = 11 : i64} {
  func.func @_fused_cnn_kernel(%arg0: i32, %arg1: memref<1x104x384xf32, #tpu.memory_space<vmem>>, %arg2: memref<48x104xf32, #tpu.memory_space<vmem>>, %arg3: memref<40x48x384xf32, #tpu.memory_space<vmem>>, %arg4: memref<40x1xf32, #tpu.memory_space<vmem>>, %arg5: memref<10x40xf32, #tpu.memory_space<vmem>>, %arg6: memref<10x1xf32, #tpu.memory_space<vmem>>, %arg7: memref<1x10x1xf32, #tpu.memory_space<vmem>>) attributes {dimension_semantics = [#tpu.dimension_semantics<parallel>], iteration_bounds = array<i64: 2>, scalar_prefetch = 0 : i64, scratch_operands = 0 : i64, tpu.core_type = #tpu.core_type<tc>, window_params = [{transform_indices = @transform_0, window_bounds = array<i64: 1, 104, 384>}, {pipeline_mode = #tpu.pipeline_mode<synchronous>, transform_indices = @transform_1, window_bounds = array<i64: 48, 104>}, {pipeline_mode = #tpu.pipeline_mode<synchronous>, transform_indices = @transform_2, window_bounds = array<i64: 40, 48, 384>}, {pipeline_mode = #tpu.pipeline_mode<synchronous>, transform_indices = @transform_3, window_bounds = array<i64: 40, 1>}, {pipeline_mode = #tpu.pipeline_mode<synchronous>, transform_indices = @transform_4, window_bounds = array<i64: 10, 40>}, {pipeline_mode = #tpu.pipeline_mode<synchronous>, transform_indices = @transform_5, window_bounds = array<i64: 10, 1>}, {transform_indices = @transform_6, window_bounds = array<i64: 1, 10, 1>}]} {
    %c0 = arith.constant 0 : index
    %c0_0 = arith.constant 0 : index
    %0 = vector.load %arg2[%c0, %c0_0] : memref<48x104xf32, #tpu.memory_space<vmem>>, vector<48x104xf32>
    %c0_1 = arith.constant 0 : index
    %c0_2 = arith.constant 0 : index
    %c0_3 = arith.constant 0 : index
    %1 = vector.load %arg1[%c0_1, %c0_2, %c0_3] : memref<1x104x384xf32, #tpu.memory_space<vmem>>, vector<1x104x384xf32>
    %2 = vector.shape_cast %1 : vector<1x104x384xf32> to vector<104x384xf32>
    %cst = arith.constant dense<0.000000e+00> : vector<48x384xf32>
    %3 = tpu.matmul %0, %2, %cst {dimension_numbers = #tpu.dot_dimension_numbers<[1], [0], [0], [1], [0, 0, 1, 1], [], []>} : vector<48x104xf32>, vector<104x384xf32>, vector<48x384xf32> -> vector<48x384xf32>
    %cst_4 = arith.constant 0.000000e+00 : f32
    %4 = vector.broadcast %cst_4 : f32 to vector<48x384xf32>
    %5 = arith.maximumf %3, %4 : vector<48x384xf32>
    %c0_5 = arith.constant 0 : index
    %c0_6 = arith.constant 0 : index
    %c0_7 = arith.constant 0 : index
    %6 = vector.load %arg3[%c0_5, %c0_6, %c0_7] : memref<40x48x384xf32, #tpu.memory_space<vmem>>, vector<40x48x384xf32>
    %7 = vector.shape_cast %5 : vector<48x384xf32> to vector<1x48x384xf32>
    %8 = vector.broadcast %7 : vector<1x48x384xf32> to vector<40x48x384xf32>
    %9 = arith.mulf %6, %8 : vector<40x48x384xf32>
    %cst_8 = arith.constant dense<0.000000e+00> : vector<40x48xf32>
    %10 = vector.multi_reduction <add>, %9, %cst_8 [2] : vector<40x48x384xf32> to vector<40x48xf32>
    %cst_9 = arith.constant dense<0.000000e+00> : vector<40xf32>
    %11 = vector.multi_reduction <add>, %10, %cst_9 [1] : vector<40x48xf32> to vector<40xf32>
    %12 = vector.shape_cast %11 : vector<40xf32> to vector<40x1xf32>
    %c0_10 = arith.constant 0 : index
    %c0_11 = arith.constant 0 : index
    %13 = vector.load %arg4[%c0_10, %c0_11] : memref<40x1xf32, #tpu.memory_space<vmem>>, vector<40x1xf32>
    %14 = arith.addf %12, %13 : vector<40x1xf32>
    %cst_12 = arith.constant 0.000000e+00 : f32
    %15 = vector.broadcast %cst_12 : f32 to vector<40x1xf32>
    %16 = arith.maximumf %14, %15 : vector<40x1xf32>
    %c0_13 = arith.constant 0 : index
    %c0_14 = arith.constant 0 : index
    %17 = vector.load %arg5[%c0_13, %c0_14] : memref<10x40xf32, #tpu.memory_space<vmem>>, vector<10x40xf32>
    %cst_15 = arith.constant dense<0.000000e+00> : vector<10x1xf32>
    %18 = tpu.matmul %17, %16, %cst_15 {dimension_numbers = #tpu.dot_dimension_numbers<[1], [0], [0], [1], [0, 0, 1, 1], [], []>} : vector<10x40xf32>, vector<40x1xf32>, vector<10x1xf32> -> vector<10x1xf32>
    %c0_16 = arith.constant 0 : index
    %c0_17 = arith.constant 0 : index
    %19 = vector.load %arg6[%c0_16, %c0_17] : memref<10x1xf32, #tpu.memory_space<vmem>>, vector<10x1xf32>
    %20 = arith.addf %18, %19 : vector<10x1xf32>
    %cst_18 = arith.constant 0.000000e+00 : f32
    %21 = vector.broadcast %cst_18 : f32 to vector<10x1xf32>
    %22 = arith.maximumf %20, %21 : vector<10x1xf32>
    %c0_19 = arith.constant 0 : index
    %c0_20 = arith.constant 0 : index
    %c0_21 = arith.constant 0 : index
    %23 = vector.load %arg7[%c0_19, %c0_20, %c0_21] : memref<1x10x1xf32, #tpu.memory_space<vmem>>, vector<1x10x1xf32>
    %24 = vector.shape_cast %23 : vector<1x10x1xf32> to vector<10x1xf32>
    %25 = vector.shape_cast %22 : vector<10x1xf32> to vector<1x10x1xf32>
    tpu.vector_store %arg7[%c0_19, %c0_20, %c0_21], %25 {strides = array<i32>} : memref<1x10x1xf32, #tpu.memory_space<vmem>>, vector<1x10x1xf32>,
    return
  }
  func.func @transform_0(%arg0: i32) -> (i32, i32, i32) {
    %c0_i32 = arith.constant 0 : i32
    %c0_i32_0 = arith.constant 0 : i32
    %c0_i32_1 = arith.constant 0 : i32
    return %arg0, %c0_i32, %c0_i32_0 : i32, i32, i32
  }
  func.func @transform_1(%arg0: i32) -> (i32, i32) {
    %c0_i32 = arith.constant 0 : i32
    %c0_i32_0 = arith.constant 0 : i32
    %c0_i32_1 = arith.constant 0 : i32
    return %c0_i32, %c0_i32_0 : i32, i32
  }
  func.func @transform_2(%arg0: i32) -> (i32, i32, i32) {
    %c0_i32 = arith.constant 0 : i32
    %c0_i32_0 = arith.constant 0 : i32
    %c0_i32_1 = arith.constant 0 : i32
    %c0_i32_2 = arith.constant 0 : i32
    return %c0_i32, %c0_i32_0, %c0_i32_1 : i32, i32, i32
  }
  func.func @transform_3(%arg0: i32) -> (i32, i32) {
    %c0_i32 = arith.constant 0 : i32
    %c0_i32_0 = arith.constant 0 : i32
    %c0_i32_1 = arith.constant 0 : i32
    return %c0_i32, %c0_i32_0 : i32, i32
  }
  func.func @transform_4(%arg0: i32) -> (i32, i32) {
    %c0_i32 = arith.constant 0 : i32
    %c0_i32_0 = arith.constant 0 : i32
    %c0_i32_1 = arith.constant 0 : i32
    return %c0_i32, %c0_i32_0 : i32, i32
  }
  func.func @transform_5(%arg0: i32) -> (i32, i32) {
    %c0_i32 = arith.constant 0 : i32
    %c0_i32_0 = arith.constant 0 : i32
    %c0_i32_1 = arith.constant 0 : i32
    return %c0_i32, %c0_i32_0 : i32, i32
  }
  func.func @transform_6(%arg0: i32) -> (i32, i32, i32) {
    %c0_i32 = arith.constant 0 : i32
    %c0_i32_0 = arith.constant 0 : i32
    %c0_i32_1 = arith.constant 0 : i32
    return %arg0, %c0_i32, %c0_i32_0 : i32, i32, i32
  }
}

</mosaic_0001>

<llo_original>
// kernel: a_call__.1
$region0: #{a_call__.1}
  #allocation0 [shape = 'u32[]', space=smem, size = 0x4, offset = 0x4, fixed_abs, tag = 'smem constant byte address 0x4 - core index']
  #allocation1 [shape = 'u32[144,128]{1,0:T(1,128)}', space=vmem, size = 0x12000, scoped, tag = 'internal scratch']
  %s0 = inlined_call_operand.vmem [shape: f32[2,104,384], index: 0, kind: input, shape index: {}]
  %s1 = inlined_call_operand.vmem [shape: f32[48,104], index: 1, kind: input, shape index: {}]
  %s2 = inlined_call_operand.vmem [shape: f32[40,48,384], index: 2, kind: input, shape index: {}]
  %s3 = inlined_call_operand.vmem [shape: f32[40,1], index: 3, kind: input, shape index: {}]
  %s4 = inlined_call_operand.vmem [shape: f32[10,40], index: 4, kind: input, shape index: {}]
  %s5 = inlined_call_operand.vmem [shape: f32[10,1], index: 5, kind: input, shape index: {}]
  %s6 = inlined_call_operand.vmem [shape: f32[2,10,1], index: 6, kind: output, shape index: {}]
  %s7 = sld [smem:[#allocation0]]
  $region57: #{a_call__.1} parent=0
    _
  %s9 = ssub.s32 1, %s7
  %s10 = scalar_select 0, %s9, %s7
  loop: start=0, step=1, limit=4
  $region2: #{a_call__.1} parent=0 // loop_pre_header
    _
  $region3: #{a_call__.1} parent=0 // loop_header
    %s12 = sphi 0, %s16
    %p13 = scmp.ge.s32.totalorder %s12, 4
    %s22 = sphi 0, %s24
    %s25 = sphi 0, %s22
    %s26 = sphi 0, %s25
    %s42 = sphi 0, %s26
    %s46 = sphi 0, %s46
    %s48 = sphi 0, %s46
    %s49 = sphi 0, %s48
    %s63 = sphi 0, %s49
    %s67 = sphi 0, %s67
    %s69 = sphi 0, %s67
    %s70 = sphi 0, %s69
    %s84 = sphi 0, %s70
    %s88 = sphi 0, %s88
    %s90 = sphi 0, %s88
    %s91 = sphi 0, %s90
    %s105 = sphi 0, %s91
    %s109 = sphi 0, %s109
    %s111 = sphi 0, %s109
    %s112 = sphi 0, %s111
    %s126 = sphi 0, %s112
    %s130 = sphi 0, %s130
    %s132 = sphi 0, %s130
    %s133 = sphi 0, %s132
    %s147 = sphi 0, %s133
    %s153 = sphi 0, %s155
    %s156 = sphi 0, %s153
    %s157 = sphi 0, %s156
    %s173 = sphi 0, %s157
  $region4: #{a_call__.1} parent=0 // loop_header_branch
    %15 = sbr.rel (%p13) target = $region8
  $region5: #{a_call__.1} parent=0 // loop_body
    %s17 = ssub.s32 %s12, 1
    %s18 = ssub.s32 %s12, 2
    %s19 = sadd.s32 %s12, 1
    %s20 = ssub.s32 %s12, %s19
    %p21 = scmp.eq.s32.totalorder %s20, 0
    %s23 = sadd.s32 %s22, 1
    %s24 = scalar_select %p21, %s22, %s23
    %p27 = pneg %p21
    %p28 = scmp.eq.s32.totalorder %s12, 1
    %p29 = por %p27, %p28
    %p30 = scmp.ne.s32.totalorder %s22, %s25
    %p31 = scmp.eq.s32.totalorder %s12, 0
    %p32 = por %p30, %p31
    %p33 = scmp.ne.s32.totalorder %s22, %s25
    %p34 = scmp.eq.s32.totalorder %s17, 1
    %p35 = por %p33, %p34
    %p36 = scmp.ne.s32.totalorder %s25, %s26
    %p37 = scmp.eq.s32.totalorder %s17, 0
    %p38 = por %p36, %p37
    %p39 = scmp.ne.s32.totalorder %s25, %s26
    %p40 = scmp.eq.s32.totalorder %s18, 1
    %p41 = por %p39, %p40
    %p43 = scmp.ne.s32.totalorder %s26, %s42
    %p44 = scmp.eq.s32.totalorder %s18, 0
    %p45 = por %p43, %p44
    %s47 = sadd.s32 %s46, 1
    %p50 = scmp.eq.s32.totalorder %s12, 1
    %p51 = scmp.ne.s32.totalorder %s46, %s48
    %p52 = scmp.eq.s32.totalorder %s12, 0
    %p53 = por %p51, %p52
    %p54 = scmp.ne.s32.totalorder %s46, %s48
    %p55 = scmp.eq.s32.totalorder %s17, 1
    %p56 = por %p54, %p55
    %p57 = scmp.ne.s32.totalorder %s48, %s49
    %p58 = scmp.eq.s32.totalorder %s17, 0
    %p59 = por %p57, %p58
    %p60 = scmp.ne.s32.totalorder %s48, %s49
    %p61 = scmp.eq.s32.totalorder %s18, 1
    %p62 = por %p60, %p61
    %p64 = scmp.ne.s32.totalorder %s49, %s63
    %p65 = scmp.eq.s32.totalorder %s18, 0
    %p66 = por %p64, %p65
    %s68 = sadd.s32 %s67, 1
    %p71 = scmp.eq.s32.totalorder %s12, 1
    %p72 = scmp.ne.s32.totalorder %s67, %s69
    %p73 = scmp.eq.s32.totalorder %s12, 0
    %p74 = por %p72, %p73
    %p75 = scmp.ne.s32.totalorder %s67, %s69
    %p76 = scmp.eq.s32.totalorder %s17, 1
    %p77 = por %p75, %p76
    %p78 = scmp.ne.s32.totalorder %s69, %s70
    %p79 = scmp.eq.s32.totalorder %s17, 0
    %p80 = por %p78, %p79
    %p81 = scmp.ne.s32.totalorder %s69, %s70
    %p82 = scmp.eq.s32.totalorder %s18, 1
    %p83 = por %p81, %p82
    %p85 = scmp.ne.s32.totalorder %s70, %s84
    %p86 = scmp.eq.s32.totalorder %s18, 0
    %p87 = por %p85, %p86
    %s89 = sadd.s32 %s88, 1
    %p92 = scmp.eq.s32.totalorder %s12, 1
    %p93 = scmp.ne.s32.totalorder %s88, %s90
    %p94 = scmp.eq.s32.totalorder %s12, 0
    %p95 = por %p93, %p94
    %p96 = scmp.ne.s32.totalorder %s88, %s90
    %p97 = scmp.eq.s32.totalorder %s17, 1
    %p98 = por %p96, %p97
    %p99 = scmp.ne.s32.totalorder %s90, %s91
    %p100 = scmp.eq.s32.totalorder %s17, 0
    %p101 = por %p99, %p100
    %p102 = scmp.ne.s32.totalorder %s90, %s91
    %p103 = scmp.eq.s32.totalorder %s18, 1
    %p104 = por %p102, %p103
    %p106 = scmp.ne.s32.totalorder %s91, %s105
    %p107 = scmp.eq.s32.totalorder %s18, 0
    %p108 = por %p106, %p107
    %s110 = sadd.s32 %s109, 1
    %p113 = scmp.eq.s32.totalorder %s12, 1
    %p114 = scmp.ne.s32.totalorder %s109, %s111
    %p115 = scmp.eq.s32.totalorder %s12, 0
    %p116 = por %p114, %p115
    %p117 = scmp.ne.s32.totalorder %s109, %s111
    %p118 = scmp.eq.s32.totalorder %s17, 1
    %p119 = por %p117, %p118
    %p120 = scmp.ne.s32.totalorder %s111, %s112
    %p121 = scmp.eq.s32.totalorder %s17, 0
    %p122 = por %p120, %p121
    %p123 = scmp.ne.s32.totalorder %s111, %s112
    %p124 = scmp.eq.s32.totalorder %s18, 1
    %p125 = por %p123, %p124
    %p127 = scmp.ne.s32.totalorder %s112, %s126
    %p128 = scmp.eq.s32.totalorder %s18, 0
    %p129 = por %p127, %p128
    %s131 = sadd.s32 %s130, 1
    %p134 = scmp.eq.s32.totalorder %s12, 1
    %p135 = scmp.ne.s32.totalorder %s130, %s132
    %p136 = scmp.eq.s32.totalorder %s12, 0
    %p137 = por %p135, %p136
    %p138 = scmp.ne.s32.totalorder %s130, %s132
    %p139 = scmp.eq.s32.totalorder %s17, 1
    %p140 = por %p138, %p139
    %p141 = scmp.ne.s32.totalorder %s132, %s133
    %p142 = scmp.eq.s32.totalorder %s17, 0
    %p143 = por %p141, %p142
    %p144 = scmp.ne.s32.totalorder %s132, %s133
    %p145 = scmp.eq.s32.totalorder %s18, 1
    %p146 = por %p144, %p145
    %p148 = scmp.ne.s32.totalorder %s133, %s147
    %p149 = scmp.eq.s32.totalorder %s18, 0
    %p150 = por %p148, %p149
    %s151 = ssub.s32 %s12, %s19
    %p152 = scmp.eq.s32.totalorder %s151, 0
    %s154 = sadd.s32 %s153, 1
    %s155 = scalar_select %p152, %s153, %s154
    %p158 = pneg %p152
    %p159 = scmp.eq.s32.totalorder %s12, 1
    %p160 = por %p158, %p159
    %p161 = scmp.ne.s32.totalorder %s153, %s156
    %p162 = scmp.eq.s32.totalorder %s12, 0
    %p163 = por %p161, %p162
    %p164 = scmp.ne.s32.totalorder %s153, %s156
    %p165 = scmp.eq.s32.totalorder %s17, 1
    %p166 = por %p164, %p165
    %p167 = scmp.ne.s32.totalorder %s156, %s157
    %p168 = scmp.eq.s32.totalorder %s17, 0
    %p169 = por %p167, %p168
    %p170 = scmp.ne.s32.totalorder %s156, %s157
    %p171 = scmp.eq.s32.totalorder %s18, 1
    %p172 = por %p170, %p171
    %p174 = scmp.ne.s32.totalorder %s157, %s173
    %p175 = scmp.eq.s32.totalorder %s18, 0
    %p176 = por %p174, %p175
    %p177 = scmp.le.s32.totalorder 1, %s12
    %p178 = scmp.lt.s32.totalorder %s12, 3
    %p179 = pnand %p177, %p178
    %p180 = pneg %p179
    // Predicated region
    $region9: #{a_call__.1} parent=5 // pred_check
      _
    $region10: #{a_call__.1} parent=5 // pred_check_branch
      %182 = sbr.rel (%p179) target = $region12
    $region11: #{a_call__.1} parent=5 // pred_region
      %s183 = ssub.s32 %s12, 1
      // Predicated region
      $region13: #{a_call__.1} parent=11 // pred_check
        %p184 = pneg %p59
      $region14: #{a_call__.1} parent=11 // pred_check_branch
        %186 = sbr.rel (%p184) target = $region16
      $region15: #{a_call__.1} parent=11 // pred_region
        _
      $region16: #{a_call__.1} parent=11 // pred_fallthru
        _
      // Predicated region
      $region17: #{a_call__.1} parent=11 // pred_check
        %p187 = pneg %p80
      $region18: #{a_call__.1} parent=11 // pred_check_branch
        %189 = sbr.rel (%p187) target = $region20
      $region19: #{a_call__.1} parent=11 // pred_region
        _
      $region20: #{a_call__.1} parent=11 // pred_fallthru
        _
      // Predicated region
      $region21: #{a_call__.1} parent=11 // pred_check
        %p190 = pneg %p101
      $region22: #{a_call__.1} parent=11 // pred_check_branch
        %192 = sbr.rel (%p190) target = $region24
      $region23: #{a_call__.1} parent=11 // pred_region
        _
      $region24: #{a_call__.1} parent=11 // pred_fallthru
        _
      // Predicated region
      $region25: #{a_call__.1} parent=11 // pred_check
        %p193 = pneg %p122
      $region26: #{a_call__.1} parent=11 // pred_check_branch
        %195 = sbr.rel (%p193) target = $region28
      $region27: #{a_call__.1} parent=11 // pred_region
        _
      $region28: #{a_call__.1} parent=11 // pred_fallthru
        _
      // Predicated region
      $region29: #{a_call__.1} parent=11 // pred_check
        %p196 = pneg %p143
      $region30: #{a_call__.1} parent=11 // pred_check_branch
        %198 = sbr.rel (%p196) target = $region32
      $region31: #{a_call__.1} parent=11 // pred_region
        _
      $region32: #{a_call__.1} parent=11 // pred_fallthru
        _
    $region12: #{a_call__.1} parent=5 // pred_fallthru
      _
    %p199 = scmp.lt.s32.totalorder %s12, 2
    // Predicated region
    $region33: #{a_call__.1} parent=5 // pred_check
      %p200 = pneg %p199
    $region34: #{a_call__.1} parent=5 // pred_check_branch
      %202 = sbr.rel (%p200) target = $region36
    $region35: #{a_call__.1} parent=5 // pred_region
      // Predicated region
      $region37: #{a_call__.1} parent=35 // pred_check
        %p203 = pneg %p32
      $region38: #{a_call__.1} parent=35 // pred_check_branch
        %205 = sbr.rel (%p203) target = $region40
      $region39: #{a_call__.1} parent=35 // pred_region
        %p206 = scmp.lt.s32.totalorder %s12, 1
        %s207 = scalar_select %p206, %s12, 1
        %s208 = smul.addr %s207, 39
        %s209 = smul.addr %s208, 8
        %s210 = scalar_lea.vmem %s0, %s209
      $region40: #{a_call__.1} parent=35 // pred_fallthru
        _
    $region36: #{a_call__.1} parent=5 // pred_fallthru
      _
    %p211 = scmp.le.s32.totalorder 1, %s12
    %p212 = scmp.lt.s32.totalorder %s12, 3
    %p213 = pnand %p211, %p212
    %p214 = pneg %p213
    // Predicated region
    $region41: #{a_call__.1} parent=5 // pred_check
      _
    $region42: #{a_call__.1} parent=5 // pred_check_branch
      %216 = sbr.rel (%p213) target = $region44
    $region43: #{a_call__.1} parent=5 // pred_region
      %s217 = ssub.s32 %s12, 1
      %p218 = scmp.lt.s32.totalorder %s17, 1
      %s219 = scalar_select %p218, %s17, 1
      %s220 = smul.addr %s219, 39
      %s221 = smul.addr %s220, 8
      %s222 = scalar_lea.vmem %s0, %s221
      %p223 = pneg %p38
      %p224 = pneg %p35
      %p225 = pneg %p59
      %p226 = pneg %p56
      %p227 = pneg %p80
      %p228 = pneg %p77
      %p229 = pneg %p101
      %p230 = pneg %p98
      %p231 = pneg %p122
      %p232 = pneg %p119
      %p233 = pneg %p143
      %p234 = pneg %p140
      %p235 = pneg %p169
      %p236 = pneg %p166
      %p237 = scmp.lt.s32.totalorder %s17, 1
      %s238 = scalar_select %p237, %s17, 1
      %s239 = smul.addr %s238, 2
      %s240 = smul.addr %s239, 8
      %s241 = scalar_lea.vmem %s6, %s240
      %p242 = scmp.lt.s32.totalorder %s17, 1
      %s243 = scalar_select %p242, %s17, 1
      %s244 = smul.addr %s243, 39
      %s245 = smul.addr %s244, 8
      %s246 = scalar_lea.vmem %s0, %s245
      %p247 = scmp.lt.s32.totalorder %s17, 1
      %s248 = scalar_select %p247, %s17, 1
      %s249 = smul.addr %s248, 2
      %s250 = smul.addr %s249, 8
      %s251 = scalar_lea.vmem %s6, %s250
      %v252 = vld [vmem:[%s1] sm:$0xff]
      %v253 = vld [vmem:[%s1 + $0x8] sm:$0xff]
      %v254 = vld [vmem:[%s1 + $0x10] sm:$0xff]
      %v255 = vld [vmem:[%s1 + $0x18] sm:$0xff]
      %v256 = vld [vmem:[%s1 + $0x20] sm:$0xff]
      %v257 = vld [vmem:[%s1 + $0x28] sm:$0xff]
      %v258 = vld [vmem:[%s246] sm:$0xff]
      %v259 = vld [vmem:[%s246 + $0x8] sm:$0xff]
      %v260 = vld [vmem:[%s246 + $0x10] sm:$0xff]
      %v261 = vld [vmem:[%s246 + $0x18] sm:$0xff]
      %v262 = vld [vmem:[%s246 + $0x20] sm:$0xff]
      %v263 = vld [vmem:[%s246 + $0x28] sm:$0xff]
      %v264 = vld [vmem:[%s246 + $0x30] sm:$0xff]
      %v265 = vld [vmem:[%s246 + $0x38] sm:$0xff]
      %v266 = vld [vmem:[%s246 + $0x40] sm:$0xff]
      %v267 = vld [vmem:[%s246 + $0x48] sm:$0xff]
      %v268 = vld [vmem:[%s246 + $0x50] sm:$0xff]
      %v269 = vld [vmem:[%s246 + $0x58] sm:$0xff]
      %v270 = vld [vmem:[%s246 + $0x60] sm:$0xff]
      %v271 = vld [vmem:[%s246 + $0x68] sm:$0xff]
      %v272 = vld [vmem:[%s246 + $0x70] sm:$0xff]
      %v273 = vld [vmem:[%s246 + $0x78] sm:$0xff]
      %v274 = vld [vmem:[%s246 + $0x80] sm:$0xff]
      %v275 = vld [vmem:[%s246 + $0x88] sm:$0xff]
      %v276 = vld [vmem:[%s246 + $0x90] sm:$0xff]
      %v277 = vld [vmem:[%s246 + $0x98] sm:$0xff]
      %v278 = vld [vmem:[%s246 + $0xa0] sm:$0xff]
      %v279 = vld [vmem:[%s246 + $0xa8] sm:$0xff]
      %v280 = vld [vmem:[%s246 + $0xb0] sm:$0xff]
      %v281 = vld [vmem:[%s246 + $0xb8] sm:$0xff]
      %v282 = vld [vmem:[%s246 + $0xc0] sm:$0xff]
      %v283 = vld [vmem:[%s246 + $0xc8] sm:$0xff]
      %v284 = vld [vmem:[%s246 + $0xd0] sm:$0xff]
      %v285 = vld [vmem:[%s246 + $0xd8] sm:$0xff]
      %v286 = vld [vmem:[%s246 + $0xe0] sm:$0xff]
      %v287 = vld [vmem:[%s246 + $0xe8] sm:$0xff]
      %v288 = vld [vmem:[%s246 + $0xf0] sm:$0xff]
      %v289 = vld [vmem:[%s246 + $0xf8] sm:$0xff]
      %v290 = vld [vmem:[%s246 + $0x100] sm:$0xff]
      %v291 = vld [vmem:[%s246 + $0x108] sm:$0xff]
      %v292 = vld [vmem:[%s246 + $0x110] sm:$0xff]
      %v293 = vld [vmem:[%s246 + $0x118] sm:$0xff]
      %v294 = vld [vmem:[%s246 + $0x120] sm:$0xff]
      %v295 = vld [vmem:[%s246 + $0x128] sm:$0xff]
      %v296 = vld [vmem:[%s246 + $0x130] sm:$0xff]
      %vm297 = vcmask 850944
      %v299 = vsel %vm297, %v252, 0
      %v302 = vsel %vm297, %v253, 0
      %v305 = vsel %vm297, %v254, 0
      %v308 = vsel %vm297, %v255, 0
      %v311 = vsel %vm297, %v256, 0
      %v314 = vsel %vm297, %v257, 0
      %316 = vmatprep.subr.mxu0 0.0
      %317 = vmatpush1.msra.mxu0 0.0
      %318 = vmatprep.subr.mxu0 0.0
      %319 = vmatpush1.msra.mxu0 0.0
      %320 = vmatprep.subr.mxu0 0.0
      %321 = vmatpush1.msra.mxu0 0.0
      %322 = vmatprep.subr.mxu0 %v295
      %323 = vmatpush1.msra.mxu0 %v294
      %324 = vmatprep.subr.mxu0 %v292
      %325 = vmatpush1.msra.mxu0 %v291
      %326 = vmatprep.subr.mxu0 %v289
      %327 = vmatpush1.msra.mxu0 %v288
      %328 = vmatprep.subr.mxu0 %v286
      %329 = vmatpush1.msra.mxu0 %v285
      %330 = vmatprep.subr.mxu0 %v283
      %331 = vmatpush1.msra.mxu0 %v282
      %332 = vmatprep.subr.mxu0 %v280
      %333 = vmatpush1.msra.mxu0 %v279
      %334 = vmatprep.subr.mxu0 %v277
      %335 = vmatpush1.msra.mxu0 %v276
      %336 = vmatprep.subr.mxu0 %v274
      %337 = vmatpush1.msra.mxu0 %v273
      %338 = vmatprep.subr.mxu0 %v271
      %339 = vmatpush1.msra.mxu0 %v270
      %340 = vmatprep.subr.mxu0 %v268
      %341 = vmatpush1.msra.mxu0 %v267
      %342 = vmatprep.subr.mxu0 %v265
      %343 = vmatpush1.msra.mxu0 %v264
      %344 = vmatprep.subr.mxu0 %v262
      %345 = vmatpush1.msra.mxu0 %v261
      %346 = vmatprep.subr.mxu0 %v259
      %347 = vmatpush1.msra.mxu0 %v258
      %348 = vmatprep.subr.mxu0 0.0
      %349 = vmatpush2.msra.mxu0 0.0
      %350 = vmatprep.subr.mxu0 0.0
      %351 = vmatpush2.msra.mxu0 0.0
      %352 = vmatprep.subr.mxu0 0.0
      %353 = vmatpush2.msra.mxu0 0.0
      %354 = vmatprep.subr.mxu0 0.0
      %355 = vmatpush2.msra.mxu0 0.0
      %356 = vmatprep.subr.mxu0 0.0
      %357 = vmatpush2.msra.mxu0 0.0
      %358 = vmatprep.subr.mxu0 0.0
      %359 = vmatpush2.msra.mxu0 0.0
      %360 = vmatprep.subr.mxu0 0.0
      %361 = vmatpush2.msra.mxu0 0.0
      %362 = vmatprep.subr.mxu0 0.0
      %363 = vmatpush2.msra.mxu0 0.0
      %364 = vmatprep.subr.mxu0 0.0
      %365 = vmatpush2.msra.mxu0 0.0
      %366 = vmatprep.subr.mxu0 0.0
      %367 = vmatpush2.msra.mxu0 0.0
      %368 = vmatprep.subr.mxu0 0.0
      %369 = vmatpush2.msra.mxu0 0.0
      %370 = vmatprep.subr.mxu0 0.0
      %371 = vmatpush2.msra.mxu0 0.0
      %372 = vmatprep.subr.mxu0 0.0
      %373 = vmatpush2.msra.mxu0 0.0
      %374 = vmatprep.subr.mxu0 0.0
      %375 = vmatpush2.msra.mxu0 0.0
      %376 = vmatprep.subr.mxu0 0.0
      %377 = vmatpush2.msra.mxu0 0.0
      %378 = vmatprep.subr.mxu0 0.0
      %379 = vmatpush2.msra.mxu0 0.0
      %380 = vmatprep.mubr.f32.mxu0 0.0
      %381 = vmatmul.mubr.f32.gmra.mxu0 %v299
      %v382 = vpop.f32.mrf.mxu0
      %v383 = vadd.f32 0.0, %v382
      %v384 = vpop.f32.mrf.mxu0
      %v385 = vadd.f32 0.0, %v384
      %386 = vmatprep.mubr.f32.mxu0 0.0
      %387 = vmatmul.mubr.f32.gmra.mxu0 %v302
      %v388 = vpop.f32.mrf.mxu0
      %v389 = vadd.f32 0.0, %v388
      %v390 = vpop.f32.mrf.mxu0
      %v391 = vadd.f32 0.0, %v390
      %392 = vmatprep.mubr.f32.mxu0 0.0
      %393 = vmatmul.mubr.f32.gmra.mxu0 %v305
      %v394 = vpop.f32.mrf.mxu0
      %v395 = vadd.f32 0.0, %v394
      %v396 = vpop.f32.mrf.mxu0
      %v397 = vadd.f32 0.0, %v396
      %398 = vmatprep.mubr.f32.mxu0 0.0
      %399 = vmatmul.mubr.f32.gmra.mxu0 %v308
      %v400 = vpop.f32.mrf.mxu0
      %v401 = vadd.f32 0.0, %v400
      %v402 = vpop.f32.mrf.mxu0
      %v403 = vadd.f32 0.0, %v402
      %404 = vmatprep.mubr.f32.mxu0 0.0
      %405 = vmatmul.mubr.f32.gmra.mxu0 %v311
      %v406 = vpop.f32.mrf.mxu0
      %v407 = vadd.f32 0.0, %v406
      %v408 = vpop.f32.mrf.mxu0
      %v409 = vadd.f32 0.0, %v408
      %410 = vmatprep.mubr.f32.mxu0 0.0
      %411 = vmatmul.mubr.f32.gmra.mxu0 %v314
      %v412 = vpop.f32.mrf.mxu0
      %v413 = vadd.f32 0.0, %v412
      %v414 = vpop.f32.mrf.mxu0
      %v415 = vadd.f32 0.0, %v414
      %416 = vdwg.mxu0
      %417 = vmatprep.subr.mxu0 0.0
      %418 = vmatpush1.msra.mxu0 0.0
      %419 = vmatprep.subr.mxu0 0.0
      %420 = vmatpush1.msra.mxu0 0.0
      %421 = vmatprep.subr.mxu0 0.0
      %422 = vmatpush1.msra.mxu0 0.0
      %423 = vmatprep.subr.mxu0 0.0
      %424 = vmatpush1.msra.mxu0 %v296
      %425 = vmatprep.subr.mxu0 0.0
      %426 = vmatpush1.msra.mxu0 %v293
      %427 = vmatprep.subr.mxu0 0.0
      %428 = vmatpush1.msra.mxu0 %v290
      %429 = vmatprep.subr.mxu0 0.0
      %430 = vmatpush1.msra.mxu0 %v287
      %431 = vmatprep.subr.mxu0 0.0
      %432 = vmatpush1.msra.mxu0 %v284
      %433 = vmatprep.subr.mxu0 0.0
      %434 = vmatpush1.msra.mxu0 %v281
      %435 = vmatprep.subr.mxu0 0.0
      %436 = vmatpush1.msra.mxu0 %v278
      %437 = vmatprep.subr.mxu0 0.0
      %438 = vmatpush1.msra.mxu0 %v275
      %439 = vmatprep.subr.mxu0 0.0
      %440 = vmatpush1.msra.mxu0 %v272
      %441 = vmatprep.subr.mxu0 0.0
      %442 = vmatpush1.msra.mxu0 %v269
      %443 = vmatprep.subr.mxu0 0.0
      %444 = vmatpush1.msra.mxu0 %v266
      %445 = vmatprep.subr.mxu0 0.0
      %446 = vmatpush1.msra.mxu0 %v263
      %447 = vmatprep.subr.mxu0 0.0
      %448 = vmatpush1.msra.mxu0 %v260
      %449 = vmatprep.subr.mxu0 0.0
      %450 = vmatpush2.msra.mxu0 0.0
      %451 = vmatprep.subr.mxu0 0.0
      %452 = vmatpush2.msra.mxu0 0.0
      %453 = vmatprep.subr.mxu0 0.0
      %454 = vmatpush2.msra.mxu0 0.0
      %455 = vmatprep.subr.mxu0 0.0
      %456 = vmatpush2.msra.mxu0 0.0
      %457 = vmatprep.subr.mxu0 0.0
      %458 = vmatpush2.msra.mxu0 0.0
      %459 = vmatprep.subr.mxu0 0.0
      %460 = vmatpush2.msra.mxu0 0.0
      %461 = vmatprep.subr.mxu0 0.0
      %462 = vmatpush2.msra.mxu0 0.0
      %463 = vmatprep.subr.mxu0 0.0
      %464 = vmatpush2.msra.mxu0 0.0
      %465 = vmatprep.subr.mxu0 0.0
      %466 = vmatpush2.msra.mxu0 0.0
      %467 = vmatprep.subr.mxu0 0.0
      %468 = vmatpush2.msra.mxu0 0.0
      %469 = vmatprep.subr.mxu0 0.0
      %470 = vmatpush2.msra.mxu0 0.0
      %471 = vmatprep.subr.mxu0 0.0
      %472 = vmatpush2.msra.mxu0 0.0
      %473 = vmatprep.subr.mxu0 0.0
      %474 = vmatpush2.msra.mxu0 0.0
      %475 = vmatprep.subr.mxu0 0.0
      %476 = vmatpush2.msra.mxu0 0.0
      %477 = vmatprep.subr.mxu0 0.0
      %478 = vmatpush2.msra.mxu0 0.0
      %479 = vmatprep.subr.mxu0 0.0
      %480 = vmatpush2.msra.mxu0 0.0
      %481 = vmatprep.mubr.f32.mxu0 0.0
      %482 = vmatmul.mubr.f32.gmra.mxu0 %v299
      %v483 = vpop.f32.mrf.mxu0
      %v484 = vadd.f32 0.0, %v483
      %v485 = vpop.f32.mrf.mxu0
      %486 = vmatprep.mubr.f32.mxu0 0.0
      %487 = vmatmul.mubr.f32.gmra.mxu0 %v302
      %v488 = vpop.f32.mrf.mxu0
      %v489 = vadd.f32 0.0, %v488
      %v490 = vpop.f32.mrf.mxu0
      %491 = vmatprep.mubr.f32.mxu0 0.0
      %492 = vmatmul.mubr.f32.gmra.mxu0 %v305
      %v493 = vpop.f32.mrf.mxu0
      %v494 = vadd.f32 0.0, %v493
      %v495 = vpop.f32.mrf.mxu0
      %496 = vmatprep.mubr.f32.mxu0 0.0
      %497 = vmatmul.mubr.f32.gmra.mxu0 %v308
      %v498 = vpop.f32.mrf.mxu0
      %v499 = vadd.f32 0.0, %v498
      %v500 = vpop.f32.mrf.mxu0
      %501 = vmatprep.mubr.f32.mxu0 0.0
      %502 = vmatmul.mubr.f32.gmra.mxu0 %v311
      %v503 = vpop.f32.mrf.mxu0
      %v504 = vadd.f32 0.0, %v503
      %v505 = vpop.f32.mrf.mxu0
      %506 = vmatprep.mubr.f32.mxu0 0.0
      %507 = vmatmul.mubr.f32.gmra.mxu0 %v314
      %v508 = vpop.f32.mrf.mxu0
      %v509 = vadd.f32 0.0, %v508
      %v510 = vpop.f32.mrf.mxu0
      %511 = vdwg.mxu0
      %v512 = vmax.f32 %v383, 0.0
      %v513 = vmax.f32 %v385, 0.0
      %v514 = vmax.f32 %v484, 0.0
      %v515 = vmax.f32 %v389, 0.0
      %v516 = vmax.f32 %v391, 0.0
      %v517 = vmax.f32 %v489, 0.0
      %v518 = vmax.f32 %v395, 0.0
      %v519 = vmax.f32 %v397, 0.0
      %v520 = vmax.f32 %v494, 0.0
      %v521 = vmax.f32 %v401, 0.0
      %v522 = vmax.f32 %v403, 0.0
      %v523 = vmax.f32 %v499, 0.0
      %v524 = vmax.f32 %v407, 0.0
      %v525 = vmax.f32 %v409, 0.0
      %v526 = vmax.f32 %v504, 0.0
      %v527 = vmax.f32 %v413, 0.0
      %v528 = vmax.f32 %v415, 0.0
      %v529 = vmax.f32 %v509, 0.0
      %v530 = vld [vmem:[%s2] sm:$0xff]
      %v531 = vld [vmem:[%s2 + $0x8] sm:$0xff]
      %v532 = vld [vmem:[%s2 + $0x10] sm:$0xff]
      %v533 = vld [vmem:[%s2 + $0x18] sm:$0xff]
      %v534 = vld [vmem:[%s2 + $0x20] sm:$0xff]
      %v535 = vld [vmem:[%s2 + $0x28] sm:$0xff]
      %v536 = vld [vmem:[%s2 + $0x30] sm:$0xff]
      %v537 = vld [vmem:[%s2 + $0x38] sm:$0xff]
      %v538 = vld [vmem:[%s2 + $0x40] sm:$0xff]
      %v539 = vld [vmem:[%s2 + $0x48] sm:$0xff]
      %v540 = vld [vmem:[%s2 + $0x50] sm:$0xff]
      %v541 = vld [vmem:[%s2 + $0x58] sm:$0xff]
      %v542 = vld [vmem:[%s2 + $0x60] sm:$0xff]
      %v543 = vld [vmem:[%s2 + $0x68] sm:$0xff]
      %v544 = vld [vmem:[%s2 + $0x70] sm:$0xff]
      %v545 = vld [vmem:[%s2 + $0x78] sm:$0xff]
      %v546 = vld [vmem:[%s2 + $0x80] sm:$0xff]
      %v547 = vld [vmem:[%s2 + $0x88] sm:$0xff]
      %v548 = vld [vmem:[%s2 + $0x90] sm:$0xff]
      %v549 = vld [vmem:[%s2 + $0x98] sm:$0xff]
      %v550 = vld [vmem:[%s2 + $0xa0] sm:$0xff]
      %v551 = vld [vmem:[%s2 + $0xa8] sm:$0xff]
      %v552 = vld [vmem:[%s2 + $0xb0] sm:$0xff]
      %v553 = vld [vmem:[%s2 + $0xb8] sm:$0xff]
      %v554 = vld [vmem:[%s2 + $0xc0] sm:$0xff]
      %v555 = vld [vmem:[%s2 + $0xc8] sm:$0xff]
      %v556 = vld [vmem:[%s2 + $0xd0] sm:$0xff]
      %v557 = vld [vmem:[%s2 + $0xd8] sm:$0xff]
      %v558 = vld [vmem:[%s2 + $0xe0] sm:$0xff]
      %v559 = vld [vmem:[%s2 + $0xe8] sm:$0xff]
      %v560 = vld [vmem:[%s2 + $0xf0] sm:$0xff]
      %v561 = vld [vmem:[%s2 + $0xf8] sm:$0xff]
      %v562 = vld [vmem:[%s2 + $0x100] sm:$0xff]
      %v563 = vld [vmem:[%s2 + $0x108] sm:$0xff]
      %v564 = vld [vmem:[%s2 + $0x110] sm:$0xff]
      %v565 = vld [vmem:[%s2 + $0x118] sm:$0xff]
      %v566 = vld [vmem:[%s2 + $0x120] sm:$0xff]
      %v567 = vld [vmem:[%s2 + $0x128] sm:$0xff]
      %v568 = vld [vmem:[%s2 + $0x130] sm:$0xff]
      %v569 = vld [vmem:[%s2 + $0x138] sm:$0xff]
      %v570 = vld [vmem:[%s2 + $0x140] sm:$0xff]
      %v571 = vld [vmem:[%s2 + $0x148] sm:$0xff]
      %v572 = vld [vmem:[%s2 + $0x150] sm:$0xff]
      %v573 = vld [vmem:[%s2 + $0x158] sm:$0xff]
      %v574 = vld [vmem:[%s2 + $0x160] sm:$0xff]
      %v575 = vld [vmem:[%s2 + $0x168] sm:$0xff]
      %v576 = vld [vmem:[%s2 + $0x170] sm:$0xff]
      %v577 = vld [vmem:[%s2 + $0x178] sm:$0xff]
      %v578 = vld [vmem:[%s2 + $0x180] sm:$0xff]
      %v579 = vld [vmem:[%s2 + $0x188] sm:$0xff]
      %v580 = vld [vmem:[%s2 + $0x190] sm:$0xff]
      %v581 = vld [vmem:[%s2 + $0x198] sm:$0xff]
      %v582 = vld [vmem:[%s2 + $0x1a0] sm:$0xff]
      %v583 = vld [vmem:[%s2 + $0x1a8] sm:$0xff]
      %v584 = vld [vmem:[%s2 + $0x1b0] sm:$0xff]
      %v585 = vld [vmem:[%s2 + $0x1b8] sm:$0xff]
      %v586 = vld [vmem:[%s2 + $0x1c0] sm:$0xff]
      %v587 = vld [vmem:[%s2 + $0x1c8] sm:$0xff]
      %v588 = vld [vmem:[%s2 + $0x1d0] sm:$0xff]
      %v589 = vld [vmem:[%s2 + $0x1d8] sm:$0xff]
      %v590 = vld [vmem:[%s2 + $0x1e0] sm:$0xff]
      %v591 = vld [vmem:[%s2 + $0x1e8] sm:$0xff]
      %v592 = vld [vmem:[%s2 + $0x1f0] sm:$0xff]
      %v593 = vld [vmem:[%s2 + $0x1f8] sm:$0xff]
      %v594 = vld [vmem:[%s2 + $0x200] sm:$0xff]
      %v595 = vld [vmem:[%s2 + $0x208] sm:$0xff]
      %v596 = vld [vmem:[%s2 + $0x210] sm:$0xff]
      %v597 = vld [vmem:[%s2 + $0x218] sm:$0xff]
      %v598 = vld [vmem:[%s2 + $0x220] sm:$0xff]
      %v599 = vld [vmem:[%s2 + $0x228] sm:$0xff]
      %v600 = vld [vmem:[%s2 + $0x230] sm:$0xff]
      %v601 = vld [vmem:[%s2 + $0x238] sm:$0xff]
      %v602 = vld [vmem:[%s2 + $0x240] sm:$0xff]
      %v603 = vld [vmem:[%s2 + $0x248] sm:$0xff]
      %v604 = vld [vmem:[%s2 + $0x250] sm:$0xff]
      %v605 = vld [vmem:[%s2 + $0x258] sm:$0xff]
      %v606 = vld [vmem:[%s2 + $0x260] sm:$0xff]
      %v607 = vld [vmem:[%s2 + $0x268] sm:$0xff]
      %v608 = vld [vmem:[%s2 + $0x270] sm:$0xff]
      %v609 = vld [vmem:[%s2 + $0x278] sm:$0xff]
      %v610 = vld [vmem:[%s2 + $0x280] sm:$0xff]
      %v611 = vld [vmem:[%s2 + $0x288] sm:$0xff]
      %v612 = vld [vmem:[%s2 + $0x290] sm:$0xff]
      %v613 = vld [vmem:[%s2 + $0x298] sm:$0xff]
      %v614 = vld [vmem:[%s2 + $0x2a0] sm:$0xff]
      %v615 = vld [vmem:[%s2 + $0x2a8] sm:$0xff]
      %v616 = vld [vmem:[%s2 + $0x2b0] sm:$0xff]
      %v617 = vld [vmem:[%s2 + $0x2b8] sm:$0xff]
      %v618 = vld [vmem:[%s2 + $0x2c0] sm:$0xff]
      %v619 = vld [vmem:[%s2 + $0x2c8] sm:$0xff]
      %v620 = vld [vmem:[%s2 + $0x2d0] sm:$0xff]
      %v621 = vld [vmem:[%s2 + $0x2d8] sm:$0xff]
      %v622 = vld [vmem:[%s2 + $0x2e0] sm:$0xff]
      %v623 = vld [vmem:[%s2 + $0x2e8] sm:$0xff]
      %v624 = vld [vmem:[%s2 + $0x2f0] sm:$0xff]
      %v625 = vld [vmem:[%s2 + $0x2f8] sm:$0xff]
      %v626 = vld [vmem:[%s2 + $0x300] sm:$0xff]
      %v627 = vld [vmem:[%s2 + $0x308] sm:$0xff]
      %v628 = vld [vmem:[%s2 + $0x310] sm:$0xff]
      %v629 = vld [vmem:[%s2 + $0x318] sm:$0xff]
      %v630 = vld [vmem:[%s2 + $0x320] sm:$0xff]
      %v631 = vld [vmem:[%s2 + $0x328] sm:$0xff]
      %v632 = vld [vmem:[%s2 + $0x330] sm:$0xff]
      %v633 = vld [vmem:[%s2 + $0x338] sm:$0xff]
      %v634 = vld [vmem:[%s2 + $0x340] sm:$0xff]
      %v635 = vld [vmem:[%s2 + $0x348] sm:$0xff]
      %v636 = vld [vmem:[%s2 + $0x350] sm:$0xff]
      %v637 = vld [vmem:[%s2 + $0x358] sm:$0xff]
      %v638 = vld [vmem:[%s2 + $0x360] sm:$0xff]
      %v639 = vld [vmem:[%s2 + $0x368] sm:$0xff]
      %v640 = vld [vmem:[%s2 + $0x370] sm:$0xff]
      %v641 = vld [vmem:[%s2 + $0x378] sm:$0xff]
      %v642 = vld [vmem:[%s2 + $0x380] sm:$0xff]
      %v643 = vld [vmem:[%s2 + $0x388] sm:$0xff]
      %v644 = vld [vmem:[%s2 + $0x390] sm:$0xff]
      %v645 = vld [vmem:[%s2 + $0x398] sm:$0xff]
      %v646 = vld [vmem:[%s2 + $0x3a0] sm:$0xff]
      %v647 = vld [vmem:[%s2 + $0x3a8] sm:$0xff]
      %v648 = vld [vmem:[%s2 + $0x3b0] sm:$0xff]
      %v649 = vld [vmem:[%s2 + $0x3b8] sm:$0xff]
      %v650 = vld [vmem:[%s2 + $0x3c0] sm:$0xff]
      %v651 = vld [vmem:[%s2 + $0x3c8] sm:$0xff]
      %v652 = vld [vmem:[%s2 + $0x3d0] sm:$0xff]
      %v653 = vld [vmem:[%s2 + $0x3d8] sm:$0xff]
      %v654 = vld [vmem:[%s2 + $0x3e0] sm:$0xff]
      %v655 = vld [vmem:[%s2 + $0x3e8] sm:$0xff]
      %v656 = vld [vmem:[%s2 + $0x3f0] sm:$0xff]
      %v657 = vld [vmem:[%s2 + $0x3f8] sm:$0xff]
      %v658 = vld [vmem:[%s2 + $0x400] sm:$0xff]
      %v659 = vld [vmem:[%s2 + $0x408] sm:$0xff]
      %v660 = vld [vmem:[%s2 + $0x410] sm:$0xff]
      %v661 = vld [vmem:[%s2 + $0x418] sm:$0xff]
      %v662 = vld [vmem:[%s2 + $0x420] sm:$0xff]
      %v663 = vld [vmem:[%s2 + $0x428] sm:$0xff]
      %v664 = vld [vmem:[%s2 + $0x430] sm:$0xff]
      %v665 = vld [vmem:[%s2 + $0x438] sm:$0xff]
      %v666 = vld [vmem:[%s2 + $0x440] sm:$0xff]
      %v667 = vld [vmem:[%s2 + $0x448] sm:$0xff]
      %v668 = vld [vmem:[%s2 + $0x450] sm:$0xff]
      %v669 = vld [vmem:[%s2 + $0x458] sm:$0xff]
      %v670 = vld [vmem:[%s2 + $0x460] sm:$0xff]
      %v671 = vld [vmem:[%s2 + $0x468] sm:$0xff]
      %v672 = vld [vmem:[%s2 + $0x470] sm:$0xff]
      %v673 = vld [vmem:[%s2 + $0x478] sm:$0xff]
      %v674 = vld [vmem:[%s2 + $0x480] sm:$0xff]
      %v675 = vld [vmem:[%s2 + $0x488] sm:$0xff]
      %v676 = vld [vmem:[%s2 + $0x490] sm:$0xff]
      %v677 = vld [vmem:[%s2 + $0x498] sm:$0xff]
      %v678 = vld [vmem:[%s2 + $0x4a0] sm:$0xff]
      %v679 = vld [vmem:[%s2 + $0x4a8] sm:$0xff]
      %v680 = vld [vmem:[%s2 + $0x4b0] sm:$0xff]
      %v681 = vld [vmem:[%s2 + $0x4b8] sm:$0xff]
      %v682 = vld [vmem:[%s2 + $0x4c0] sm:$0xff]
      %v683 = vld [vmem:[%s2 + $0x4c8] sm:$0xff]
      %v684 = vld [vmem:[%s2 + $0x4d0] sm:$0xff]
      %v685 = vld [vmem:[%s2 + $0x4d8] sm:$0xff]
      %v686 = vld [vmem:[%s2 + $0x4e0] sm:$0xff]
      %v687 = vld [vmem:[%s2 + $0x4e8] sm:$0xff]
      %v688 = vld [vmem:[%s2 + $0x4f0] sm:$0xff]
      %v689 = vld [vmem:[%s2 + $0x4f8] sm:$0xff]
      %v690 = vld [vmem:[%s2 + $0x500] sm:$0xff]
      %v691 = vld [vmem:[%s2 + $0x508] sm:$0xff]
      %v692 = vld [vmem:[%s2 + $0x510] sm:$0xff]
      %v693 = vld [vmem:[%s2 + $0x518] sm:$0xff]
      %v694 = vld [vmem:[%s2 + $0x520] sm:$0xff]
      %v695 = vld [vmem:[%s2 + $0x528] sm:$0xff]
      %v696 = vld [vmem:[%s2 + $0x530] sm:$0xff]
      %v697 = vld [vmem:[%s2 + $0x538] sm:$0xff]
      %v698 = vld [vmem:[%s2 + $0x540] sm:$0xff]
      %v699 = vld [vmem:[%s2 + $0x548] sm:$0xff]
      %v700 = vld [vmem:[%s2 + $0x550] sm:$0xff]
      %v701 = vld [vmem:[%s2 + $0x558] sm:$0xff]
      %v702 = vld [vmem:[%s2 + $0x560] sm:$0xff]
      %v703 = vld [vmem:[%s2 + $0x568] sm:$0xff]
      %v704 = vld [vmem:[%s2 + $0x570] sm:$0xff]
      %v705 = vld [vmem:[%s2 + $0x578] sm:$0xff]
      %v706 = vld [vmem:[%s2 + $0x580] sm:$0xff]
      %v707 = vld [vmem:[%s2 + $0x588] sm:$0xff]
      %v708 = vld [vmem:[%s2 + $0x590] sm:$0xff]
      %v709 = vld [vmem:[%s2 + $0x598] sm:$0xff]
      %v710 = vld [vmem:[%s2 + $0x5a0] sm:$0xff]
      %v711 = vld [vmem:[%s2 + $0x5a8] sm:$0xff]
      %v712 = vld [vmem:[%s2 + $0x5b0] sm:$0xff]
      %v713 = vld [vmem:[%s2 + $0x5b8] sm:$0xff]
      %v714 = vld [vmem:[%s2 + $0x5c0] sm:$0xff]
      %v715 = vld [vmem:[%s2 + $0x5c8] sm:$0xff]
      %v716 = vld [vmem:[%s2 + $0x5d0] sm:$0xff]
      %v717 = vld [vmem:[%s2 + $0x5d8] sm:$0xff]
      %v718 = vld [vmem:[%s2 + $0x5e0] sm:$0xff]
      %v719 = vld [vmem:[%s2 + $0x5e8] sm:$0xff]
      %v720 = vld [vmem:[%s2 + $0x5f0] sm:$0xff]
      %v721 = vld [vmem:[%s2 + $0x5f8] sm:$0xff]
      %v722 = vld [vmem:[%s2 + $0x600] sm:$0xff]
      %v723 = vld [vmem:[%s2 + $0x608] sm:$0xff]
      %v724 = vld [vmem:[%s2 + $0x610] sm:$0xff]
      %v725 = vld [vmem:[%s2 + $0x618] sm:$0xff]
      %v726 = vld [vmem:[%s2 + $0x620] sm:$0xff]
      %v727 = vld [vmem:[%s2 + $0x628] sm:$0xff]
      %v728 = vld [vmem:[%s2 + $0x630] sm:$0xff]
      %v729 = vld [vmem:[%s2 + $0x638] sm:$0xff]
      %v730 = vld [vmem:[%s2 + $0x640] sm:$0xff]
      %v731 = vld [vmem:[%s2 + $0x648] sm:$0xff]
      %v732 = vld [vmem:[%s2 + $0x650] sm:$0xff]
      %v733 = vld [vmem:[%s2 + $0x658] sm:$0xff]
      %v734 = vld [vmem:[%s2 + $0x660] sm:$0xff]
      %v735 = vld [vmem:[%s2 + $0x668] sm:$0xff]
      %v736 = vld [vmem:[%s2 + $0x670] sm:$0xff]
      %v737 = vld [vmem:[%s2 + $0x678] sm:$0xff]
      %v738 = vld [vmem:[%s2 + $0x680] sm:$0xff]
      %v739 = vld [vmem:[%s2 + $0x688] sm:$0xff]
      %v740 = vld [vmem:[%s2 + $0x690] sm:$0xff]
      %v741 = vld [vmem:[%s2 + $0x698] sm:$0xff]
      %v742 = vld [vmem:[%s2 + $0x6a0] sm:$0xff]
      %v743 = vld [vmem:[%s2 + $0x6a8] sm:$0xff]
      %v744 = vld [vmem:[%s2 + $0x6b0] sm:$0xff]
      %v745 = vld [vmem:[%s2 + $0x6b8] sm:$0xff]
      %v746 = vld [vmem:[%s2 + $0x6c0] sm:$0xff]
      %v747 = vld [vmem:[%s2 + $0x6c8] sm:$0xff]
      %v748 = vld [vmem:[%s2 + $0x6d0] sm:$0xff]
      %v749 = vld [vmem:[%s2 + $0x6d8] sm:$0xff]
      %v750 = vld [vmem:[%s2 + $0x6e0] sm:$0xff]
      %v751 = vld [vmem:[%s2 + $0x6e8] sm:$0xff]
      %v752 = vld [vmem:[%s2 + $0x6f0] sm:$0xff]
      %v753 = vld [vmem:[%s2 + $0x6f8] sm:$0xff]
      %v754 = vld [vmem:[%s2 + $0x700] sm:$0xff]
      %v755 = vld [vmem:[%s2 + $0x708] sm:$0xff]
      %v756 = vld [vmem:[%s2 + $0x710] sm:$0xff]
      %v757 = vld [vmem:[%s2 + $0x718] sm:$0xff]
      %v758 = vld [vmem:[%s2 + $0x720] sm:$0xff]
      %v759 = vld [vmem:[%s2 + $0x728] sm:$0xff]
      %v760 = vld [vmem:[%s2 + $0x730] sm:$0xff]
      %v761 = vld [vmem:[%s2 + $0x738] sm:$0xff]
      %v762 = vld [vmem:[%s2 + $0x740] sm:$0xff]
      %v763 = vld [vmem:[%s2 + $0x748] sm:$0xff]
      %v764 = vld [vmem:[%s2 + $0x750] sm:$0xff]
      %v765 = vld [vmem:[%s2 + $0x758] sm:$0xff]
      %v766 = vld [vmem:[%s2 + $0x760] sm:$0xff]
      %v767 = vld [vmem:[%s2 + $0x768] sm:$0xff]
      %v768 = vld [vmem:[%s2 + $0x770] sm:$0xff]
      %v769 = vld [vmem:[%s2 + $0x778] sm:$0xff]
      %v770 = vld [vmem:[%s2 + $0x780] sm:$0xff]
      %v771 = vld [vmem:[%s2 + $0x788] sm:$0xff]
      %v772 = vld [vmem:[%s2 + $0x790] sm:$0xff]
      %v773 = vld [vmem:[%s2 + $0x798] sm:$0xff]
      %v774 = vld [vmem:[%s2 + $0x7a0] sm:$0xff]
      %v775 = vld [vmem:[%s2 + $0x7a8] sm:$0xff]
      %v776 = vld [vmem:[%s2 + $0x7b0] sm:$0xff]
      %v777 = vld [vmem:[%s2 + $0x7b8] sm:$0xff]
      %v778 = vld [vmem:[%s2 + $0x7c0] sm:$0xff]
      %v779 = vld [vmem:[%s2 + $0x7c8] sm:$0xff]
      %v780 = vld [vmem:[%s2 + $0x7d0] sm:$0xff]
      %v781 = vld [vmem:[%s2 + $0x7d8] sm:$0xff]
      %v782 = vld [vmem:[%s2 + $0x7e0] sm:$0xff]
      %v783 = vld [vmem:[%s2 + $0x7e8] sm:$0xff]
      %v784 = vld [vmem:[%s2 + $0x7f0] sm:$0xff]
      %v785 = vld [vmem:[%s2 + $0x7f8] sm:$0xff]
      %v786 = vld [vmem:[%s2 + $0x800] sm:$0xff]
      %v787 = vld [vmem:[%s2 + $0x808] sm:$0xff]
      %v788 = vld [vmem:[%s2 + $0x810] sm:$0xff]
      %v789 = vld [vmem:[%s2 + $0x818] sm:$0xff]
      %v790 = vld [vmem:[%s2 + $0x820] sm:$0xff]
      %v791 = vld [vmem:[%s2 + $0x828] sm:$0xff]
      %v792 = vld [vmem:[%s2 + $0x830] sm:$0xff]
      %v793 = vld [vmem:[%s2 + $0x838] sm:$0xff]
      %v794 = vld [vmem:[%s2 + $0x840] sm:$0xff]
      %v795 = vld [vmem:[%s2 + $0x848] sm:$0xff]
      %v796 = vld [vmem:[%s2 + $0x850] sm:$0xff]
      %v797 = vld [vmem:[%s2 + $0x858] sm:$0xff]
      %v798 = vld [vmem:[%s2 + $0x860] sm:$0xff]
      %v799 = vld [vmem:[%s2 + $0x868] sm:$0xff]
      %v800 = vld [vmem:[%s2 + $0x870] sm:$0xff]
      %v801 = vld [vmem:[%s2 + $0x878] sm:$0xff]
      %v802 = vld [vmem:[%s2 + $0x880] sm:$0xff]
      %v803 = vld [vmem:[%s2 + $0x888] sm:$0xff]
      %v804 = vld [vmem:[%s2 + $0x890] sm:$0xff]
      %v805 = vld [vmem:[%s2 + $0x898] sm:$0xff]
      %v806 = vld [vmem:[%s2 + $0x8a0] sm:$0xff]
      %v807 = vld [vmem:[%s2 + $0x8a8] sm:$0xff]
      %v808 = vld [vmem:[%s2 + $0x8b0] sm:$0xff]
      %v809 = vld [vmem:[%s2 + $0x8b8] sm:$0xff]
      %v810 = vld [vmem:[%s2 + $0x8c0] sm:$0xff]
      %v811 = vld [vmem:[%s2 + $0x8c8] sm:$0xff]
      %v812 = vld [vmem:[%s2 + $0x8d0] sm:$0xff]
      %v813 = vld [vmem:[%s2 + $0x8d8] sm:$0xff]
      %v814 = vld [vmem:[%s2 + $0x8e0] sm:$0xff]
      %v815 = vld [vmem:[%s2 + $0x8e8] sm:$0xff]
      %v816 = vld [vmem:[%s2 + $0x8f0] sm:$0xff]
      %v817 = vld [vmem:[%s2 + $0x8f8] sm:$0xff]
      %v818 = vld [vmem:[%s2 + $0x900] sm:$0xff]
      %v819 = vld [vmem:[%s2 + $0x908] sm:$0xff]
      %v820 = vld [vmem:[%s2 + $0x910] sm:$0xff]
      %v821 = vld [vmem:[%s2 + $0x918] sm:$0xff]
      %v822 = vld [vmem:[%s2 + $0x920] sm:$0xff]
      %v823 = vld [vmem:[%s2 + $0x928] sm:$0xff]
      %v824 = vld [vmem:[%s2 + $0x930] sm:$0xff]
      %v825 = vld [vmem:[%s2 + $0x938] sm:$0xff]
      %v826 = vld [vmem:[%s2 + $0x940] sm:$0xff]
      %v827 = vld [vmem:[%s2 + $0x948] sm:$0xff]
      %v828 = vld [vmem:[%s2 + $0x950] sm:$0xff]
      %v829 = vld [vmem:[%s2 + $0x958] sm:$0xff]
      %v830 = vld [vmem:[%s2 + $0x960] sm:$0xff]
      %v831 = vld [vmem:[%s2 + $0x968] sm:$0xff]
      %v832 = vld [vmem:[%s2 + $0x970] sm:$0xff]
      %v833 = vld [vmem:[%s2 + $0x978] sm:$0xff]
      %v834 = vld [vmem:[%s2 + $0x980] sm:$0xff]
      %v835 = vld [vmem:[%s2 + $0x988] sm:$0xff]
      %v836 = vld [vmem:[%s2 + $0x990] sm:$0xff]
      %v837 = vld [vmem:[%s2 + $0x998] sm:$0xff]
      %v838 = vld [vmem:[%s2 + $0x9a0] sm:$0xff]
      %v839 = vld [vmem:[%s2 + $0x9a8] sm:$0xff]
      %v840 = vld [vmem:[%s2 + $0x9b0] sm:$0xff]
      %v841 = vld [vmem:[%s2 + $0x9b8] sm:$0xff]
      %v842 = vld [vmem:[%s2 + $0x9c0] sm:$0xff]
      %v843 = vld [vmem:[%s2 + $0x9c8] sm:$0xff]
      %v844 = vld [vmem:[%s2 + $0x9d0] sm:$0xff]
      %v845 = vld [vmem:[%s2 + $0x9d8] sm:$0xff]
      %v846 = vld [vmem:[%s2 + $0x9e0] sm:$0xff]
      %v847 = vld [vmem:[%s2 + $0x9e8] sm:$0xff]
      %v848 = vld [vmem:[%s2 + $0x9f0] sm:$0xff]
      %v849 = vld [vmem:[%s2 + $0x9f8] sm:$0xff]
      %v850 = vld [vmem:[%s2 + $0xa00] sm:$0xff]
      %v851 = vld [vmem:[%s2 + $0xa08] sm:$0xff]
      %v852 = vld [vmem:[%s2 + $0xa10] sm:$0xff]
      %v853 = vld [vmem:[%s2 + $0xa18] sm:$0xff]
      %v854 = vld [vmem:[%s2 + $0xa20] sm:$0xff]
      %v855 = vld [vmem:[%s2 + $0xa28] sm:$0xff]
      %v856 = vld [vmem:[%s2 + $0xa30] sm:$0xff]
      %v857 = vld [vmem:[%s2 + $0xa38] sm:$0xff]
      %v858 = vld [vmem:[%s2 + $0xa40] sm:$0xff]
      %v859 = vld [vmem:[%s2 + $0xa48] sm:$0xff]
      %v860 = vld [vmem:[%s2 + $0xa50] sm:$0xff]
      %v861 = vld [vmem:[%s2 + $0xa58] sm:$0xff]
      %v862 = vld [vmem:[%s2 + $0xa60] sm:$0xff]
      %v863 = vld [vmem:[%s2 + $0xa68] sm:$0xff]
      %v864 = vld [vmem:[%s2 + $0xa70] sm:$0xff]
      %v865 = vld [vmem:[%s2 + $0xa78] sm:$0xff]
      %v866 = vld [vmem:[%s2 + $0xa80] sm:$0xff]
      %v867 = vld [vmem:[%s2 + $0xa88] sm:$0xff]
      %v868 = vld [vmem:[%s2 + $0xa90] sm:$0xff]
      %v869 = vld [vmem:[%s2 + $0xa98] sm:$0xff]
      %v870 = vld [vmem:[%s2 + $0xaa0] sm:$0xff]
      %v871 = vld [vmem:[%s2 + $0xaa8] sm:$0xff]
      %v872 = vld [vmem:[%s2 + $0xab0] sm:$0xff]
      %v873 = vld [vmem:[%s2 + $0xab8] sm:$0xff]
      %v874 = vld [vmem:[%s2 + $0xac0] sm:$0xff]
      %v875 = vld [vmem:[%s2 + $0xac8] sm:$0xff]
      %v876 = vld [vmem:[%s2 + $0xad0] sm:$0xff]
      %v877 = vld [vmem:[%s2 + $0xad8] sm:$0xff]
      %v878 = vld [vmem:[%s2 + $0xae0] sm:$0xff]
      %v879 = vld [vmem:[%s2 + $0xae8] sm:$0xff]
      %v880 = vld [vmem:[%s2 + $0xaf0] sm:$0xff]
      %v881 = vld [vmem:[%s2 + $0xaf8] sm:$0xff]
      %v882 = vld [vmem:[%s2 + $0xb00] sm:$0xff]
      %v883 = vld [vmem:[%s2 + $0xb08] sm:$0xff]
      %v884 = vld [vmem:[%s2 + $0xb10] sm:$0xff]
      %v885 = vld [vmem:[%s2 + $0xb18] sm:$0xff]
      %v886 = vld [vmem:[%s2 + $0xb20] sm:$0xff]
      %v887 = vld [vmem:[%s2 + $0xb28] sm:$0xff]
      %v888 = vld [vmem:[%s2 + $0xb30] sm:$0xff]
      %v889 = vld [vmem:[%s2 + $0xb38] sm:$0xff]
      %v890 = vld [vmem:[%s2 + $0xb40] sm:$0xff]
      %v891 = vld [vmem:[%s2 + $0xb48] sm:$0xff]
      %v892 = vld [vmem:[%s2 + $0xb50] sm:$0xff]
      %v893 = vld [vmem:[%s2 + $0xb58] sm:$0xff]
      %v894 = vld [vmem:[%s2 + $0xb60] sm:$0xff]
      %v895 = vld [vmem:[%s2 + $0xb68] sm:$0xff]
      %v896 = vld [vmem:[%s2 + $0xb70] sm:$0xff]
      %v897 = vld [vmem:[%s2 + $0xb78] sm:$0xff]
      %v898 = vld [vmem:[%s2 + $0xb80] sm:$0xff]
      %v899 = vld [vmem:[%s2 + $0xb88] sm:$0xff]
      %v900 = vld [vmem:[%s2 + $0xb90] sm:$0xff]
      %v901 = vld [vmem:[%s2 + $0xb98] sm:$0xff]
      %v902 = vld [vmem:[%s2 + $0xba0] sm:$0xff]
      %v903 = vld [vmem:[%s2 + $0xba8] sm:$0xff]
      %v904 = vld [vmem:[%s2 + $0xbb0] sm:$0xff]
      %v905 = vld [vmem:[%s2 + $0xbb8] sm:$0xff]
      %v906 = vld [vmem:[%s2 + $0xbc0] sm:$0xff]
      %v907 = vld [vmem:[%s2 + $0xbc8] sm:$0xff]
      %v908 = vld [vmem:[%s2 + $0xbd0] sm:$0xff]
      %v909 = vld [vmem:[%s2 + $0xbd8] sm:$0xff]
      %v910 = vld [vmem:[%s2 + $0xbe0] sm:$0xff]
      %v911 = vld [vmem:[%s2 + $0xbe8] sm:$0xff]
      %v912 = vld [vmem:[%s2 + $0xbf0] sm:$0xff]
      %v913 = vld [vmem:[%s2 + $0xbf8] sm:$0xff]
      %v914 = vld [vmem:[%s2 + $0xc00] sm:$0xff]
      %v915 = vld [vmem:[%s2 + $0xc08] sm:$0xff]
      %v916 = vld [vmem:[%s2 + $0xc10] sm:$0xff]
      %v917 = vld [vmem:[%s2 + $0xc18] sm:$0xff]
      %v918 = vld [vmem:[%s2 + $0xc20] sm:$0xff]
      %v919 = vld [vmem:[%s2 + $0xc28] sm:$0xff]
      %v920 = vld [vmem:[%s2 + $0xc30] sm:$0xff]
      %v921 = vld [vmem:[%s2 + $0xc38] sm:$0xff]
      %v922 = vld [vmem:[%s2 + $0xc40] sm:$0xff]
      %v923 = vld [vmem:[%s2 + $0xc48] sm:$0xff]
      %v924 = vld [vmem:[%s2 + $0xc50] sm:$0xff]
      %v925 = vld [vmem:[%s2 + $0xc58] sm:$0xff]
      %v926 = vld [vmem:[%s2 + $0xc60] sm:$0xff]
      %v927 = vld [vmem:[%s2 + $0xc68] sm:$0xff]
      %v928 = vld [vmem:[%s2 + $0xc70] sm:$0xff]
      %v929 = vld [vmem:[%s2 + $0xc78] sm:$0xff]
      %v930 = vld [vmem:[%s2 + $0xc80] sm:$0xff]
      %v931 = vld [vmem:[%s2 + $0xc88] sm:$0xff]
      %v932 = vld [vmem:[%s2 + $0xc90] sm:$0xff]
      %v933 = vld [vmem:[%s2 + $0xc98] sm:$0xff]
      %v934 = vld [vmem:[%s2 + $0xca0] sm:$0xff]
      %v935 = vld [vmem:[%s2 + $0xca8] sm:$0xff]
      %v936 = vld [vmem:[%s2 + $0xcb0] sm:$0xff]
      %v937 = vld [vmem:[%s2 + $0xcb8] sm:$0xff]
      %v938 = vld [vmem:[%s2 + $0xcc0] sm:$0xff]
      %v939 = vld [vmem:[%s2 + $0xcc8] sm:$0xff]
      %v940 = vld [vmem:[%s2 + $0xcd0] sm:$0xff]
      %v941 = vld [vmem:[%s2 + $0xcd8] sm:$0xff]
      %v942 = vld [vmem:[%s2 + $0xce0] sm:$0xff]
      %v943 = vld [vmem:[%s2 + $0xce8] sm:$0xff]
      %v944 = vld [vmem:[%s2 + $0xcf0] sm:$0xff]
      %v945 = vld [vmem:[%s2 + $0xcf8] sm:$0xff]
      %v946 = vld [vmem:[%s2 + $0xd00] sm:$0xff]
      %v947 = vld [vmem:[%s2 + $0xd08] sm:$0xff]
      %v948 = vld [vmem:[%s2 + $0xd10] sm:$0xff]
      %v949 = vld [vmem:[%s2 + $0xd18] sm:$0xff]
      %v950 = vld [vmem:[%s2 + $0xd20] sm:$0xff]
      %v951 = vld [vmem:[%s2 + $0xd28] sm:$0xff]
      %v952 = vld [vmem:[%s2 + $0xd30] sm:$0xff]
      %v953 = vld [vmem:[%s2 + $0xd38] sm:$0xff]
      %v954 = vld [vmem:[%s2 + $0xd40] sm:$0xff]
      %v955 = vld [vmem:[%s2 + $0xd48] sm:$0xff]
      %v956 = vld [vmem:[%s2 + $0xd50] sm:$0xff]
      %v957 = vld [vmem:[%s2 + $0xd58] sm:$0xff]
      %v958 = vld [vmem:[%s2 + $0xd60] sm:$0xff]
      %v959 = vld [vmem:[%s2 + $0xd68] sm:$0xff]
      %v960 = vld [vmem:[%s2 + $0xd70] sm:$0xff]
      %v961 = vld [vmem:[%s2 + $0xd78] sm:$0xff]
      %v962 = vld [vmem:[%s2 + $0xd80] sm:$0xff]
      %v963 = vld [vmem:[%s2 + $0xd88] sm:$0xff]
      %v964 = vld [vmem:[%s2 + $0xd90] sm:$0xff]
      %v965 = vld [vmem:[%s2 + $0xd98] sm:$0xff]
      %v966 = vld [vmem:[%s2 + $0xda0] sm:$0xff]
      %v967 = vld [vmem:[%s2 + $0xda8] sm:$0xff]
      %v968 = vld [vmem:[%s2 + $0xdb0] sm:$0xff]
      %v969 = vld [vmem:[%s2 + $0xdb8] sm:$0xff]
      %v970 = vld [vmem:[%s2 + $0xdc0] sm:$0xff]
      %v971 = vld [vmem:[%s2 + $0xdc8] sm:$0xff]
      %v972 = vld [vmem:[%s2 + $0xdd0] sm:$0xff]
      %v973 = vld [vmem:[%s2 + $0xdd8] sm:$0xff]
      %v974 = vld [vmem:[%s2 + $0xde0] sm:$0xff]
      %v975 = vld [vmem:[%s2 + $0xde8] sm:$0xff]
      %v976 = vld [vmem:[%s2 + $0xdf0] sm:$0xff]
      %v977 = vld [vmem:[%s2 + $0xdf8] sm:$0xff]
      %v978 = vld [vmem:[%s2 + $0xe00] sm:$0xff]
      %v979 = vld [vmem:[%s2 + $0xe08] sm:$0xff]
      %v980 = vld [vmem:[%s2 + $0xe10] sm:$0xff]
      %v981 = vld [vmem:[%s2 + $0xe18] sm:$0xff]
      %v982 = vld [vmem:[%s2 + $0xe20] sm:$0xff]
      %v983 = vld [vmem:[%s2 + $0xe28] sm:$0xff]
      %v984 = vld [vmem:[%s2 + $0xe30] sm:$0xff]
      %v985 = vld [vmem:[%s2 + $0xe38] sm:$0xff]
      %v986 = vld [vmem:[%s2 + $0xe40] sm:$0xff]
      %v987 = vld [vmem:[%s2 + $0xe48] sm:$0xff]
      %v988 = vld [vmem:[%s2 + $0xe50] sm:$0xff]
      %v989 = vld [vmem:[%s2 + $0xe58] sm:$0xff]
      %v990 = vld [vmem:[%s2 + $0xe60] sm:$0xff]
      %v991 = vld [vmem:[%s2 + $0xe68] sm:$0xff]
      %v992 = vld [vmem:[%s2 + $0xe70] sm:$0xff]
      %v993 = vld [vmem:[%s2 + $0xe78] sm:$0xff]
      %v994 = vld [vmem:[%s2 + $0xe80] sm:$0xff]
      %v995 = vld [vmem:[%s2 + $0xe88] sm:$0xff]
      %v996 = vld [vmem:[%s2 + $0xe90] sm:$0xff]
      %v997 = vld [vmem:[%s2 + $0xe98] sm:$0xff]
      %v998 = vld [vmem:[%s2 + $0xea0] sm:$0xff]
      %v999 = vld [vmem:[%s2 + $0xea8] sm:$0xff]
      %v1000 = vld [vmem:[%s2 + $0xeb0] sm:$0xff]
      %v1001 = vld [vmem:[%s2 + $0xeb8] sm:$0xff]
      %v1002 = vld [vmem:[%s2 + $0xec0] sm:$0xff]
      %v1003 = vld [vmem:[%s2 + $0xec8] sm:$0xff]
      %v1004 = vld [vmem:[%s2 + $0xed0] sm:$0xff]
      %v1005 = vld [vmem:[%s2 + $0xed8] sm:$0xff]
      %v1006 = vld [vmem:[%s2 + $0xee0] sm:$0xff]
      %v1007 = vld [vmem:[%s2 + $0xee8] sm:$0xff]
      %v1008 = vld [vmem:[%s2 + $0xef0] sm:$0xff]
      %v1009 = vld [vmem:[%s2 + $0xef8] sm:$0xff]
      %v1010 = vld [vmem:[%s2 + $0xf00] sm:$0xff]
      %v1011 = vld [vmem:[%s2 + $0xf08] sm:$0xff]
      %v1012 = vld [vmem:[%s2 + $0xf10] sm:$0xff]
      %v1013 = vld [vmem:[%s2 + $0xf18] sm:$0xff]
      %v1014 = vld [vmem:[%s2 + $0xf20] sm:$0xff]
      %v1015 = vld [vmem:[%s2 + $0xf28] sm:$0xff]
      %v1016 = vld [vmem:[%s2 + $0xf30] sm:$0xff]
      %v1017 = vld [vmem:[%s2 + $0xf38] sm:$0xff]
      %v1018 = vld [vmem:[%s2 + $0xf40] sm:$0xff]
      %v1019 = vld [vmem:[%s2 + $0xf48] sm:$0xff]
      %v1020 = vld [vmem:[%s2 + $0xf50] sm:$0xff]
      %v1021 = vld [vmem:[%s2 + $0xf58] sm:$0xff]
      %v1022 = vld [vmem:[%s2 + $0xf60] sm:$0xff]
      %v1023 = vld [vmem:[%s2 + $0xf68] sm:$0xff]
      %v1024 = vld [vmem:[%s2 + $0xf70] sm:$0xff]
      %v1025 = vld [vmem:[%s2 + $0xf78] sm:$0xff]
      %v1026 = vld [vmem:[%s2 + $0xf80] sm:$0xff]
      %v1027 = vld [vmem:[%s2 + $0xf88] sm:$0xff]
      %v1028 = vld [vmem:[%s2 + $0xf90] sm:$0xff]
      %v1029 = vld [vmem:[%s2 + $0xf98] sm:$0xff]
      %v1030 = vld [vmem:[%s2 + $0xfa0] sm:$0xff]
      %v1031 = vld [vmem:[%s2 + $0xfa8] sm:$0xff]
      %v1032 = vld [vmem:[%s2 + $0xfb0] sm:$0xff]
      %v1033 = vld [vmem:[%s2 + $0xfb8] sm:$0xff]
      %v1034 = vld [vmem:[%s2 + $0xfc0] sm:$0xff]
      %v1035 = vld [vmem:[%s2 + $0xfc8] sm:$0xff]
      %v1036 = vld [vmem:[%s2 + $0xfd0] sm:$0xff]
      %v1037 = vld [vmem:[%s2 + $0xfd8] sm:$0xff]
      %v1038 = vld [vmem:[%s2 + $0xfe0] sm:$0xff]
      %v1039 = vld [vmem:[%s2 + $0xfe8] sm:$0xff]
      %v1040 = vld [vmem:[%s2 + $0xff0] sm:$0xff]
      %v1041 = vld [vmem:[%s2 + $0xff8] sm:$0xff]
      %v1042 = vld [vmem:[%s2 + $0x1000] sm:$0xff]
      %v1043 = vld [vmem:[%s2 + $0x1008] sm:$0xff]
      %v1044 = vld [vmem:[%s2 + $0x1010] sm:$0xff]
      %v1045 = vld [vmem:[%s2 + $0x1018] sm:$0xff]
      %v1046 = vld [vmem:[%s2 + $0x1020] sm:$0xff]
      %v1047 = vld [vmem:[%s2 + $0x1028] sm:$0xff]
      %v1048 = vld [vmem:[%s2 + $0x1030] sm:$0xff]
      %v1049 = vld [vmem:[%s2 + $0x1038] sm:$0xff]
      %v1050 = vld [vmem:[%s2 + $0x1040] sm:$0xff]
      %v1051 = vld [vmem:[%s2 + $0x1048] sm:$0xff]
      %v1052 = vld [vmem:[%s2 + $0x1050] sm:$0xff]
      %v1053 = vld [vmem:[%s2 + $0x1058] sm:$0xff]
      %v1054 = vld [vmem:[%s2 + $0x1060] sm:$0xff]
      %v1055 = vld [vmem:[%s2 + $0x1068] sm:$0xff]
      %v1056 = vld [vmem:[%s2 + $0x1070] sm:$0xff]
      %v1057 = vld [vmem:[%s2 + $0x1078] sm:$0xff]
      %v1058 = vld [vmem:[%s2 + $0x1080] sm:$0xff]
      %v1059 = vld [vmem:[%s2 + $0x1088] sm:$0xff]
      %v1060 = vld [vmem:[%s2 + $0x1090] sm:$0xff]
      %v1061 = vld [vmem:[%s2 + $0x1098] sm:$0xff]
      %v1062 = vld [vmem:[%s2 + $0x10a0] sm:$0xff]
      %v1063 = vld [vmem:[%s2 + $0x10a8] sm:$0xff]
      %v1064 = vld [vmem:[%s2 + $0x10b0] sm:$0xff]
      %v1065 = vld [vmem:[%s2 + $0x10b8] sm:$0xff]
      %v1066 = vld [vmem:[%s2 + $0x10c0] sm:$0xff]
      %v1067 = vld [vmem:[%s2 + $0x10c8] sm:$0xff]
      %v1068 = vld [vmem:[%s2 + $0x10d0] sm:$0xff]
      %v1069 = vld [vmem:[%s2 + $0x10d8] sm:$0xff]
      %v1070 = vld [vmem:[%s2 + $0x10e0] sm:$0xff]
      %v1071 = vld [vmem:[%s2 + $0x10e8] sm:$0xff]
      %v1072 = vld [vmem:[%s2 + $0x10f0] sm:$0xff]
      %v1073 = vld [vmem:[%s2 + $0x10f8] sm:$0xff]
      %v1074 = vld [vmem:[%s2 + $0x1100] sm:$0xff]
      %v1075 = vld [vmem:[%s2 + $0x1108] sm:$0xff]
      %v1076 = vld [vmem:[%s2 + $0x1110] sm:$0xff]
      %v1077 = vld [vmem:[%s2 + $0x1118] sm:$0xff]
      %v1078 = vld [vmem:[%s2 + $0x1120] sm:$0xff]
      %v1079 = vld [vmem:[%s2 + $0x1128] sm:$0xff]
      %v1080 = vld [vmem:[%s2 + $0x1130] sm:$0xff]
      %v1081 = vld [vmem:[%s2 + $0x1138] sm:$0xff]
      %v1082 = vld [vmem:[%s2 + $0x1140] sm:$0xff]
      %v1083 = vld [vmem:[%s2 + $0x1148] sm:$0xff]
      %v1084 = vld [vmem:[%s2 + $0x1150] sm:$0xff]
      %v1085 = vld [vmem:[%s2 + $0x1158] sm:$0xff]
      %v1086 = vld [vmem:[%s2 + $0x1160] sm:$0xff]
      %v1087 = vld [vmem:[%s2 + $0x1168] sm:$0xff]
      %v1088 = vld [vmem:[%s2 + $0x1170] sm:$0xff]
      %v1089 = vld [vmem:[%s2 + $0x1178] sm:$0xff]
      %v1090 = vld [vmem:[%s2 + $0x1180] sm:$0xff]
      %v1091 = vld [vmem:[%s2 + $0x1188] sm:$0xff]
      %v1092 = vld [vmem:[%s2 + $0x1190] sm:$0xff]
      %v1093 = vld [vmem:[%s2 + $0x1198] sm:$0xff]
      %v1094 = vld [vmem:[%s2 + $0x11a0] sm:$0xff]
      %v1095 = vld [vmem:[%s2 + $0x11a8] sm:$0xff]
      %v1096 = vld [vmem:[%s2 + $0x11b0] sm:$0xff]
      %v1097 = vld [vmem:[%s2 + $0x11b8] sm:$0xff]
      %v1098 = vld [vmem:[%s2 + $0x11c0] sm:$0xff]
      %v1099 = vld [vmem:[%s2 + $0x11c8] sm:$0xff]
      %v1100 = vld [vmem:[%s2 + $0x11d0] sm:$0xff]
      %v1101 = vld [vmem:[%s2 + $0x11d8] sm:$0xff]
      %v1102 = vld [vmem:[%s2 + $0x11e0] sm:$0xff]
      %v1103 = vld [vmem:[%s2 + $0x11e8] sm:$0xff]
      %v1104 = vld [vmem:[%s2 + $0x11f0] sm:$0xff]
      %v1105 = vld [vmem:[%s2 + $0x11f8] sm:$0xff]
      %v1106 = vld [vmem:[%s2 + $0x1200] sm:$0xff]
      %v1107 = vld [vmem:[%s2 + $0x1208] sm:$0xff]
      %v1108 = vld [vmem:[%s2 + $0x1210] sm:$0xff]
      %v1109 = vld [vmem:[%s2 + $0x1218] sm:$0xff]
      %v1110 = vld [vmem:[%s2 + $0x1220] sm:$0xff]
      %v1111 = vld [vmem:[%s2 + $0x1228] sm:$0xff]
      %v1112 = vld [vmem:[%s2 + $0x1230] sm:$0xff]
      %v1113 = vld [vmem:[%s2 + $0x1238] sm:$0xff]
      %v1114 = vld [vmem:[%s2 + $0x1240] sm:$0xff]
      %v1115 = vld [vmem:[%s2 + $0x1248] sm:$0xff]
      %v1116 = vld [vmem:[%s2 + $0x1250] sm:$0xff]
      %v1117 = vld [vmem:[%s2 + $0x1258] sm:$0xff]
      %v1118 = vld [vmem:[%s2 + $0x1260] sm:$0xff]
      %v1119 = vld [vmem:[%s2 + $0x1268] sm:$0xff]
      %v1120 = vld [vmem:[%s2 + $0x1270] sm:$0xff]
      %v1121 = vld [vmem:[%s2 + $0x1278] sm:$0xff]
      %v1122 = vld [vmem:[%s2 + $0x1280] sm:$0xff]
      %v1123 = vld [vmem:[%s2 + $0x1288] sm:$0xff]
      %v1124 = vld [vmem:[%s2 + $0x1290] sm:$0xff]
      %v1125 = vld [vmem:[%s2 + $0x1298] sm:$0xff]
      %v1126 = vld [vmem:[%s2 + $0x12a0] sm:$0xff]
      %v1127 = vld [vmem:[%s2 + $0x12a8] sm:$0xff]
      %v1128 = vld [vmem:[%s2 + $0x12b0] sm:$0xff]
      %v1129 = vld [vmem:[%s2 + $0x12b8] sm:$0xff]
      %v1130 = vld [vmem:[%s2 + $0x12c0] sm:$0xff]
      %v1131 = vld [vmem:[%s2 + $0x12c8] sm:$0xff]
      %v1132 = vld [vmem:[%s2 + $0x12d0] sm:$0xff]
      %v1133 = vld [vmem:[%s2 + $0x12d8] sm:$0xff]
      %v1134 = vld [vmem:[%s2 + $0x12e0] sm:$0xff]
      %v1135 = vld [vmem:[%s2 + $0x12e8] sm:$0xff]
      %v1136 = vld [vmem:[%s2 + $0x12f0] sm:$0xff]
      %v1137 = vld [vmem:[%s2 + $0x12f8] sm:$0xff]
      %v1138 = vld [vmem:[%s2 + $0x1300] sm:$0xff]
      %v1139 = vld [vmem:[%s2 + $0x1308] sm:$0xff]
      %v1140 = vld [vmem:[%s2 + $0x1310] sm:$0xff]
      %v1141 = vld [vmem:[%s2 + $0x1318] sm:$0xff]
      %v1142 = vld [vmem:[%s2 + $0x1320] sm:$0xff]
      %v1143 = vld [vmem:[%s2 + $0x1328] sm:$0xff]
      %v1144 = vld [vmem:[%s2 + $0x1330] sm:$0xff]
      %v1145 = vld [vmem:[%s2 + $0x1338] sm:$0xff]
      %v1146 = vld [vmem:[%s2 + $0x1340] sm:$0xff]
      %v1147 = vld [vmem:[%s2 + $0x1348] sm:$0xff]
      %v1148 = vld [vmem:[%s2 + $0x1350] sm:$0xff]
      %v1149 = vld [vmem:[%s2 + $0x1358] sm:$0xff]
      %v1150 = vld [vmem:[%s2 + $0x1360] sm:$0xff]
      %v1151 = vld [vmem:[%s2 + $0x1368] sm:$0xff]
      %v1152 = vld [vmem:[%s2 + $0x1370] sm:$0xff]
      %v1153 = vld [vmem:[%s2 + $0x1378] sm:$0xff]
      %v1154 = vld [vmem:[%s2 + $0x1380] sm:$0xff]
      %v1155 = vld [vmem:[%s2 + $0x1388] sm:$0xff]
      %v1156 = vld [vmem:[%s2 + $0x1390] sm:$0xff]
      %v1157 = vld [vmem:[%s2 + $0x1398] sm:$0xff]
      %v1158 = vld [vmem:[%s2 + $0x13a0] sm:$0xff]
      %v1159 = vld [vmem:[%s2 + $0x13a8] sm:$0xff]
      %v1160 = vld [vmem:[%s2 + $0x13b0] sm:$0xff]
      %v1161 = vld [vmem:[%s2 + $0x13b8] sm:$0xff]
      %v1162 = vld [vmem:[%s2 + $0x13c0] sm:$0xff]
      %v1163 = vld [vmem:[%s2 + $0x13c8] sm:$0xff]
      %v1164 = vld [vmem:[%s2 + $0x13d0] sm:$0xff]
      %v1165 = vld [vmem:[%s2 + $0x13d8] sm:$0xff]
      %v1166 = vld [vmem:[%s2 + $0x13e0] sm:$0xff]
      %v1167 = vld [vmem:[%s2 + $0x13e8] sm:$0xff]
      %v1168 = vld [vmem:[%s2 + $0x13f0] sm:$0xff]
      %v1169 = vld [vmem:[%s2 + $0x13f8] sm:$0xff]
      %v1170 = vld [vmem:[%s2 + $0x1400] sm:$0xff]
      %v1171 = vld [vmem:[%s2 + $0x1408] sm:$0xff]
      %v1172 = vld [vmem:[%s2 + $0x1410] sm:$0xff]
      %v1173 = vld [vmem:[%s2 + $0x1418] sm:$0xff]
      %v1174 = vld [vmem:[%s2 + $0x1420] sm:$0xff]
      %v1175 = vld [vmem:[%s2 + $0x1428] sm:$0xff]
      %v1176 = vld [vmem:[%s2 + $0x1430] sm:$0xff]
      %v1177 = vld [vmem:[%s2 + $0x1438] sm:$0xff]
      %v1178 = vld [vmem:[%s2 + $0x1440] sm:$0xff]
      %v1179 = vld [vmem:[%s2 + $0x1448] sm:$0xff]
      %v1180 = vld [vmem:[%s2 + $0x1450] sm:$0xff]
      %v1181 = vld [vmem:[%s2 + $0x1458] sm:$0xff]
      %v1182 = vld [vmem:[%s2 + $0x1460] sm:$0xff]
      %v1183 = vld [vmem:[%s2 + $0x1468] sm:$0xff]
      %v1184 = vld [vmem:[%s2 + $0x1470] sm:$0xff]
      %v1185 = vld [vmem:[%s2 + $0x1478] sm:$0xff]
      %v1186 = vld [vmem:[%s2 + $0x1480] sm:$0xff]
      %v1187 = vld [vmem:[%s2 + $0x1488] sm:$0xff]
      %v1188 = vld [vmem:[%s2 + $0x1490] sm:$0xff]
      %v1189 = vld [vmem:[%s2 + $0x1498] sm:$0xff]
      %v1190 = vld [vmem:[%s2 + $0x14a0] sm:$0xff]
      %v1191 = vld [vmem:[%s2 + $0x14a8] sm:$0xff]
      %v1192 = vld [vmem:[%s2 + $0x14b0] sm:$0xff]
      %v1193 = vld [vmem:[%s2 + $0x14b8] sm:$0xff]
      %v1194 = vld [vmem:[%s2 + $0x14c0] sm:$0xff]
      %v1195 = vld [vmem:[%s2 + $0x14c8] sm:$0xff]
      %v1196 = vld [vmem:[%s2 + $0x14d0] sm:$0xff]
      %v1197 = vld [vmem:[%s2 + $0x14d8] sm:$0xff]
      %v1198 = vld [vmem:[%s2 + $0x14e0] sm:$0xff]
      %v1199 = vld [vmem:[%s2 + $0x14e8] sm:$0xff]
      %v1200 = vld [vmem:[%s2 + $0x14f0] sm:$0xff]
      %v1201 = vld [vmem:[%s2 + $0x14f8] sm:$0xff]
      %v1202 = vld [vmem:[%s2 + $0x1500] sm:$0xff]
      %v1203 = vld [vmem:[%s2 + $0x1508] sm:$0xff]
      %v1204 = vld [vmem:[%s2 + $0x1510] sm:$0xff]
      %v1205 = vld [vmem:[%s2 + $0x1518] sm:$0xff]
      %v1206 = vld [vmem:[%s2 + $0x1520] sm:$0xff]
      %v1207 = vld [vmem:[%s2 + $0x1528] sm:$0xff]
      %v1208 = vld [vmem:[%s2 + $0x1530] sm:$0xff]
      %v1209 = vld [vmem:[%s2 + $0x1538] sm:$0xff]
      %v1210 = vld [vmem:[%s2 + $0x1540] sm:$0xff]
      %v1211 = vld [vmem:[%s2 + $0x1548] sm:$0xff]
      %v1212 = vld [vmem:[%s2 + $0x1550] sm:$0xff]
      %v1213 = vld [vmem:[%s2 + $0x1558] sm:$0xff]
      %v1214 = vld [vmem:[%s2 + $0x1560] sm:$0xff]
      %v1215 = vld [vmem:[%s2 + $0x1568] sm:$0xff]
      %v1216 = vld [vmem:[%s2 + $0x1570] sm:$0xff]
      %v1217 = vld [vmem:[%s2 + $0x1578] sm:$0xff]
      %v1218 = vld [vmem:[%s2 + $0x1580] sm:$0xff]
      %v1219 = vld [vmem:[%s2 + $0x1588] sm:$0xff]
      %v1220 = vld [vmem:[%s2 + $0x1590] sm:$0xff]
      %v1221 = vld [vmem:[%s2 + $0x1598] sm:$0xff]
      %v1222 = vld [vmem:[%s2 + $0x15a0] sm:$0xff]
      %v1223 = vld [vmem:[%s2 + $0x15a8] sm:$0xff]
      %v1224 = vld [vmem:[%s2 + $0x15b0] sm:$0xff]
      %v1225 = vld [vmem:[%s2 + $0x15b8] sm:$0xff]
      %v1226 = vld [vmem:[%s2 + $0x15c0] sm:$0xff]
      %v1227 = vld [vmem:[%s2 + $0x15c8] sm:$0xff]
      %v1228 = vld [vmem:[%s2 + $0x15d0] sm:$0xff]
      %v1229 = vld [vmem:[%s2 + $0x15d8] sm:$0xff]
      %v1230 = vld [vmem:[%s2 + $0x15e0] sm:$0xff]
      %v1231 = vld [vmem:[%s2 + $0x15e8] sm:$0xff]
      %v1232 = vld [vmem:[%s2 + $0x15f0] sm:$0xff]
      %v1233 = vld [vmem:[%s2 + $0x15f8] sm:$0xff]
      %v1234 = vld [vmem:[%s2 + $0x1600] sm:$0xff]
      %v1235 = vld [vmem:[%s2 + $0x1608] sm:$0xff]
      %v1236 = vld [vmem:[%s2 + $0x1610] sm:$0xff]
      %v1237 = vld [vmem:[%s2 + $0x1618] sm:$0xff]
      %v1238 = vld [vmem:[%s2 + $0x1620] sm:$0xff]
      %v1239 = vld [vmem:[%s2 + $0x1628] sm:$0xff]
      %v1240 = vld [vmem:[%s2 + $0x1630] sm:$0xff]
      %v1241 = vld [vmem:[%s2 + $0x1638] sm:$0xff]
      %v1242 = vld [vmem:[%s2 + $0x1640] sm:$0xff]
      %v1243 = vld [vmem:[%s2 + $0x1648] sm:$0xff]
      %v1244 = vld [vmem:[%s2 + $0x1650] sm:$0xff]
      %v1245 = vld [vmem:[%s2 + $0x1658] sm:$0xff]
      %v1246 = vld [vmem:[%s2 + $0x1660] sm:$0xff]
      %v1247 = vld [vmem:[%s2 + $0x1668] sm:$0xff]
      %v1248 = vld [vmem:[%s2 + $0x1670] sm:$0xff]
      %v1249 = vld [vmem:[%s2 + $0x1678] sm:$0xff]
      %v1250 = vmul.f32 %v530, %v512
      %v1251 = vmul.f32 %v531, %v513
      %v1252 = vmul.f32 %v532, %v514
      %v1253 = vmul.f32 %v533, %v515
      %v1254 = vmul.f32 %v534, %v516
      %v1255 = vmul.f32 %v535, %v517
      %v1256 = vmul.f32 %v536, %v518
      %v1257 = vmul.f32 %v537, %v519
      %v1258 = vmul.f32 %v538, %v520
      %v1259 = vmul.f32 %v539, %v521
      %v1260 = vmul.f32 %v540, %v522
      %v1261 = vmul.f32 %v541, %v523
      %v1262 = vmul.f32 %v542, %v524
      %v1263 = vmul.f32 %v543, %v525
      %v1264 = vmul.f32 %v544, %v526
      %v1265 = vmul.f32 %v545, %v527
      %v1266 = vmul.f32 %v546, %v528
      %v1267 = vmul.f32 %v547, %v529
      %v1268 = vmul.f32 %v548, %v512
      %v1269 = vmul.f32 %v549, %v513
      %v1270 = vmul.f32 %v550, %v514
      %v1271 = vmul.f32 %v551, %v515
      %v1272 = vmul.f32 %v552, %v516
      %v1273 = vmul.f32 %v553, %v517
      %v1274 = vmul.f32 %v554, %v518
      %v1275 = vmul.f32 %v555, %v519
      %v1276 = vmul.f32 %v556, %v520
      %v1277 = vmul.f32 %v557, %v521
      %v1278 = vmul.f32 %v558, %v522
      %v1279 = vmul.f32 %v559, %v523
      %v1280 = vmul.f32 %v560, %v524
      %v1281 = vmul.f32 %v561, %v525
      %v1282 = vmul.f32 %v562, %v526
      %v1283 = vmul.f32 %v563, %v527
      %v1284 = vmul.f32 %v564, %v528
      %v1285 = vmul.f32 %v565, %v529
      %v1286 = vmul.f32 %v566, %v512
      %v1287 = vmul.f32 %v567, %v513
      %v1288 = vmul.f32 %v568, %v514
      %v1289 = vmul.f32 %v569, %v515
      %v1290 = vmul.f32 %v570, %v516
      %v1291 = vmul.f32 %v571, %v517
      %v1292 = vmul.f32 %v572, %v518
      %v1293 = vmul.f32 %v573, %v519
      %v1294 = vmul.f32 %v574, %v520
      %v1295 = vmul.f32 %v575, %v521
      %v1296 = vmul.f32 %v576, %v522
      %v1297 = vmul.f32 %v577, %v523
      %v1298 = vmul.f32 %v578, %v524
      %v1299 = vmul.f32 %v579, %v525
      %v1300 = vmul.f32 %v580, %v526
      %v1301 = vmul.f32 %v581, %v527
      %v1302 = vmul.f32 %v582, %v528
      %v1303 = vmul.f32 %v583, %v529
      %v1304 = vmul.f32 %v584, %v512
      %v1305 = vmul.f32 %v585, %v513
      %v1306 = vmul.f32 %v586, %v514
      %v1307 = vmul.f32 %v587, %v515
      %v1308 = vmul.f32 %v588, %v516
      %v1309 = vmul.f32 %v589, %v517
      %v1310 = vmul.f32 %v590, %v518
      %v1311 = vmul.f32 %v591, %v519
      %v1312 = vmul.f32 %v592, %v520
      %v1313 = vmul.f32 %v593, %v521
      %v1314 = vmul.f32 %v594, %v522
      %v1315 = vmul.f32 %v595, %v523
      %v1316 = vmul.f32 %v596, %v524
      %v1317 = vmul.f32 %v597, %v525
      %v1318 = vmul.f32 %v598, %v526
      %v1319 = vmul.f32 %v599, %v527
      %v1320 = vmul.f32 %v600, %v528
      %v1321 = vmul.f32 %v601, %v529
      %v1322 = vmul.f32 %v602, %v512
      %v1323 = vmul.f32 %v603, %v513
      %v1324 = vmul.f32 %v604, %v514
      %v1325 = vmul.f32 %v605, %v515
      %v1326 = vmul.f32 %v606, %v516
      %v1327 = vmul.f32 %v607, %v517
      %v1328 = vmul.f32 %v608, %v518
      %v1329 = vmul.f32 %v609, %v519
      %v1330 = vmul.f32 %v610, %v520
      %v1331 = vmul.f32 %v611, %v521
      %v1332 = vmul.f32 %v612, %v522
      %v1333 = vmul.f32 %v613, %v523
      %v1334 = vmul.f32 %v614, %v524
      %v1335 = vmul.f32 %v615, %v525
      %v1336 = vmul.f32 %v616, %v526
      %v1337 = vmul.f32 %v617, %v527
      %v1338 = vmul.f32 %v618, %v528
      %v1339 = vmul.f32 %v619, %v529
      %v1340 = vmul.f32 %v620, %v512
      %v1341 = vmul.f32 %v621, %v513
      %v1342 = vmul.f32 %v622, %v514
      %v1343 = vmul.f32 %v623, %v515
      %v1344 = vmul.f32 %v624, %v516
      %v1345 = vmul.f32 %v625, %v517
      %v1346 = vmul.f32 %v626, %v518
      %v1347 = vmul.f32 %v627, %v519
      %v1348 = vmul.f32 %v628, %v520
      %v1349 = vmul.f32 %v629, %v521
      %v1350 = vmul.f32 %v630, %v522
      %v1351 = vmul.f32 %v631, %v523
      %v1352 = vmul.f32 %v632, %v524
      %v1353 = vmul.f32 %v633, %v525
      %v1354 = vmul.f32 %v634, %v526
      %v1355 = vmul.f32 %v635, %v527
      %v1356 = vmul.f32 %v636, %v528
      %v1357 = vmul.f32 %v637, %v529
      %v1358 = vmul.f32 %v638, %v512
      %v1359 = vmul.f32 %v639, %v513
      %v1360 = vmul.f32 %v640, %v514
      %v1361 = vmul.f32 %v641, %v515
      %v1362 = vmul.f32 %v642, %v516
      %v1363 = vmul.f32 %v643, %v517
      %v1364 = vmul.f32 %v644, %v518
      %v1365 = vmul.f32 %v645, %v519
      %v1366 = vmul.f32 %v646, %v520
      %v1367 = vmul.f32 %v647, %v521
      %v1368 = vmul.f32 %v648, %v522
      %v1369 = vmul.f32 %v649, %v523
      %v1370 = vmul.f32 %v650, %v524
      %v1371 = vmul.f32 %v651, %v525
      %v1372 = vmul.f32 %v652, %v526
      %v1373 = vmul.f32 %v653, %v527
      %v1374 = vmul.f32 %v654, %v528
      %v1375 = vmul.f32 %v655, %v529
      %v1376 = vmul.f32 %v656, %v512
      %v1377 = vmul.f32 %v657, %v513
      %v1378 = vmul.f32 %v658, %v514
      %v1379 = vmul.f32 %v659, %v515
      %v1380 = vmul.f32 %v660, %v516
      %v1381 = vmul.f32 %v661, %v517
      %v1382 = vmul.f32 %v662, %v518
      %v1383 = vmul.f32 %v663, %v519
      %v1384 = vmul.f32 %v664, %v520
      %v1385 = vmul.f32 %v665, %v521
      %v1386 = vmul.f32 %v666, %v522
      %v1387 = vmul.f32 %v667, %v523
      %v1388 = vmul.f32 %v668, %v524
      %v1389 = vmul.f32 %v669, %v525
      %v1390 = vmul.f32 %v670, %v526
      %v1391 = vmul.f32 %v671, %v527
      %v1392 = vmul.f32 %v672, %v528
      %v1393 = vmul.f32 %v673, %v529
      %v1394 = vmul.f32 %v674, %v512
      %v1395 = vmul.f32 %v675, %v513
      %v1396 = vmul.f32 %v676, %v514
      %v1397 = vmul.f32 %v677, %v515
      %v1398 = vmul.f32 %v678, %v516
      %v1399 = vmul.f32 %v679, %v517
      %v1400 = vmul.f32 %v680, %v518
      %v1401 = vmul.f32 %v681, %v519
      %v1402 = vmul.f32 %v682, %v520
      %v1403 = vmul.f32 %v683, %v521
      %v1404 = vmul.f32 %v684, %v522
      %v1405 = vmul.f32 %v685, %v523
      %v1406 = vmul.f32 %v686, %v524
      %v1407 = vmul.f32 %v687, %v525
      %v1408 = vmul.f32 %v688, %v526
      %v1409 = vmul.f32 %v689, %v527
      %v1410 = vmul.f32 %v690, %v528
      %v1411 = vmul.f32 %v691, %v529
      %v1412 = vmul.f32 %v692, %v512
      %v1413 = vmul.f32 %v693, %v513
      %v1414 = vmul.f32 %v694, %v514
      %v1415 = vmul.f32 %v695, %v515
      %v1416 = vmul.f32 %v696, %v516
      %v1417 = vmul.f32 %v697, %v517
      %v1418 = vmul.f32 %v698, %v518
      %v1419 = vmul.f32 %v699, %v519
      %v1420 = vmul.f32 %v700, %v520
      %v1421 = vmul.f32 %v701, %v521
      %v1422 = vmul.f32 %v702, %v522
      %v1423 = vmul.f32 %v703, %v523
      %v1424 = vmul.f32 %v704, %v524
      %v1425 = vmul.f32 %v705, %v525
      %v1426 = vmul.f32 %v706, %v526
      %v1427 = vmul.f32 %v707, %v527
      %v1428 = vmul.f32 %v708, %v528
      %v1429 = vmul.f32 %v709, %v529
      %v1430 = vmul.f32 %v710, %v512
      %v1431 = vmul.f32 %v711, %v513
      %v1432 = vmul.f32 %v712, %v514
      %v1433 = vmul.f32 %v713, %v515
      %v1434 = vmul.f32 %v714, %v516
      %v1435 = vmul.f32 %v715, %v517
      %v1436 = vmul.f32 %v716, %v518
      %v1437 = vmul.f32 %v717, %v519
      %v1438 = vmul.f32 %v718, %v520
      %v1439 = vmul.f32 %v719, %v521
      %v1440 = vmul.f32 %v720, %v522
      %v1441 = vmul.f32 %v721, %v523
      %v1442 = vmul.f32 %v722, %v524
      %v1443 = vmul.f32 %v723, %v525
      %v1444 = vmul.f32 %v724, %v526
      %v1445 = vmul.f32 %v725, %v527
      %v1446 = vmul.f32 %v726, %v528
      %v1447 = vmul.f32 %v727, %v529
      %v1448 = vmul.f32 %v728, %v512
      %v1449 = vmul.f32 %v729, %v513
      %v1450 = vmul.f32 %v730, %v514
      %v1451 = vmul.f32 %v731, %v515
      %v1452 = vmul.f32 %v732, %v516
      %v1453 = vmul.f32 %v733, %v517
      %v1454 = vmul.f32 %v734, %v518
      %v1455 = vmul.f32 %v735, %v519
      %v1456 = vmul.f32 %v736, %v520
      %v1457 = vmul.f32 %v737, %v521
      %v1458 = vmul.f32 %v738, %v522
      %v1459 = vmul.f32 %v739, %v523
      %v1460 = vmul.f32 %v740, %v524
      %v1461 = vmul.f32 %v741, %v525
      %v1462 = vmul.f32 %v742, %v526
      %v1463 = vmul.f32 %v743, %v527
      %v1464 = vmul.f32 %v744, %v528
      %v1465 = vmul.f32 %v745, %v529
      %v1466 = vmul.f32 %v746, %v512
      %v1467 = vmul.f32 %v747, %v513
      %v1468 = vmul.f32 %v748, %v514
      %v1469 = vmul.f32 %v749, %v515
      %v1470 = vmul.f32 %v750, %v516
      %v1471 = vmul.f32 %v751, %v517
      %v1472 = vmul.f32 %v752, %v518
      %v1473 = vmul.f32 %v753, %v519
      %v1474 = vmul.f32 %v754, %v520
      %v1475 = vmul.f32 %v755, %v521
      %v1476 = vmul.f32 %v756, %v522
      %v1477 = vmul.f32 %v757, %v523
      %v1478 = vmul.f32 %v758, %v524
      %v1479 = vmul.f32 %v759, %v525
      %v1480 = vmul.f32 %v760, %v526
      %v1481 = vmul.f32 %v761, %v527
      %v1482 = vmul.f32 %v762, %v528
      %v1483 = vmul.f32 %v763, %v529
      %v1484 = vmul.f32 %v764, %v512
      %v1485 = vmul.f32 %v765, %v513
      %v1486 = vmul.f32 %v766, %v514
      %v1487 = vmul.f32 %v767, %v515
      %v1488 = vmul.f32 %v768, %v516
      %v1489 = vmul.f32 %v769, %v517
      %v1490 = vmul.f32 %v770, %v518
      %v1491 = vmul.f32 %v771, %v519
      %v1492 = vmul.f32 %v772, %v520
      %v1493 = vmul.f32 %v773, %v521
      %v1494 = vmul.f32 %v774, %v522
      %v1495 = vmul.f32 %v775, %v523
      %v1496 = vmul.f32 %v776, %v524
      %v1497 = vmul.f32 %v777, %v525
      %v1498 = vmul.f32 %v778, %v526
      %v1499 = vmul.f32 %v779, %v527
      %v1500 = vmul.f32 %v780, %v528
      %v1501 = vmul.f32 %v781, %v529
      %v1502 = vmul.f32 %v782, %v512
      %v1503 = vmul.f32 %v783, %v513
      %v1504 = vmul.f32 %v784, %v514
      %v1505 = vmul.f32 %v785, %v515
      %v1506 = vmul.f32 %v786, %v516
      %v1507 = vmul.f32 %v787, %v517
      %v1508 = vmul.f32 %v788, %v518
      %v1509 = vmul.f32 %v789, %v519
      %v1510 = vmul.f32 %v790, %v520
      %v1511 = vmul.f32 %v791, %v521
      %v1512 = vmul.f32 %v792, %v522
      %v1513 = vmul.f32 %v793, %v523
      %v1514 = vmul.f32 %v794, %v524
      %v1515 = vmul.f32 %v795, %v525
      %v1516 = vmul.f32 %v796, %v526
      %v1517 = vmul.f32 %v797, %v527
      %v1518 = vmul.f32 %v798, %v528
      %v1519 = vmul.f32 %v799, %v529
      %v1520 = vmul.f32 %v800, %v512
      %v1521 = vmul.f32 %v801, %v513
      %v1522 = vmul.f32 %v802, %v514
      %v1523 = vmul.f32 %v803, %v515
      %v1524 = vmul.f32 %v804, %v516
      %v1525 = vmul.f32 %v805, %v517
      %v1526 = vmul.f32 %v806, %v518
      %v1527 = vmul.f32 %v807, %v519
      %v1528 = vmul.f32 %v808, %v520
      %v1529 = vmul.f32 %v809, %v521
      %v1530 = vmul.f32 %v810, %v522
      %v1531 = vmul.f32 %v811, %v523
      %v1532 = vmul.f32 %v812, %v524
      %v1533 = vmul.f32 %v813, %v525
      %v1534 = vmul.f32 %v814, %v526
      %v1535 = vmul.f32 %v815, %v527
      %v1536 = vmul.f32 %v816, %v528
      %v1537 = vmul.f32 %v817, %v529
      %v1538 = vmul.f32 %v818, %v512
      %v1539 = vmul.f32 %v819, %v513
      %v1540 = vmul.f32 %v820, %v514
      %v1541 = vmul.f32 %v821, %v515
      %v1542 = vmul.f32 %v822, %v516
      %v1543 = vmul.f32 %v823, %v517
      %v1544 = vmul.f32 %v824, %v518
      %v1545 = vmul.f32 %v825, %v519
      %v1546 = vmul.f32 %v826, %v520
      %v1547 = vmul.f32 %v827, %v521
      %v1548 = vmul.f32 %v828, %v522
      %v1549 = vmul.f32 %v829, %v523
      %v1550 = vmul.f32 %v830, %v524
      %v1551 = vmul.f32 %v831, %v525
      %v1552 = vmul.f32 %v832, %v526
      %v1553 = vmul.f32 %v833, %v527
      %v1554 = vmul.f32 %v834, %v528
      %v1555 = vmul.f32 %v835, %v529
      %v1556 = vmul.f32 %v836, %v512
      %v1557 = vmul.f32 %v837, %v513
      %v1558 = vmul.f32 %v838, %v514
      %v1559 = vmul.f32 %v839, %v515
      %v1560 = vmul.f32 %v840, %v516
      %v1561 = vmul.f32 %v841, %v517
      %v1562 = vmul.f32 %v842, %v518
      %v1563 = vmul.f32 %v843, %v519
      %v1564 = vmul.f32 %v844, %v520
      %v1565 = vmul.f32 %v845, %v521
      %v1566 = vmul.f32 %v846, %v522
      %v1567 = vmul.f32 %v847, %v523
      %v1568 = vmul.f32 %v848, %v524
      %v1569 = vmul.f32 %v849, %v525
      %v1570 = vmul.f32 %v850, %v526
      %v1571 = vmul.f32 %v851, %v527
      %v1572 = vmul.f32 %v852, %v528
      %v1573 = vmul.f32 %v853, %v529
      %v1574 = vmul.f32 %v854, %v512
      %v1575 = vmul.f32 %v855, %v513
      %v1576 = vmul.f32 %v856, %v514
      %v1577 = vmul.f32 %v857, %v515
      %v1578 = vmul.f32 %v858, %v516
      %v1579 = vmul.f32 %v859, %v517
      %v1580 = vmul.f32 %v860, %v518
      %v1581 = vmul.f32 %v861, %v519
      %v1582 = vmul.f32 %v862, %v520
      %v1583 = vmul.f32 %v863, %v521
      %v1584 = vmul.f32 %v864, %v522
      %v1585 = vmul.f32 %v865, %v523
      %v1586 = vmul.f32 %v866, %v524
      %v1587 = vmul.f32 %v867, %v525
      %v1588 = vmul.f32 %v868, %v526
      %v1589 = vmul.f32 %v869, %v527
      %v1590 = vmul.f32 %v870, %v528
      %v1591 = vmul.f32 %v871, %v529
      %v1592 = vmul.f32 %v872, %v512
      %v1593 = vmul.f32 %v873, %v513
      %v1594 = vmul.f32 %v874, %v514
      %v1595 = vmul.f32 %v875, %v515
      %v1596 = vmul.f32 %v876, %v516
      %v1597 = vmul.f32 %v877, %v517
      %v1598 = vmul.f32 %v878, %v518
      %v1599 = vmul.f32 %v879, %v519
      %v1600 = vmul.f32 %v880, %v520
      %v1601 = vmul.f32 %v881, %v521
      %v1602 = vmul.f32 %v882, %v522
      %v1603 = vmul.f32 %v883, %v523
      %v1604 = vmul.f32 %v884, %v524
      %v1605 = vmul.f32 %v885, %v525
      %v1606 = vmul.f32 %v886, %v526
      %v1607 = vmul.f32 %v887, %v527
      %v1608 = vmul.f32 %v888, %v528
      %v1609 = vmul.f32 %v889, %v529
      %v1610 = vmul.f32 %v890, %v512
      %v1611 = vmul.f32 %v891, %v513
      %v1612 = vmul.f32 %v892, %v514
      %v1613 = vmul.f32 %v893, %v515
      %v1614 = vmul.f32 %v894, %v516
      %v1615 = vmul.f32 %v895, %v517
      %v1616 = vmul.f32 %v896, %v518
      %v1617 = vmul.f32 %v897, %v519
      %v1618 = vmul.f32 %v898, %v520
      %v1619 = vmul.f32 %v899, %v521
      %v1620 = vmul.f32 %v900, %v522
      %v1621 = vmul.f32 %v901, %v523
      %v1622 = vmul.f32 %v902, %v524
      %v1623 = vmul.f32 %v903, %v525
      %v1624 = vmul.f32 %v904, %v526
      %v1625 = vmul.f32 %v905, %v527
      %v1626 = vmul.f32 %v906, %v528
      %v1627 = vmul.f32 %v907, %v529
      %v1628 = vmul.f32 %v908, %v512
      %v1629 = vmul.f32 %v909, %v513
      %v1630 = vmul.f32 %v910, %v514
      %v1631 = vmul.f32 %v911, %v515
      %v1632 = vmul.f32 %v912, %v516
      %v1633 = vmul.f32 %v913, %v517
      %v1634 = vmul.f32 %v914, %v518
      %v1635 = vmul.f32 %v915, %v519
      %v1636 = vmul.f32 %v916, %v520
      %v1637 = vmul.f32 %v917, %v521
      %v1638 = vmul.f32 %v918, %v522
      %v1639 = vmul.f32 %v919, %v523
      %v1640 = vmul.f32 %v920, %v524
      %v1641 = vmul.f32 %v921, %v525
      %v1642 = vmul.f32 %v922, %v526
      %v1643 = vmul.f32 %v923, %v527
      %v1644 = vmul.f32 %v924, %v528
      %v1645 = vmul.f32 %v925, %v529
      %v1646 = vmul.f32 %v926, %v512
      %v1647 = vmul.f32 %v927, %v513
      %v1648 = vmul.f32 %v928, %v514
      %v1649 = vmul.f32 %v929, %v515
      %v1650 = vmul.f32 %v930, %v516
      %v1651 = vmul.f32 %v931, %v517
      %v1652 = vmul.f32 %v932, %v518
      %v1653 = vmul.f32 %v933, %v519
      %v1654 = vmul.f32 %v934, %v520
      %v1655 = vmul.f32 %v935, %v521
      %v1656 = vmul.f32 %v936, %v522
      %v1657 = vmul.f32 %v937, %v523
      %v1658 = vmul.f32 %v938, %v524
      %v1659 = vmul.f32 %v939, %v525
      %v1660 = vmul.f32 %v940, %v526
      %v1661 = vmul.f32 %v941, %v527
      %v1662 = vmul.f32 %v942, %v528
      %v1663 = vmul.f32 %v943, %v529
      %v1664 = vmul.f32 %v944, %v512
      %v1665 = vmul.f32 %v945, %v513
      %v1666 = vmul.f32 %v946, %v514
      %v1667 = vmul.f32 %v947, %v515
      %v1668 = vmul.f32 %v948, %v516
      %v1669 = vmul.f32 %v949, %v517
      %v1670 = vmul.f32 %v950, %v518
      %v1671 = vmul.f32 %v951, %v519
      %v1672 = vmul.f32 %v952, %v520
      %v1673 = vmul.f32 %v953, %v521
      %v1674 = vmul.f32 %v954, %v522
      %v1675 = vmul.f32 %v955, %v523
      %v1676 = vmul.f32 %v956, %v524
      %v1677 = vmul.f32 %v957, %v525
      %v1678 = vmul.f32 %v958, %v526
      %v1679 = vmul.f32 %v959, %v527
      %v1680 = vmul.f32 %v960, %v528
      %v1681 = vmul.f32 %v961, %v529
      %v1682 = vmul.f32 %v962, %v512
      %v1683 = vmul.f32 %v963, %v513
      %v1684 = vmul.f32 %v964, %v514
      %v1685 = vmul.f32 %v965, %v515
      %v1686 = vmul.f32 %v966, %v516
      %v1687 = vmul.f32 %v967, %v517
      %v1688 = vmul.f32 %v968, %v518
      %v1689 = vmul.f32 %v969, %v519
      %v1690 = vmul.f32 %v970, %v520
      %v1691 = vmul.f32 %v971, %v521
      %v1692 = vmul.f32 %v972, %v522
      %v1693 = vmul.f32 %v973, %v523
      %v1694 = vmul.f32 %v974, %v524
      %v1695 = vmul.f32 %v975, %v525
      %v1696 = vmul.f32 %v976, %v526
      %v1697 = vmul.f32 %v977, %v527
      %v1698 = vmul.f32 %v978, %v528
      %v1699 = vmul.f32 %v979, %v529
      %v1700 = vmul.f32 %v980, %v512
      %v1701 = vmul.f32 %v981, %v513
      %v1702 = vmul.f32 %v982, %v514
      %v1703 = vmul.f32 %v983, %v515
      %v1704 = vmul.f32 %v984, %v516
      %v1705 = vmul.f32 %v985, %v517
      %v1706 = vmul.f32 %v986, %v518
      %v1707 = vmul.f32 %v987, %v519
      %v1708 = vmul.f32 %v988, %v520
      %v1709 = vmul.f32 %v989, %v521
      %v1710 = vmul.f32 %v990, %v522
      %v1711 = vmul.f32 %v991, %v523
      %v1712 = vmul.f32 %v992, %v524
      %v1713 = vmul.f32 %v993, %v525
      %v1714 = vmul.f32 %v994, %v526
      %v1715 = vmul.f32 %v995, %v527
      %v1716 = vmul.f32 %v996, %v528
      %v1717 = vmul.f32 %v997, %v529
      %v1718 = vmul.f32 %v998, %v512
      %v1719 = vmul.f32 %v999, %v513
      %v1720 = vmul.f32 %v1000, %v514
      %v1721 = vmul.f32 %v1001, %v515
      %v1722 = vmul.f32 %v1002, %v516
      %v1723 = vmul.f32 %v1003, %v517
      %v1724 = vmul.f32 %v1004, %v518
      %v1725 = vmul.f32 %v1005, %v519
      %v1726 = vmul.f32 %v1006, %v520
      %v1727 = vmul.f32 %v1007, %v521
      %v1728 = vmul.f32 %v1008, %v522
      %v1729 = vmul.f32 %v1009, %v523
      %v1730 = vmul.f32 %v1010, %v524
      %v1731 = vmul.f32 %v1011, %v525
      %v1732 = vmul.f32 %v1012, %v526
      %v1733 = vmul.f32 %v1013, %v527
      %v1734 = vmul.f32 %v1014, %v528
      %v1735 = vmul.f32 %v1015, %v529
      %v1736 = vmul.f32 %v1016, %v512
      %v1737 = vmul.f32 %v1017, %v513
      %v1738 = vmul.f32 %v1018, %v514
      %v1739 = vmul.f32 %v1019, %v515
      %v1740 = vmul.f32 %v1020, %v516
      %v1741 = vmul.f32 %v1021, %v517
      %v1742 = vmul.f32 %v1022, %v518
      %v1743 = vmul.f32 %v1023, %v519
      %v1744 = vmul.f32 %v1024, %v520
      %v1745 = vmul.f32 %v1025, %v521
      %v1746 = vmul.f32 %v1026, %v522
      %v1747 = vmul.f32 %v1027, %v523
      %v1748 = vmul.f32 %v1028, %v524
      %v1749 = vmul.f32 %v1029, %v525
      %v1750 = vmul.f32 %v1030, %v526
      %v1751 = vmul.f32 %v1031, %v527
      %v1752 = vmul.f32 %v1032, %v528
      %v1753 = vmul.f32 %v1033, %v529
      %v1754 = vmul.f32 %v1034, %v512
      %v1755 = vmul.f32 %v1035, %v513
      %v1756 = vmul.f32 %v1036, %v514
      %v1757 = vmul.f32 %v1037, %v515
      %v1758 = vmul.f32 %v1038, %v516
      %v1759 = vmul.f32 %v1039, %v517
      %v1760 = vmul.f32 %v1040, %v518
      %v1761 = vmul.f32 %v1041, %v519
      %v1762 = vmul.f32 %v1042, %v520
      %v1763 = vmul.f32 %v1043, %v521
      %v1764 = vmul.f32 %v1044, %v522
      %v1765 = vmul.f32 %v1045, %v523
      %v1766 = vmul.f32 %v1046, %v524
      %v1767 = vmul.f32 %v1047, %v525
      %v1768 = vmul.f32 %v1048, %v526
      %v1769 = vmul.f32 %v1049, %v527
      %v1770 = vmul.f32 %v1050, %v528
      %v1771 = vmul.f32 %v1051, %v529
      %v1772 = vmul.f32 %v1052, %v512
      %v1773 = vmul.f32 %v1053, %v513
      %v1774 = vmul.f32 %v1054, %v514
      %v1775 = vmul.f32 %v1055, %v515
      %v1776 = vmul.f32 %v1056, %v516
      %v1777 = vmul.f32 %v1057, %v517
      %v1778 = vmul.f32 %v1058, %v518
      %v1779 = vmul.f32 %v1059, %v519
      %v1780 = vmul.f32 %v1060, %v520
      %v1781 = vmul.f32 %v1061, %v521
      %v1782 = vmul.f32 %v1062, %v522
      %v1783 = vmul.f32 %v1063, %v523
      %v1784 = vmul.f32 %v1064, %v524
      %v1785 = vmul.f32 %v1065, %v525
      %v1786 = vmul.f32 %v1066, %v526
      %v1787 = vmul.f32 %v1067, %v527
      %v1788 = vmul.f32 %v1068, %v528
      %v1789 = vmul.f32 %v1069, %v529
      %v1790 = vmul.f32 %v1070, %v512
      %v1791 = vmul.f32 %v1071, %v513
      %v1792 = vmul.f32 %v1072, %v514
      %v1793 = vmul.f32 %v1073, %v515
      %v1794 = vmul.f32 %v1074, %v516
      %v1795 = vmul.f32 %v1075, %v517
      %v1796 = vmul.f32 %v1076, %v518
      %v1797 = vmul.f32 %v1077, %v519
      %v1798 = vmul.f32 %v1078, %v520
      %v1799 = vmul.f32 %v1079, %v521
      %v1800 = vmul.f32 %v1080, %v522
      %v1801 = vmul.f32 %v1081, %v523
      %v1802 = vmul.f32 %v1082, %v524
      %v1803 = vmul.f32 %v1083, %v525
      %v1804 = vmul.f32 %v1084, %v526
      %v1805 = vmul.f32 %v1085, %v527
      %v1806 = vmul.f32 %v1086, %v528
      %v1807 = vmul.f32 %v1087, %v529
      %v1808 = vmul.f32 %v1088, %v512
      %v1809 = vmul.f32 %v1089, %v513
      %v1810 = vmul.f32 %v1090, %v514
      %v1811 = vmul.f32 %v1091, %v515
      %v1812 = vmul.f32 %v1092, %v516
      %v1813 = vmul.f32 %v1093, %v517
      %v1814 = vmul.f32 %v1094, %v518
      %v1815 = vmul.f32 %v1095, %v519
      %v1816 = vmul.f32 %v1096, %v520
      %v1817 = vmul.f32 %v1097, %v521
      %v1818 = vmul.f32 %v1098, %v522
      %v1819 = vmul.f32 %v1099, %v523
      %v1820 = vmul.f32 %v1100, %v524
      %v1821 = vmul.f32 %v1101, %v525
      %v1822 = vmul.f32 %v1102, %v526
      %v1823 = vmul.f32 %v1103, %v527
      %v1824 = vmul.f32 %v1104, %v528
      %v1825 = vmul.f32 %v1105, %v529
      %v1826 = vmul.f32 %v1106, %v512
      %v1827 = vmul.f32 %v1107, %v513
      %v1828 = vmul.f32 %v1108, %v514
      %v1829 = vmul.f32 %v1109, %v515
      %v1830 = vmul.f32 %v1110, %v516
      %v1831 = vmul.f32 %v1111, %v517
      %v1832 = vmul.f32 %v1112, %v518
      %v1833 = vmul.f32 %v1113, %v519
      %v1834 = vmul.f32 %v1114, %v520
      %v1835 = vmul.f32 %v1115, %v521
      %v1836 = vmul.f32 %v1116, %v522
      %v1837 = vmul.f32 %v1117, %v523
      %v1838 = vmul.f32 %v1118, %v524
      %v1839 = vmul.f32 %v1119, %v525
      %v1840 = vmul.f32 %v1120, %v526
      %v1841 = vmul.f32 %v1121, %v527
      %v1842 = vmul.f32 %v1122, %v528
      %v1843 = vmul.f32 %v1123, %v529
      %v1844 = vmul.f32 %v1124, %v512
      %v1845 = vmul.f32 %v1125, %v513
      %v1846 = vmul.f32 %v1126, %v514
      %v1847 = vmul.f32 %v1127, %v515
      %v1848 = vmul.f32 %v1128, %v516
      %v1849 = vmul.f32 %v1129, %v517
      %v1850 = vmul.f32 %v1130, %v518
      %v1851 = vmul.f32 %v1131, %v519
      %v1852 = vmul.f32 %v1132, %v520
      %v1853 = vmul.f32 %v1133, %v521
      %v1854 = vmul.f32 %v1134, %v522
      %v1855 = vmul.f32 %v1135, %v523
      %v1856 = vmul.f32 %v1136, %v524
      %v1857 = vmul.f32 %v1137, %v525
      %v1858 = vmul.f32 %v1138, %v526
      %v1859 = vmul.f32 %v1139, %v527
      %v1860 = vmul.f32 %v1140, %v528
      %v1861 = vmul.f32 %v1141, %v529
      %v1862 = vmul.f32 %v1142, %v512
      %v1863 = vmul.f32 %v1143, %v513
      %v1864 = vmul.f32 %v1144, %v514
      %v1865 = vmul.f32 %v1145, %v515
      %v1866 = vmul.f32 %v1146, %v516
      %v1867 = vmul.f32 %v1147, %v517
      %v1868 = vmul.f32 %v1148, %v518
      %v1869 = vmul.f32 %v1149, %v519
      %v1870 = vmul.f32 %v1150, %v520
      %v1871 = vmul.f32 %v1151, %v521
      %v1872 = vmul.f32 %v1152, %v522
      %v1873 = vmul.f32 %v1153, %v523
      %v1874 = vmul.f32 %v1154, %v524
      %v1875 = vmul.f32 %v1155, %v525
      %v1876 = vmul.f32 %v1156, %v526
      %v1877 = vmul.f32 %v1157, %v527
      %v1878 = vmul.f32 %v1158, %v528
      %v1879 = vmul.f32 %v1159, %v529
      %v1880 = vmul.f32 %v1160, %v512
      %v1881 = vmul.f32 %v1161, %v513
      %v1882 = vmul.f32 %v1162, %v514
      %v1883 = vmul.f32 %v1163, %v515
      %v1884 = vmul.f32 %v1164, %v516
      %v1885 = vmul.f32 %v1165, %v517
      %v1886 = vmul.f32 %v1166, %v518
      %v1887 = vmul.f32 %v1167, %v519
      %v1888 = vmul.f32 %v1168, %v520
      %v1889 = vmul.f32 %v1169, %v521
      %v1890 = vmul.f32 %v1170, %v522
      %v1891 = vmul.f32 %v1171, %v523
      %v1892 = vmul.f32 %v1172, %v524
      %v1893 = vmul.f32 %v1173, %v525
      %v1894 = vmul.f32 %v1174, %v526
      %v1895 = vmul.f32 %v1175, %v527
      %v1896 = vmul.f32 %v1176, %v528
      %v1897 = vmul.f32 %v1177, %v529
      %v1898 = vmul.f32 %v1178, %v512
      %v1899 = vmul.f32 %v1179, %v513
      %v1900 = vmul.f32 %v1180, %v514
      %v1901 = vmul.f32 %v1181, %v515
      %v1902 = vmul.f32 %v1182, %v516
      %v1903 = vmul.f32 %v1183, %v517
      %v1904 = vmul.f32 %v1184, %v518
      %v1905 = vmul.f32 %v1185, %v519
      %v1906 = vmul.f32 %v1186, %v520
      %v1907 = vmul.f32 %v1187, %v521
      %v1908 = vmul.f32 %v1188, %v522
      %v1909 = vmul.f32 %v1189, %v523
      %v1910 = vmul.f32 %v1190, %v524
      %v1911 = vmul.f32 %v1191, %v525
      %v1912 = vmul.f32 %v1192, %v526
      %v1913 = vmul.f32 %v1193, %v527
      %v1914 = vmul.f32 %v1194, %v528
      %v1915 = vmul.f32 %v1195, %v529
      %v1916 = vmul.f32 %v1196, %v512
      %v1917 = vmul.f32 %v1197, %v513
      %v1918 = vmul.f32 %v1198, %v514
      %v1919 = vmul.f32 %v1199, %v515
      %v1920 = vmul.f32 %v1200, %v516
      %v1921 = vmul.f32 %v1201, %v517
      %v1922 = vmul.f32 %v1202, %v518
      %v1923 = vmul.f32 %v1203, %v519
      %v1924 = vmul.f32 %v1204, %v520
      %v1925 = vmul.f32 %v1205, %v521
      %v1926 = vmul.f32 %v1206, %v522
      %v1927 = vmul.f32 %v1207, %v523
      %v1928 = vmul.f32 %v1208, %v524
      %v1929 = vmul.f32 %v1209, %v525
      %v1930 = vmul.f32 %v1210, %v526
      %v1931 = vmul.f32 %v1211, %v527
      %v1932 = vmul.f32 %v1212, %v528
      %v1933 = vmul.f32 %v1213, %v529
      %v1934 = vmul.f32 %v1214, %v512
      %v1935 = vmul.f32 %v1215, %v513
      %v1936 = vmul.f32 %v1216, %v514
      %v1937 = vmul.f32 %v1217, %v515
      %v1938 = vmul.f32 %v1218, %v516
      %v1939 = vmul.f32 %v1219, %v517
      %v1940 = vmul.f32 %v1220, %v518
      %v1941 = vmul.f32 %v1221, %v519
      %v1942 = vmul.f32 %v1222, %v520
      %v1943 = vmul.f32 %v1223, %v521
      %v1944 = vmul.f32 %v1224, %v522
      %v1945 = vmul.f32 %v1225, %v523
      %v1946 = vmul.f32 %v1226, %v524
      %v1947 = vmul.f32 %v1227, %v525
      %v1948 = vmul.f32 %v1228, %v526
      %v1949 = vmul.f32 %v1229, %v527
      %v1950 = vmul.f32 %v1230, %v528
      %v1951 = vmul.f32 %v1231, %v529
      %v1952 = vmul.f32 %v1232, %v512
      %v1953 = vmul.f32 %v1233, %v513
      %v1954 = vmul.f32 %v1234, %v514
      %v1955 = vmul.f32 %v1235, %v515
      %v1956 = vmul.f32 %v1236, %v516
      %v1957 = vmul.f32 %v1237, %v517
      %v1958 = vmul.f32 %v1238, %v518
      %v1959 = vmul.f32 %v1239, %v519
      %v1960 = vmul.f32 %v1240, %v520
      %v1961 = vmul.f32 %v1241, %v521
      %v1962 = vmul.f32 %v1242, %v522
      %v1963 = vmul.f32 %v1243, %v523
      %v1964 = vmul.f32 %v1244, %v524
      %v1965 = vmul.f32 %v1245, %v525
      %v1966 = vmul.f32 %v1246, %v526
      %v1967 = vmul.f32 %v1247, %v527
      %v1968 = vmul.f32 %v1248, %v528
      %v1969 = vmul.f32 %v1249, %v529
      %v1970 = vadd.f32 %v1250, %v1251
      %v1971 = vadd.f32 %v1970, %v1252
      %1972 = vadd.xlane.f32.xlu0 %v1971
      %v1973 = vpop.xlane.xlu0 %1972
      %v1974 = vadd.f32 %v1253, %v1254
      %v1975 = vadd.f32 %v1974, %v1255
      %1976 = vadd.xlane.f32.xlu0 %v1975
      %v1977 = vpop.xlane.xlu0 %1976
      %v1978 = vadd.f32 %v1256, %v1257
      %v1979 = vadd.f32 %v1978, %v1258
      %1980 = vadd.xlane.f32.xlu0 %v1979
      %v1981 = vpop.xlane.xlu0 %1980
      %v1982 = vadd.f32 %v1259, %v1260
      %v1983 = vadd.f32 %v1982, %v1261
      %1984 = vadd.xlane.f32.xlu0 %v1983
      %v1985 = vpop.xlane.xlu0 %1984
      %v1986 = vadd.f32 %v1262, %v1263
      %v1987 = vadd.f32 %v1986, %v1264
      %1988 = vadd.xlane.f32.xlu0 %v1987
      %v1989 = vpop.xlane.xlu0 %1988
      %v1990 = vadd.f32 %v1265, %v1266
      %v1991 = vadd.f32 %v1990, %v1267
      %1992 = vadd.xlane.f32.xlu0 %v1991
      %v1993 = vpop.xlane.xlu0 %1992
      %v1994 = vadd.f32 %v1268, %v1269
      %v1995 = vadd.f32 %v1994, %v1270
      %1996 = vadd.xlane.f32.xlu0 %v1995
      %v1997 = vpop.xlane.xlu0 %1996
      %v1998 = vadd.f32 %v1271, %v1272
      %v1999 = vadd.f32 %v1998, %v1273
      %2000 = vadd.xlane.f32.xlu0 %v1999
      %v2001 = vpop.xlane.xlu0 %2000
      %v2002 = vadd.f32 %v1274, %v1275
      %v2003 = vadd.f32 %v2002, %v1276
      %2004 = vadd.xlane.f32.xlu0 %v2003
      %v2005 = vpop.xlane.xlu0 %2004
      %v2006 = vadd.f32 %v1277, %v1278
      %v2007 = vadd.f32 %v2006, %v1279
      %2008 = vadd.xlane.f32.xlu0 %v2007
      %v2009 = vpop.xlane.xlu0 %2008
      %v2010 = vadd.f32 %v1280, %v1281
      %v2011 = vadd.f32 %v2010, %v1282
      %2012 = vadd.xlane.f32.xlu0 %v2011
      %v2013 = vpop.xlane.xlu0 %2012
      %v2014 = vadd.f32 %v1283, %v1284
      %v2015 = vadd.f32 %v2014, %v1285
      %2016 = vadd.xlane.f32.xlu0 %v2015
      %v2017 = vpop.xlane.xlu0 %2016
      %v2018 = vadd.f32 %v1286, %v1287
      %v2019 = vadd.f32 %v2018, %v1288
      %2020 = vadd.xlane.f32.xlu0 %v2019
      %v2021 = vpop.xlane.xlu0 %2020
      %v2022 = vadd.f32 %v1289, %v1290
      %v2023 = vadd.f32 %v2022, %v1291
      %2024 = vadd.xlane.f32.xlu0 %v2023
      %v2025 = vpop.xlane.xlu0 %2024
      %v2026 = vadd.f32 %v1292, %v1293
      %v2027 = vadd.f32 %v2026, %v1294
      %2028 = vadd.xlane.f32.xlu0 %v2027
      %v2029 = vpop.xlane.xlu0 %2028
      %v2030 = vadd.f32 %v1295, %v1296
      %v2031 = vadd.f32 %v2030, %v1297
      %2032 = vadd.xlane.f32.xlu0 %v2031
      %v2033 = vpop.xlane.xlu0 %2032
      %v2034 = vadd.f32 %v1298, %v1299
      %v2035 = vadd.f32 %v2034, %v1300
      %2036 = vadd.xlane.f32.xlu0 %v2035
      %v2037 = vpop.xlane.xlu0 %2036
      %v2038 = vadd.f32 %v1301, %v1302
      %v2039 = vadd.f32 %v2038, %v1303
      %2040 = vadd.xlane.f32.xlu0 %v2039
      %v2041 = vpop.xlane.xlu0 %2040
      %v2042 = vadd.f32 %v1304, %v1305
      %v2043 = vadd.f32 %v2042, %v1306
      %2044 = vadd.xlane.f32.xlu0 %v2043
      %v2045 = vpop.xlane.xlu0 %2044
      %v2046 = vadd.f32 %v1307, %v1308
      %v2047 = vadd.f32 %v2046, %v1309
      %2048 = vadd.xlane.f32.xlu0 %v2047
      %v2049 = vpop.xlane.xlu0 %2048
      %v2050 = vadd.f32 %v1310, %v1311
      %v2051 = vadd.f32 %v2050, %v1312
      %2052 = vadd.xlane.f32.xlu0 %v2051
      %v2053 = vpop.xlane.xlu0 %2052
      %v2054 = vadd.f32 %v1313, %v1314
      %v2055 = vadd.f32 %v2054, %v1315
      %2056 = vadd.xlane.f32.xlu0 %v2055
      %v2057 = vpop.xlane.xlu0 %2056
      %v2058 = vadd.f32 %v1316, %v1317
      %v2059 = vadd.f32 %v2058, %v1318
      %2060 = vadd.xlane.f32.xlu0 %v2059
      %v2061 = vpop.xlane.xlu0 %2060
      %v2062 = vadd.f32 %v1319, %v1320
      %v2063 = vadd.f32 %v2062, %v1321
      %2064 = vadd.xlane.f32.xlu0 %v2063
      %v2065 = vpop.xlane.xlu0 %2064
      %v2066 = vadd.f32 %v1322, %v1323
      %v2067 = vadd.f32 %v2066, %v1324
      %2068 = vadd.xlane.f32.xlu0 %v2067
      %v2069 = vpop.xlane.xlu0 %2068
      %v2070 = vadd.f32 %v1325, %v1326
      %v2071 = vadd.f32 %v2070, %v1327
      %2072 = vadd.xlane.f32.xlu0 %v2071
      %v2073 = vpop.xlane.xlu0 %2072
      %v2074 = vadd.f32 %v1328, %v1329
      %v2075 = vadd.f32 %v2074, %v1330
      %2076 = vadd.xlane.f32.xlu0 %v2075
      %v2077 = vpop.xlane.xlu0 %2076
      %v2078 = vadd.f32 %v1331, %v1332
      %v2079 = vadd.f32 %v2078, %v1333
      %2080 = vadd.xlane.f32.xlu0 %v2079
      %v2081 = vpop.xlane.xlu0 %2080
      %v2082 = vadd.f32 %v1334, %v1335
      %v2083 = vadd.f32 %v2082, %v1336
      %2084 = vadd.xlane.f32.xlu0 %v2083
      %v2085 = vpop.xlane.xlu0 %2084
      %v2086 = vadd.f32 %v1337, %v1338
      %v2087 = vadd.f32 %v2086, %v1339
      %2088 = vadd.xlane.f32.xlu0 %v2087
      %v2089 = vpop.xlane.xlu0 %2088
      %v2090 = vadd.f32 %v1340, %v1341
      %v2091 = vadd.f32 %v2090, %v1342
      %2092 = vadd.xlane.f32.xlu0 %v2091
      %v2093 = vpop.xlane.xlu0 %2092
      %v2094 = vadd.f32 %v1343, %v1344
      %v2095 = vadd.f32 %v2094, %v1345
      %2096 = vadd.xlane.f32.xlu0 %v2095
      %v2097 = vpop.xlane.xlu0 %2096
      %v2098 = vadd.f32 %v1346, %v1347
      %v2099 = vadd.f32 %v2098, %v1348
      %2100 = vadd.xlane.f32.xlu0 %v2099
      %v2101 = vpop.xlane.xlu0 %2100
      %v2102 = vadd.f32 %v1349, %v1350
      %v2103 = vadd.f32 %v2102, %v1351
      %2104 = vadd.xlane.f32.xlu0 %v2103
      %v2105 = vpop.xlane.xlu0 %2104
      %v2106 = vadd.f32 %v1352, %v1353
      %v2107 = vadd.f32 %v2106, %v1354
      %2108 = vadd.xlane.f32.xlu0 %v2107
      %v2109 = vpop.xlane.xlu0 %2108
      %v2110 = vadd.f32 %v1355, %v1356
      %v2111 = vadd.f32 %v2110, %v1357
      %2112 = vadd.xlane.f32.xlu0 %v2111
      %v2113 = vpop.xlane.xlu0 %2112
      %v2114 = vadd.f32 %v1358, %v1359
      %v2115 = vadd.f32 %v2114, %v1360
      %2116 = vadd.xlane.f32.xlu0 %v2115
      %v2117 = vpop.xlane.xlu0 %2116
      %v2118 = vadd.f32 %v1361, %v1362
      %v2119 = vadd.f32 %v2118, %v1363
      %2120 = vadd.xlane.f32.xlu0 %v2119
      %v2121 = vpop.xlane.xlu0 %2120
      %v2122 = vadd.f32 %v1364, %v1365
      %v2123 = vadd.f32 %v2122, %v1366
      %2124 = vadd.xlane.f32.xlu0 %v2123
      %v2125 = vpop.xlane.xlu0 %2124
      %v2126 = vadd.f32 %v1367, %v1368
      %v2127 = vadd.f32 %v2126, %v1369
      %2128 = vadd.xlane.f32.xlu0 %v2127
      %v2129 = vpop.xlane.xlu0 %2128
      %v2130 = vadd.f32 %v1370, %v1371
      %v2131 = vadd.f32 %v2130, %v1372
      %2132 = vadd.xlane.f32.xlu0 %v2131
      %v2133 = vpop.xlane.xlu0 %2132
      %v2134 = vadd.f32 %v1373, %v1374
      %v2135 = vadd.f32 %v2134, %v1375
      %2136 = vadd.xlane.f32.xlu0 %v2135
      %v2137 = vpop.xlane.xlu0 %2136
      %v2138 = vadd.f32 %v1376, %v1377
      %v2139 = vadd.f32 %v2138, %v1378
      %2140 = vadd.xlane.f32.xlu0 %v2139
      %v2141 = vpop.xlane.xlu0 %2140
      %v2142 = vadd.f32 %v1379, %v1380
      %v2143 = vadd.f32 %v2142, %v1381
      %2144 = vadd.xlane.f32.xlu0 %v2143
      %v2145 = vpop.xlane.xlu0 %2144
      %v2146 = vadd.f32 %v1382, %v1383
      %v2147 = vadd.f32 %v2146, %v1384
      %2148 = vadd.xlane.f32.xlu0 %v2147
      %v2149 = vpop.xlane.xlu0 %2148
      %v2150 = vadd.f32 %v1385, %v1386
      %v2151 = vadd.f32 %v2150, %v1387
      %2152 = vadd.xlane.f32.xlu0 %v2151
      %v2153 = vpop.xlane.xlu0 %2152
      %v2154 = vadd.f32 %v1388, %v1389
      %v2155 = vadd.f32 %v2154, %v1390
      %2156 = vadd.xlane.f32.xlu0 %v2155
      %v2157 = vpop.xlane.xlu0 %2156
      %v2158 = vadd.f32 %v1391, %v1392
      %v2159 = vadd.f32 %v2158, %v1393
      %2160 = vadd.xlane.f32.xlu0 %v2159
      %v2161 = vpop.xlane.xlu0 %2160
      %v2162 = vadd.f32 %v1394, %v1395
      %v2163 = vadd.f32 %v2162, %v1396
      %2164 = vadd.xlane.f32.xlu0 %v2163
      %v2165 = vpop.xlane.xlu0 %2164
      %v2166 = vadd.f32 %v1397, %v1398
      %v2167 = vadd.f32 %v2166, %v1399
      %2168 = vadd.xlane.f32.xlu0 %v2167
      %v2169 = vpop.xlane.xlu0 %2168
      %v2170 = vadd.f32 %v1400, %v1401
      %v2171 = vadd.f32 %v2170, %v1402
      %2172 = vadd.xlane.f32.xlu0 %v2171
      %v2173 = vpop.xlane.xlu0 %2172
      %v2174 = vadd.f32 %v1403, %v1404
      %v2175 = vadd.f32 %v2174, %v1405
      %2176 = vadd.xlane.f32.xlu0 %v2175
      %v2177 = vpop.xlane.xlu0 %2176
      %v2178 = vadd.f32 %v1406, %v1407
      %v2179 = vadd.f32 %v2178, %v1408
      %2180 = vadd.xlane.f32.xlu0 %v2179
      %v2181 = vpop.xlane.xlu0 %2180
      %v2182 = vadd.f32 %v1409, %v1410
      %v2183 = vadd.f32 %v2182, %v1411
      %2184 = vadd.xlane.f32.xlu0 %v2183
      %v2185 = vpop.xlane.xlu0 %2184
      %v2186 = vadd.f32 %v1412, %v1413
      %v2187 = vadd.f32 %v2186, %v1414
      %2188 = vadd.xlane.f32.xlu0 %v2187
      %v2189 = vpop.xlane.xlu0 %2188
      %v2190 = vadd.f32 %v1415, %v1416
      %v2191 = vadd.f32 %v2190, %v1417
      %2192 = vadd.xlane.f32.xlu0 %v2191
      %v2193 = vpop.xlane.xlu0 %2192
      %v2194 = vadd.f32 %v1418, %v1419
      %v2195 = vadd.f32 %v2194, %v1420
      %2196 = vadd.xlane.f32.xlu0 %v2195
      %v2197 = vpop.xlane.xlu0 %2196
      %v2198 = vadd.f32 %v1421, %v1422
      %v2199 = vadd.f32 %v2198, %v1423
      %2200 = vadd.xlane.f32.xlu0 %v2199
      %v2201 = vpop.xlane.xlu0 %2200
      %v2202 = vadd.f32 %v1424, %v1425
      %v2203 = vadd.f32 %v2202, %v1426
      %2204 = vadd.xlane.f32.xlu0 %v2203
      %v2205 = vpop.xlane.xlu0 %2204
      %v2206 = vadd.f32 %v1427, %v1428
      %v2207 = vadd.f32 %v2206, %v1429
      %2208 = vadd.xlane.f32.xlu0 %v2207
      %v2209 = vpop.xlane.xlu0 %2208
      %v2210 = vadd.f32 %v1430, %v1431
      %v2211 = vadd.f32 %v2210, %v1432
      %2212 = vadd.xlane.f32.xlu0 %v2211
      %v2213 = vpop.xlane.xlu0 %2212
      %v2214 = vadd.f32 %v1433, %v1434
      %v2215 = vadd.f32 %v2214, %v1435
      %2216 = vadd.xlane.f32.xlu0 %v2215
      %v2217 = vpop.xlane.xlu0 %2216
      %v2218 = vadd.f32 %v1436, %v1437
      %v2219 = vadd.f32 %v2218, %v1438
      %2220 = vadd.xlane.f32.xlu0 %v2219
      %v2221 = vpop.xlane.xlu0 %2220
      %v2222 = vadd.f32 %v1439, %v1440
      %v2223 = vadd.f32 %v2222, %v1441
      %2224 = vadd.xlane.f32.xlu0 %v2223
      %v2225 = vpop.xlane.xlu0 %2224
      %v2226 = vadd.f32 %v1442, %v1443
      %v2227 = vadd.f32 %v2226, %v1444
      %2228 = vadd.xlane.f32.xlu0 %v2227
      %v2229 = vpop.xlane.xlu0 %2228
      %v2230 = vadd.f32 %v1445, %v1446
      %v2231 = vadd.f32 %v2230, %v1447
      %2232 = vadd.xlane.f32.xlu0 %v2231
      %v2233 = vpop.xlane.xlu0 %2232
      %v2234 = vadd.f32 %v1448, %v1449
      %v2235 = vadd.f32 %v2234, %v1450
      %2236 = vadd.xlane.f32.xlu0 %v2235
      %v2237 = vpop.xlane.xlu0 %2236
      %v2238 = vadd.f32 %v1451, %v1452
      %v2239 = vadd.f32 %v2238, %v1453
      %2240 = vadd.xlane.f32.xlu0 %v2239
      %v2241 = vpop.xlane.xlu0 %2240
      %v2242 = vadd.f32 %v1454, %v1455
      %v2243 = vadd.f32 %v2242, %v1456
      %2244 = vadd.xlane.f32.xlu0 %v2243
      %v2245 = vpop.xlane.xlu0 %2244
      %v2246 = vadd.f32 %v1457, %v1458
      %v2247 = vadd.f32 %v2246, %v1459
      %2248 = vadd.xlane.f32.xlu0 %v2247
      %v2249 = vpop.xlane.xlu0 %2248
      %v2250 = vadd.f32 %v1460, %v1461
      %v2251 = vadd.f32 %v2250, %v1462
      %2252 = vadd.xlane.f32.xlu0 %v2251
      %v2253 = vpop.xlane.xlu0 %2252
      %v2254 = vadd.f32 %v1463, %v1464
      %v2255 = vadd.f32 %v2254, %v1465
      %2256 = vadd.xlane.f32.xlu0 %v2255
      %v2257 = vpop.xlane.xlu0 %2256
      %v2258 = vadd.f32 %v1466, %v1467
      %v2259 = vadd.f32 %v2258, %v1468
      %2260 = vadd.xlane.f32.xlu0 %v2259
      %v2261 = vpop.xlane.xlu0 %2260
      %v2262 = vadd.f32 %v1469, %v1470
      %v2263 = vadd.f32 %v2262, %v1471
      %2264 = vadd.xlane.f32.xlu0 %v2263
      %v2265 = vpop.xlane.xlu0 %2264
      %v2266 = vadd.f32 %v1472, %v1473
      %v2267 = vadd.f32 %v2266, %v1474
      %2268 = vadd.xlane.f32.xlu0 %v2267
      %v2269 = vpop.xlane.xlu0 %2268
      %v2270 = vadd.f32 %v1475, %v1476
      %v2271 = vadd.f32 %v2270, %v1477
      %2272 = vadd.xlane.f32.xlu0 %v2271
      %v2273 = vpop.xlane.xlu0 %2272
      %v2274 = vadd.f32 %v1478, %v1479
      %v2275 = vadd.f32 %v2274, %v1480
      %2276 = vadd.xlane.f32.xlu0 %v2275
      %v2277 = vpop.xlane.xlu0 %2276
      %v2278 = vadd.f32 %v1481, %v1482
      %v2279 = vadd.f32 %v2278, %v1483
      %2280 = vadd.xlane.f32.xlu0 %v2279
      %v2281 = vpop.xlane.xlu0 %2280
      %v2282 = vadd.f32 %v1484, %v1485
      %v2283 = vadd.f32 %v2282, %v1486
      %2284 = vadd.xlane.f32.xlu0 %v2283
      %v2285 = vpop.xlane.xlu0 %2284
      %v2286 = vadd.f32 %v1487, %v1488
      %v2287 = vadd.f32 %v2286, %v1489
      %2288 = vadd.xlane.f32.xlu0 %v2287
      %v2289 = vpop.xlane.xlu0 %2288
      %v2290 = vadd.f32 %v1490, %v1491
      %v2291 = vadd.f32 %v2290, %v1492
      %2292 = vadd.xlane.f32.xlu0 %v2291
      %v2293 = vpop.xlane.xlu0 %2292
      %v2294 = vadd.f32 %v1493, %v1494
      %v2295 = vadd.f32 %v2294, %v1495
      %2296 = vadd.xlane.f32.xlu0 %v2295
      %v2297 = vpop.xlane.xlu0 %2296
      %v2298 = vadd.f32 %v1496, %v1497
      %v2299 = vadd.f32 %v2298, %v1498
      %2300 = vadd.xlane.f32.xlu0 %v2299
      %v2301 = vpop.xlane.xlu0 %2300
      %v2302 = vadd.f32 %v1499, %v1500
      %v2303 = vadd.f32 %v2302, %v1501
      %2304 = vadd.xlane.f32.xlu0 %v2303
      %v2305 = vpop.xlane.xlu0 %2304
      %v2306 = vadd.f32 %v1502, %v1503
      %v2307 = vadd.f32 %v2306, %v1504
      %2308 = vadd.xlane.f32.xlu0 %v2307
      %v2309 = vpop.xlane.xlu0 %2308
      %v2310 = vadd.f32 %v1505, %v1506
      %v2311 = vadd.f32 %v2310, %v1507
      %2312 = vadd.xlane.f32.xlu0 %v2311
      %v2313 = vpop.xlane.xlu0 %2312
      %v2314 = vadd.f32 %v1508, %v1509
      %v2315 = vadd.f32 %v2314, %v1510
      %2316 = vadd.xlane.f32.xlu0 %v2315
      %v2317 = vpop.xlane.xlu0 %2316
      %v2318 = vadd.f32 %v1511, %v1512
      %v2319 = vadd.f32 %v2318, %v1513
      %2320 = vadd.xlane.f32.xlu0 %v2319
      %v2321 = vpop.xlane.xlu0 %2320
      %v2322 = vadd.f32 %v1514, %v1515
      %v2323 = vadd.f32 %v2322, %v1516
      %2324 = vadd.xlane.f32.xlu0 %v2323
      %v2325 = vpop.xlane.xlu0 %2324
      %v2326 = vadd.f32 %v1517, %v1518
      %v2327 = vadd.f32 %v2326, %v1519
      %2328 = vadd.xlane.f32.xlu0 %v2327
      %v2329 = vpop.xlane.xlu0 %2328
      %v2330 = vadd.f32 %v1520, %v1521
      %v2331 = vadd.f32 %v2330, %v1522
      %2332 = vadd.xlane.f32.xlu0 %v2331
      %v2333 = vpop.xlane.xlu0 %2332
      %v2334 = vadd.f32 %v1523, %v1524
      %v2335 = vadd.f32 %v2334, %v1525
      %2336 = vadd.xlane.f32.xlu0 %v2335
      %v2337 = vpop.xlane.xlu0 %2336
      %v2338 = vadd.f32 %v1526, %v1527
      %v2339 = vadd.f32 %v2338, %v1528
      %2340 = vadd.xlane.f32.xlu0 %v2339
      %v2341 = vpop.xlane.xlu0 %2340
      %v2342 = vadd.f32 %v1529, %v1530
      %v2343 = vadd.f32 %v2342, %v1531
      %2344 = vadd.xlane.f32.xlu0 %v2343
      %v2345 = vpop.xlane.xlu0 %2344
      %v2346 = vadd.f32 %v1532, %v1533
      %v2347 = vadd.f32 %v2346, %v1534
      %2348 = vadd.xlane.f32.xlu0 %v2347
      %v2349 = vpop.xlane.xlu0 %2348
      %v2350 = vadd.f32 %v1535, %v1536
      %v2351 = vadd.f32 %v2350, %v1537
      %2352 = vadd.xlane.f32.xlu0 %v2351
      %v2353 = vpop.xlane.xlu0 %2352
      %v2354 = vadd.f32 %v1538, %v1539
      %v2355 = vadd.f32 %v2354, %v1540
      %2356 = vadd.xlane.f32.xlu0 %v2355
      %v2357 = vpop.xlane.xlu0 %2356
      %v2358 = vadd.f32 %v1541, %v1542
      %v2359 = vadd.f32 %v2358, %v1543
      %2360 = vadd.xlane.f32.xlu0 %v2359
      %v2361 = vpop.xlane.xlu0 %2360
      %v2362 = vadd.f32 %v1544, %v1545
      %v2363 = vadd.f32 %v2362, %v1546
      %2364 = vadd.xlane.f32.xlu0 %v2363
      %v2365 = vpop.xlane.xlu0 %2364
      %v2366 = vadd.f32 %v1547, %v1548
      %v2367 = vadd.f32 %v2366, %v1549
      %2368 = vadd.xlane.f32.xlu0 %v2367
      %v2369 = vpop.xlane.xlu0 %2368
      %v2370 = vadd.f32 %v1550, %v1551
      %v2371 = vadd.f32 %v2370, %v1552
      %2372 = vadd.xlane.f32.xlu0 %v2371
      %v2373 = vpop.xlane.xlu0 %2372
      %v2374 = vadd.f32 %v1553, %v1554
      %v2375 = vadd.f32 %v2374, %v1555
      %2376 = vadd.xlane.f32.xlu0 %v2375
      %v2377 = vpop.xlane.xlu0 %2376
      %v2378 = vadd.f32 %v1556, %v1557
      %v2379 = vadd.f32 %v2378, %v1558
      %2380 = vadd.xlane.f32.xlu0 %v2379
      %v2381 = vpop.xlane.xlu0 %2380
      %v2382 = vadd.f32 %v1559, %v1560
      %v2383 = vadd.f32 %v2382, %v1561
      %2384 = vadd.xlane.f32.xlu0 %v2383
      %v2385 = vpop.xlane.xlu0 %2384
      %v2386 = vadd.f32 %v1562, %v1563
      %v2387 = vadd.f32 %v2386, %v1564
      %2388 = vadd.xlane.f32.xlu0 %v2387
      %v2389 = vpop.xlane.xlu0 %2388
      %v2390 = vadd.f32 %v1565, %v1566
      %v2391 = vadd.f32 %v2390, %v1567
      %2392 = vadd.xlane.f32.xlu0 %v2391
      %v2393 = vpop.xlane.xlu0 %2392
      %v2394 = vadd.f32 %v1568, %v1569
      %v2395 = vadd.f32 %v2394, %v1570
      %2396 = vadd.xlane.f32.xlu0 %v2395
      %v2397 = vpop.xlane.xlu0 %2396
      %v2398 = vadd.f32 %v1571, %v1572
      %v2399 = vadd.f32 %v2398, %v1573
      %2400 = vadd.xlane.f32.xlu0 %v2399
      %v2401 = vpop.xlane.xlu0 %2400
      %v2402 = vadd.f32 %v1574, %v1575
      %v2403 = vadd.f32 %v2402, %v1576
      %2404 = vadd.xlane.f32.xlu0 %v2403
      %v2405 = vpop.xlane.xlu0 %2404
      %v2406 = vadd.f32 %v1577, %v1578
      %v2407 = vadd.f32 %v2406, %v1579
      %2408 = vadd.xlane.f32.xlu0 %v2407
      %v2409 = vpop.xlane.xlu0 %2408
      %v2410 = vadd.f32 %v1580, %v1581
      %v2411 = vadd.f32 %v2410, %v1582
      %2412 = vadd.xlane.f32.xlu0 %v2411
      %v2413 = vpop.xlane.xlu0 %2412
      %v2414 = vadd.f32 %v1583, %v1584
      %v2415 = vadd.f32 %v2414, %v1585
      %2416 = vadd.xlane.f32.xlu0 %v2415
      %v2417 = vpop.xlane.xlu0 %2416
      %v2418 = vadd.f32 %v1586, %v1587
      %v2419 = vadd.f32 %v2418, %v1588
      %2420 = vadd.xlane.f32.xlu0 %v2419
      %v2421 = vpop.xlane.xlu0 %2420
      %v2422 = vadd.f32 %v1589, %v1590
      %v2423 = vadd.f32 %v2422, %v1591
      %2424 = vadd.xlane.f32.xlu0 %v2423
      %v2425 = vpop.xlane.xlu0 %2424
      %v2426 = vadd.f32 %v1592, %v1593
      %v2427 = vadd.f32 %v2426, %v1594
      %2428 = vadd.xlane.f32.xlu0 %v2427
      %v2429 = vpop.xlane.xlu0 %2428
      %v2430 = vadd.f32 %v1595, %v1596
      %v2431 = vadd.f32 %v2430, %v1597
      %2432 = vadd.xlane.f32.xlu0 %v2431
      %v2433 = vpop.xlane.xlu0 %2432
      %v2434 = vadd.f32 %v1598, %v1599
      %v2435 = vadd.f32 %v2434, %v1600
      %2436 = vadd.xlane.f32.xlu0 %v2435
      %v2437 = vpop.xlane.xlu0 %2436
      %v2438 = vadd.f32 %v1601, %v1602
      %v2439 = vadd.f32 %v2438, %v1603
      %2440 = vadd.xlane.f32.xlu0 %v2439
      %v2441 = vpop.xlane.xlu0 %2440
      %v2442 = vadd.f32 %v1604, %v1605
      %v2443 = vadd.f32 %v2442, %v1606
      %2444 = vadd.xlane.f32.xlu0 %v2443
      %v2445 = vpop.xlane.xlu0 %2444
      %v2446 = vadd.f32 %v1607, %v1608
      %v2447 = vadd.f32 %v2446, %v1609
      %2448 = vadd.xlane.f32.xlu0 %v2447
      %v2449 = vpop.xlane.xlu0 %2448
      %v2450 = vadd.f32 %v1610, %v1611
      %v2451 = vadd.f32 %v2450, %v1612
      %2452 = vadd.xlane.f32.xlu0 %v2451
      %v2453 = vpop.xlane.xlu0 %2452
      %v2454 = vadd.f32 %v1613, %v1614
      %v2455 = vadd.f32 %v2454, %v1615
      %2456 = vadd.xlane.f32.xlu0 %v2455
      %v2457 = vpop.xlane.xlu0 %2456
      %v2458 = vadd.f32 %v1616, %v1617
      %v2459 = vadd.f32 %v2458, %v1618
      %2460 = vadd.xlane.f32.xlu0 %v2459
      %v2461 = vpop.xlane.xlu0 %2460
      %v2462 = vadd.f32 %v1619, %v1620
      %v2463 = vadd.f32 %v2462, %v1621
      %2464 = vadd.xlane.f32.xlu0 %v2463
      %v2465 = vpop.xlane.xlu0 %2464
      %v2466 = vadd.f32 %v1622, %v1623
      %v2467 = vadd.f32 %v2466, %v1624
      %2468 = vadd.xlane.f32.xlu0 %v2467
      %v2469 = vpop.xlane.xlu0 %2468
      %v2470 = vadd.f32 %v1625, %v1626
      %v2471 = vadd.f32 %v2470, %v1627
      %2472 = vadd.xlane.f32.xlu0 %v2471
      %v2473 = vpop.xlane.xlu0 %2472
      %v2474 = vadd.f32 %v1628, %v1629
      %v2475 = vadd.f32 %v2474, %v1630
      %2476 = vadd.xlane.f32.xlu0 %v2475
      %v2477 = vpop.xlane.xlu0 %2476
      %v2478 = vadd.f32 %v1631, %v1632
      %v2479 = vadd.f32 %v2478, %v1633
      %2480 = vadd.xlane.f32.xlu0 %v2479
      %v2481 = vpop.xlane.xlu0 %2480
      %v2482 = vadd.f32 %v1634, %v1635
      %v2483 = vadd.f32 %v2482, %v1636
      %2484 = vadd.xlane.f32.xlu0 %v2483
      %v2485 = vpop.xlane.xlu0 %2484
      %v2486 = vadd.f32 %v1637, %v1638
      %v2487 = vadd.f32 %v2486, %v1639
      %2488 = vadd.xlane.f32.xlu0 %v2487
      %v2489 = vpop.xlane.xlu0 %2488
      %v2490 = vadd.f32 %v1640, %v1641
      %v2491 = vadd.f32 %v2490, %v1642
      %2492 = vadd.xlane.f32.xlu0 %v2491
      %v2493 = vpop.xlane.xlu0 %2492
      %v2494 = vadd.f32 %v1643, %v1644
      %v2495 = vadd.f32 %v2494, %v1645
      %2496 = vadd.xlane.f32.xlu0 %v2495
      %v2497 = vpop.xlane.xlu0 %2496
      %v2498 = vadd.f32 %v1646, %v1647
      %v2499 = vadd.f32 %v2498, %v1648
      %2500 = vadd.xlane.f32.xlu0 %v2499
      %v2501 = vpop.xlane.xlu0 %2500
      %v2502 = vadd.f32 %v1649, %v1650
      %v2503 = vadd.f32 %v2502, %v1651
      %2504 = vadd.xlane.f32.xlu0 %v2503
      %v2505 = vpop.xlane.xlu0 %2504
      %v2506 = vadd.f32 %v1652, %v1653
      %v2507 = vadd.f32 %v2506, %v1654
      %2508 = vadd.xlane.f32.xlu0 %v2507
      %v2509 = vpop.xlane.xlu0 %2508
      %v2510 = vadd.f32 %v1655, %v1656
      %v2511 = vadd.f32 %v2510, %v1657
      %2512 = vadd.xlane.f32.xlu0 %v2511
      %v2513 = vpop.xlane.xlu0 %2512
      %v2514 = vadd.f32 %v1658, %v1659
      %v2515 = vadd.f32 %v2514, %v1660
      %2516 = vadd.xlane.f32.xlu0 %v2515
      %v2517 = vpop.xlane.xlu0 %2516
      %v2518 = vadd.f32 %v1661, %v1662
      %v2519 = vadd.f32 %v2518, %v1663
      %2520 = vadd.xlane.f32.xlu0 %v2519
      %v2521 = vpop.xlane.xlu0 %2520
      %v2522 = vadd.f32 %v1664, %v1665
      %v2523 = vadd.f32 %v2522, %v1666
      %2524 = vadd.xlane.f32.xlu0 %v2523
      %v2525 = vpop.xlane.xlu0 %2524
      %v2526 = vadd.f32 %v1667, %v1668
      %v2527 = vadd.f32 %v2526, %v1669
      %2528 = vadd.xlane.f32.xlu0 %v2527
      %v2529 = vpop.xlane.xlu0 %2528
      %v2530 = vadd.f32 %v1670, %v1671
      %v2531 = vadd.f32 %v2530, %v1672
      %2532 = vadd.xlane.f32.xlu0 %v2531
      %v2533 = vpop.xlane.xlu0 %2532
      %v2534 = vadd.f32 %v1673, %v1674
      %v2535 = vadd.f32 %v2534, %v1675
      %2536 = vadd.xlane.f32.xlu0 %v2535
      %v2537 = vpop.xlane.xlu0 %2536
      %v2538 = vadd.f32 %v1676, %v1677
      %v2539 = vadd.f32 %v2538, %v1678
      %2540 = vadd.xlane.f32.xlu0 %v2539
      %v2541 = vpop.xlane.xlu0 %2540
      %v2542 = vadd.f32 %v1679, %v1680
      %v2543 = vadd.f32 %v2542, %v1681
      %2544 = vadd.xlane.f32.xlu0 %v2543
      %v2545 = vpop.xlane.xlu0 %2544
      %v2546 = vadd.f32 %v1682, %v1683
      %v2547 = vadd.f32 %v2546, %v1684
      %2548 = vadd.xlane.f32.xlu0 %v2547
      %v2549 = vpop.xlane.xlu0 %2548
      %v2550 = vadd.f32 %v1685, %v1686
      %v2551 = vadd.f32 %v2550, %v1687
      %2552 = vadd.xlane.f32.xlu0 %v2551
      %v2553 = vpop.xlane.xlu0 %2552
      %v2554 = vadd.f32 %v1688, %v1689
      %v2555 = vadd.f32 %v2554, %v1690
      %2556 = vadd.xlane.f32.xlu0 %v2555
      %v2557 = vpop.xlane.xlu0 %2556
      %v2558 = vadd.f32 %v1691, %v1692
      %v2559 = vadd.f32 %v2558, %v1693
      %2560 = vadd.xlane.f32.xlu0 %v2559
      %v2561 = vpop.xlane.xlu0 %2560
      %v2562 = vadd.f32 %v1694, %v1695
      %v2563 = vadd.f32 %v2562, %v1696
      %2564 = vadd.xlane.f32.xlu0 %v2563
      %v2565 = vpop.xlane.xlu0 %2564
      %v2566 = vadd.f32 %v1697, %v1698
      %v2567 = vadd.f32 %v2566, %v1699
      %2568 = vadd.xlane.f32.xlu0 %v2567
      %v2569 = vpop.xlane.xlu0 %2568
      %v2570 = vadd.f32 %v1700, %v1701
      %v2571 = vadd.f32 %v2570, %v1702
      %2572 = vadd.xlane.f32.xlu0 %v2571
      %v2573 = vpop.xlane.xlu0 %2572
      %v2574 = vadd.f32 %v1703, %v1704
      %v2575 = vadd.f32 %v2574, %v1705
      %2576 = vadd.xlane.f32.xlu0 %v2575
      %v2577 = vpop.xlane.xlu0 %2576
      %v2578 = vadd.f32 %v1706, %v1707
      %v2579 = vadd.f32 %v2578, %v1708
      %2580 = vadd.xlane.f32.xlu0 %v2579
      %v2581 = vpop.xlane.xlu0 %2580
      %v2582 = vadd.f32 %v1709, %v1710
      %v2583 = vadd.f32 %v2582, %v1711
      %2584 = vadd.xlane.f32.xlu0 %v2583
      %v2585 = vpop.xlane.xlu0 %2584
      %v2586 = vadd.f32 %v1712, %v1713
      %v2587 = vadd.f32 %v2586, %v1714
      %2588 = vadd.xlane.f32.xlu0 %v2587
      %v2589 = vpop.xlane.xlu0 %2588
      %v2590 = vadd.f32 %v1715, %v1716
      %v2591 = vadd.f32 %v2590, %v1717
      %2592 = vadd.xlane.f32.xlu0 %v2591
      %v2593 = vpop.xlane.xlu0 %2592
      %v2594 = vadd.f32 %v1718, %v1719
      %v2595 = vadd.f32 %v2594, %v1720
      %2596 = vadd.xlane.f32.xlu0 %v2595
      %v2597 = vpop.xlane.xlu0 %2596
      %v2598 = vadd.f32 %v1721, %v1722
      %v2599 = vadd.f32 %v2598, %v1723
      %2600 = vadd.xlane.f32.xlu0 %v2599
      %v2601 = vpop.xlane.xlu0 %2600
      %v2602 = vadd.f32 %v1724, %v1725
      %v2603 = vadd.f32 %v2602, %v1726
      %2604 = vadd.xlane.f32.xlu0 %v2603
      %v2605 = vpop.xlane.xlu0 %2604
      %v2606 = vadd.f32 %v1727, %v1728
      %v2607 = vadd.f32 %v2606, %v1729
      %2608 = vadd.xlane.f32.xlu0 %v2607
      %v2609 = vpop.xlane.xlu0 %2608
      %v2610 = vadd.f32 %v1730, %v1731
      %v2611 = vadd.f32 %v2610, %v1732
      %2612 = vadd.xlane.f32.xlu0 %v2611
      %v2613 = vpop.xlane.xlu0 %2612
      %v2614 = vadd.f32 %v1733, %v1734
      %v2615 = vadd.f32 %v2614, %v1735
      %2616 = vadd.xlane.f32.xlu0 %v2615
      %v2617 = vpop.xlane.xlu0 %2616
      %v2618 = vadd.f32 %v1736, %v1737
      %v2619 = vadd.f32 %v2618, %v1738
      %2620 = vadd.xlane.f32.xlu0 %v2619
      %v2621 = vpop.xlane.xlu0 %2620
      %v2622 = vadd.f32 %v1739, %v1740
      %v2623 = vadd.f32 %v2622, %v1741
      %2624 = vadd.xlane.f32.xlu0 %v2623
      %v2625 = vpop.xlane.xlu0 %2624
      %v2626 = vadd.f32 %v1742, %v1743
      %v2627 = vadd.f32 %v2626, %v1744
      %2628 = vadd.xlane.f32.xlu0 %v2627
      %v2629 = vpop.xlane.xlu0 %2628
      %v2630 = vadd.f32 %v1745, %v1746
      %v2631 = vadd.f32 %v2630, %v1747
      %2632 = vadd.xlane.f32.xlu0 %v2631
      %v2633 = vpop.xlane.xlu0 %2632
      %v2634 = vadd.f32 %v1748, %v1749
      %v2635 = vadd.f32 %v2634, %v1750
      %2636 = vadd.xlane.f32.xlu0 %v2635
      %v2637 = vpop.xlane.xlu0 %2636
      %v2638 = vadd.f32 %v1751, %v1752
      %v2639 = vadd.f32 %v2638, %v1753
      %2640 = vadd.xlane.f32.xlu0 %v2639
      %v2641 = vpop.xlane.xlu0 %2640
      %v2642 = vadd.f32 %v1754, %v1755
      %v2643 = vadd.f32 %v2642, %v1756
      %2644 = vadd.xlane.f32.xlu0 %v2643
      %v2645 = vpop.xlane.xlu0 %2644
      %v2646 = vadd.f32 %v1757, %v1758
      %v2647 = vadd.f32 %v2646, %v1759
      %2648 = vadd.xlane.f32.xlu0 %v2647
      %v2649 = vpop.xlane.xlu0 %2648
      %v2650 = vadd.f32 %v1760, %v1761
      %v2651 = vadd.f32 %v2650, %v1762
      %2652 = vadd.xlane.f32.xlu0 %v2651
      %v2653 = vpop.xlane.xlu0 %2652
      %v2654 = vadd.f32 %v1763, %v1764
      %v2655 = vadd.f32 %v2654, %v1765
      %2656 = vadd.xlane.f32.xlu0 %v2655
      %v2657 = vpop.xlane.xlu0 %2656
      %v2658 = vadd.f32 %v1766, %v1767
      %v2659 = vadd.f32 %v2658, %v1768
      %2660 = vadd.xlane.f32.xlu0 %v2659
      %v2661 = vpop.xlane.xlu0 %2660
      %v2662 = vadd.f32 %v1769, %v1770
      %v2663 = vadd.f32 %v2662, %v1771
      %2664 = vadd.xlane.f32.xlu0 %v2663
      %v2665 = vpop.xlane.xlu0 %2664
      %v2666 = vadd.f32 %v1772, %v1773
      %v2667 = vadd.f32 %v2666, %v1774
      %2668 = vadd.xlane.f32.xlu0 %v2667
      %v2669 = vpop.xlane.xlu0 %2668
      %v2670 = vadd.f32 %v1775, %v1776
      %v2671 = vadd.f32 %v2670, %v1777
      %2672 = vadd.xlane.f32.xlu0 %v2671
      %v2673 = vpop.xlane.xlu0 %2672
      %v2674 = vadd.f32 %v1778, %v1779
      %v2675 = vadd.f32 %v2674, %v1780
      %2676 = vadd.xlane.f32.xlu0 %v2675
      %v2677 = vpop.xlane.xlu0 %2676
      %v2678 = vadd.f32 %v1781, %v1782
      %v2679 = vadd.f32 %v2678, %v1783
      %2680 = vadd.xlane.f32.xlu0 %v2679
      %v2681 = vpop.xlane.xlu0 %2680
      %v2682 = vadd.f32 %v1784, %v1785
      %v2683 = vadd.f32 %v2682, %v1786
      %2684 = vadd.xlane.f32.xlu0 %v2683
      %v2685 = vpop.xlane.xlu0 %2684
      %v2686 = vadd.f32 %v1787, %v1788
      %v2687 = vadd.f32 %v2686, %v1789
      %2688 = vadd.xlane.f32.xlu0 %v2687
      %v2689 = vpop.xlane.xlu0 %2688
      %v2690 = vadd.f32 %v1790, %v1791
      %v2691 = vadd.f32 %v2690, %v1792
      %2692 = vadd.xlane.f32.xlu0 %v2691
      %v2693 = vpop.xlane.xlu0 %2692
      %v2694 = vadd.f32 %v1793, %v1794
      %v2695 = vadd.f32 %v2694, %v1795
      %2696 = vadd.xlane.f32.xlu0 %v2695
      %v2697 = vpop.xlane.xlu0 %2696
      %v2698 = vadd.f32 %v1796, %v1797
      %v2699 = vadd.f32 %v2698, %v1798
      %2700 = vadd.xlane.f32.xlu0 %v2699
      %v2701 = vpop.xlane.xlu0 %2700
      %v2702 = vadd.f32 %v1799, %v1800
      %v2703 = vadd.f32 %v2702, %v1801
      %2704 = vadd.xlane.f32.xlu0 %v2703
      %v2705 = vpop.xlane.xlu0 %2704
      %v2706 = vadd.f32 %v1802, %v1803
      %v2707 = vadd.f32 %v2706, %v1804
      %2708 = vadd.xlane.f32.xlu0 %v2707
      %v2709 = vpop.xlane.xlu0 %2708
      %v2710 = vadd.f32 %v1805, %v1806
      %v2711 = vadd.f32 %v2710, %v1807
      %2712 = vadd.xlane.f32.xlu0 %v2711
      %v2713 = vpop.xlane.xlu0 %2712
      %v2714 = vadd.f32 %v1808, %v1809
      %v2715 = vadd.f32 %v2714, %v1810
      %2716 = vadd.xlane.f32.xlu0 %v2715
      %v2717 = vpop.xlane.xlu0 %2716
      %v2718 = vadd.f32 %v1811, %v1812
      %v2719 = vadd.f32 %v2718, %v1813
      %2720 = vadd.xlane.f32.xlu0 %v2719
      %v2721 = vpop.xlane.xlu0 %2720
      %v2722 = vadd.f32 %v1814, %v1815
      %v2723 = vadd.f32 %v2722, %v1816
      %2724 = vadd.xlane.f32.xlu0 %v2723
      %v2725 = vpop.xlane.xlu0 %2724
      %v2726 = vadd.f32 %v1817, %v1818
      %v2727 = vadd.f32 %v2726, %v1819
      %2728 = vadd.xlane.f32.xlu0 %v2727
      %v2729 = vpop.xlane.xlu0 %2728
      %v2730 = vadd.f32 %v1820, %v1821
      %v2731 = vadd.f32 %v2730, %v1822
      %2732 = vadd.xlane.f32.xlu0 %v2731
      %v2733 = vpop.xlane.xlu0 %2732
      %v2734 = vadd.f32 %v1823, %v1824
      %v2735 = vadd.f32 %v2734, %v1825
      %2736 = vadd.xlane.f32.xlu0 %v2735
      %v2737 = vpop.xlane.xlu0 %2736
      %v2738 = vadd.f32 %v1826, %v1827
      %v2739 = vadd.f32 %v2738, %v1828
      %2740 = vadd.xlane.f32.xlu0 %v2739
      %v2741 = vpop.xlane.xlu0 %2740
      %v2742 = vadd.f32 %v1829, %v1830
      %v2743 = vadd.f32 %v2742, %v1831
      %2744 = vadd.xlane.f32.xlu0 %v2743
      %v2745 = vpop.xlane.xlu0 %2744
      %v2746 = vadd.f32 %v1832, %v1833
      %v2747 = vadd.f32 %v2746, %v1834
      %2748 = vadd.xlane.f32.xlu0 %v2747
      %v2749 = vpop.xlane.xlu0 %2748
      %v2750 = vadd.f32 %v1835, %v1836
      %v2751 = vadd.f32 %v2750, %v1837
      %2752 = vadd.xlane.f32.xlu0 %v2751
      %v2753 = vpop.xlane.xlu0 %2752
      %v2754 = vadd.f32 %v1838, %v1839
      %v2755 = vadd.f32 %v2754, %v1840
      %2756 = vadd.xlane.f32.xlu0 %v2755
      %v2757 = vpop.xlane.xlu0 %2756
      %v2758 = vadd.f32 %v1841, %v1842
      %v2759 = vadd.f32 %v2758, %v1843
      %2760 = vadd.xlane.f32.xlu0 %v2759
      %v2761 = vpop.xlane.xlu0 %2760
      %v2762 = vadd.f32 %v1844, %v1845
      %v2763 = vadd.f32 %v2762, %v1846
      %2764 = vadd.xlane.f32.xlu0 %v2763
      %v2765 = vpop.xlane.xlu0 %2764
      %v2766 = vadd.f32 %v1847, %v1848
      %v2767 = vadd.f32 %v2766, %v1849
      %2768 = vadd.xlane.f32.xlu0 %v2767
      %v2769 = vpop.xlane.xlu0 %2768
      %v2770 = vadd.f32 %v1850, %v1851
      %v2771 = vadd.f32 %v2770, %v1852
      %2772 = vadd.xlane.f32.xlu0 %v2771
      %v2773 = vpop.xlane.xlu0 %2772
      %v2774 = vadd.f32 %v1853, %v1854
      %v2775 = vadd.f32 %v2774, %v1855
      %2776 = vadd.xlane.f32.xlu0 %v2775
      %v2777 = vpop.xlane.xlu0 %2776
      %v2778 = vadd.f32 %v1856, %v1857
      %v2779 = vadd.f32 %v2778, %v1858
      %2780 = vadd.xlane.f32.xlu0 %v2779
      %v2781 = vpop.xlane.xlu0 %2780
      %v2782 = vadd.f32 %v1859, %v1860
      %v2783 = vadd.f32 %v2782, %v1861
      %2784 = vadd.xlane.f32.xlu0 %v2783
      %v2785 = vpop.xlane.xlu0 %2784
      %v2786 = vadd.f32 %v1862, %v1863
      %v2787 = vadd.f32 %v2786, %v1864
      %2788 = vadd.xlane.f32.xlu0 %v2787
      %v2789 = vpop.xlane.xlu0 %2788
      %v2790 = vadd.f32 %v1865, %v1866
      %v2791 = vadd.f32 %v2790, %v1867
      %2792 = vadd.xlane.f32.xlu0 %v2791
      %v2793 = vpop.xlane.xlu0 %2792
      %v2794 = vadd.f32 %v1868, %v1869
      %v2795 = vadd.f32 %v2794, %v1870
      %2796 = vadd.xlane.f32.xlu0 %v2795
      %v2797 = vpop.xlane.xlu0 %2796
      %v2798 = vadd.f32 %v1871, %v1872
      %v2799 = vadd.f32 %v2798, %v1873
      %2800 = vadd.xlane.f32.xlu0 %v2799
      %v2801 = vpop.xlane.xlu0 %2800
      %v2802 = vadd.f32 %v1874, %v1875
      %v2803 = vadd.f32 %v2802, %v1876
      %2804 = vadd.xlane.f32.xlu0 %v2803
      %v2805 = vpop.xlane.xlu0 %2804
      %v2806 = vadd.f32 %v1877, %v1878
      %v2807 = vadd.f32 %v2806, %v1879
      %2808 = vadd.xlane.f32.xlu0 %v2807
      %v2809 = vpop.xlane.xlu0 %2808
      %v2810 = vadd.f32 %v1880, %v1881
      %v2811 = vadd.f32 %v2810, %v1882
      %2812 = vadd.xlane.f32.xlu0 %v2811
      %v2813 = vpop.xlane.xlu0 %2812
      %v2814 = vadd.f32 %v1883, %v1884
      %v2815 = vadd.f32 %v2814, %v1885
      %2816 = vadd.xlane.f32.xlu0 %v2815
      %v2817 = vpop.xlane.xlu0 %2816
      %v2818 = vadd.f32 %v1886, %v1887
      %v2819 = vadd.f32 %v2818, %v1888
      %2820 = vadd.xlane.f32.xlu0 %v2819
      %v2821 = vpop.xlane.xlu0 %2820
      %v2822 = vadd.f32 %v1889, %v1890
      %v2823 = vadd.f32 %v2822, %v1891
      %2824 = vadd.xlane.f32.xlu0 %v2823
      %v2825 = vpop.xlane.xlu0 %2824
      %v2826 = vadd.f32 %v1892, %v1893
      %v2827 = vadd.f32 %v2826, %v1894
      %2828 = vadd.xlane.f32.xlu0 %v2827
      %v2829 = vpop.xlane.xlu0 %2828
      %v2830 = vadd.f32 %v1895, %v1896
      %v2831 = vadd.f32 %v2830, %v1897
      %2832 = vadd.xlane.f32.xlu0 %v2831
      %v2833 = vpop.xlane.xlu0 %2832
      %v2834 = vadd.f32 %v1898, %v1899
      %v2835 = vadd.f32 %v2834, %v1900
      %2836 = vadd.xlane.f32.xlu0 %v2835
      %v2837 = vpop.xlane.xlu0 %2836
      %v2838 = vadd.f32 %v1901, %v1902
      %v2839 = vadd.f32 %v2838, %v1903
      %2840 = vadd.xlane.f32.xlu0 %v2839
      %v2841 = vpop.xlane.xlu0 %2840
      %v2842 = vadd.f32 %v1904, %v1905
      %v2843 = vadd.f32 %v2842, %v1906
      %2844 = vadd.xlane.f32.xlu0 %v2843
      %v2845 = vpop.xlane.xlu0 %2844
      %v2846 = vadd.f32 %v1907, %v1908
      %v2847 = vadd.f32 %v2846, %v1909
      %2848 = vadd.xlane.f32.xlu0 %v2847
      %v2849 = vpop.xlane.xlu0 %2848
      %v2850 = vadd.f32 %v1910, %v1911
      %v2851 = vadd.f32 %v2850, %v1912
      %2852 = vadd.xlane.f32.xlu0 %v2851
      %v2853 = vpop.xlane.xlu0 %2852
      %v2854 = vadd.f32 %v1913, %v1914
      %v2855 = vadd.f32 %v2854, %v1915
      %2856 = vadd.xlane.f32.xlu0 %v2855
      %v2857 = vpop.xlane.xlu0 %2856
      %v2858 = vadd.f32 %v1916, %v1917
      %v2859 = vadd.f32 %v2858, %v1918
      %2860 = vadd.xlane.f32.xlu0 %v2859
      %v2861 = vpop.xlane.xlu0 %2860
      %v2862 = vadd.f32 %v1919, %v1920
      %v2863 = vadd.f32 %v2862, %v1921
      %2864 = vadd.xlane.f32.xlu0 %v2863
      %v2865 = vpop.xlane.xlu0 %2864
      %v2866 = vadd.f32 %v1922, %v1923
      %v2867 = vadd.f32 %v2866, %v1924
      %2868 = vadd.xlane.f32.xlu0 %v2867
      %v2869 = vpop.xlane.xlu0 %2868
      %v2870 = vadd.f32 %v1925, %v1926
      %v2871 = vadd.f32 %v2870, %v1927
      %2872 = vadd.xlane.f32.xlu0 %v2871
      %v2873 = vpop.xlane.xlu0 %2872
      %v2874 = vadd.f32 %v1928, %v1929
      %v2875 = vadd.f32 %v2874, %v1930
      %2876 = vadd.xlane.f32.xlu0 %v2875
      %v2877 = vpop.xlane.xlu0 %2876
      %v2878 = vadd.f32 %v1931, %v1932
      %v2879 = vadd.f32 %v2878, %v1933
      %2880 = vadd.xlane.f32.xlu0 %v2879
      %v2881 = vpop.xlane.xlu0 %2880
      %v2882 = vadd.f32 %v1934, %v1935
      %v2883 = vadd.f32 %v2882, %v1936
      %2884 = vadd.xlane.f32.xlu0 %v2883
      %v2885 = vpop.xlane.xlu0 %2884
      %v2886 = vadd.f32 %v1937, %v1938
      %v2887 = vadd.f32 %v2886, %v1939
      %2888 = vadd.xlane.f32.xlu0 %v2887
      %v2889 = vpop.xlane.xlu0 %2888
      %v2890 = vadd.f32 %v1940, %v1941
      %v2891 = vadd.f32 %v2890, %v1942
      %2892 = vadd.xlane.f32.xlu0 %v2891
      %v2893 = vpop.xlane.xlu0 %2892
      %v2894 = vadd.f32 %v1943, %v1944
      %v2895 = vadd.f32 %v2894, %v1945
      %2896 = vadd.xlane.f32.xlu0 %v2895
      %v2897 = vpop.xlane.xlu0 %2896
      %v2898 = vadd.f32 %v1946, %v1947
      %v2899 = vadd.f32 %v2898, %v1948
      %2900 = vadd.xlane.f32.xlu0 %v2899
      %v2901 = vpop.xlane.xlu0 %2900
      %v2902 = vadd.f32 %v1949, %v1950
      %v2903 = vadd.f32 %v2902, %v1951
      %2904 = vadd.xlane.f32.xlu0 %v2903
      %v2905 = vpop.xlane.xlu0 %2904
      %v2906 = vadd.f32 %v1952, %v1953
      %v2907 = vadd.f32 %v2906, %v1954
      %2908 = vadd.xlane.f32.xlu0 %v2907
      %v2909 = vpop.xlane.xlu0 %2908
      %v2910 = vadd.f32 %v1955, %v1956
      %v2911 = vadd.f32 %v2910, %v1957
      %2912 = vadd.xlane.f32.xlu0 %v2911
      %v2913 = vpop.xlane.xlu0 %2912
      %v2914 = vadd.f32 %v1958, %v1959
      %v2915 = vadd.f32 %v2914, %v1960
      %2916 = vadd.xlane.f32.xlu0 %v2915
      %v2917 = vpop.xlane.xlu0 %2916
      %v2918 = vadd.f32 %v1961, %v1962
      %v2919 = vadd.f32 %v2918, %v1963
      %2920 = vadd.xlane.f32.xlu0 %v2919
      %v2921 = vpop.xlane.xlu0 %2920
      %v2922 = vadd.f32 %v1964, %v1965
      %v2923 = vadd.f32 %v2922, %v1966
      %2924 = vadd.xlane.f32.xlu0 %v2923
      %v2925 = vpop.xlane.xlu0 %2924
      %v2926 = vadd.f32 %v1967, %v1968
      %v2927 = vadd.f32 %v2926, %v1969
      %2928 = vadd.xlane.f32.xlu0 %v2927
      %v2929 = vpop.xlane.xlu0 %2928
      %v3170 = vlaneseq
      %v3171 = vand.u32 %v3170, 127
      %v3172 = vlaneseq
      %v3173 = vshrl.u32 %v3172, 7
      %v3174 = vsub.s32 %v3171, %v3173
      %v3175 = vrot.slane %v1973, %v3174
      %v3176 = vadd.s32 %v3171, 4294967288
      %v3177 = vlaneseq
      %v3178 = vshrl.u32 %v3177, 7
      %v3179 = vsub.s32 %v3176, %v3178
      %v3180 = vrot.slane %v1977, %v3179
      %vm3181 = vcmask 130112
      %v3182 = vsel %vm3181, %v3180, %v3175
      %v3183 = vadd.s32 %v3171, 4294967280
      %v3184 = vlaneseq
      %v3185 = vshrl.u32 %v3184, 7
      %v3186 = vsub.s32 %v3183, %v3185
      %v3187 = vrot.slane %v1981, %v3186
      %vm3188 = vcmask 195712
      %v3189 = vsel %vm3188, %v3187, %v3182
      %v3190 = vadd.s32 %v3171, 4294967272
      %v3191 = vlaneseq
      %v3192 = vshrl.u32 %v3191, 7
      %v3193 = vsub.s32 %v3190, %v3192
      %v3194 = vrot.slane %v1985, %v3193
      %vm3195 = vcmask 261312
      %v3196 = vsel %vm3195, %v3194, %v3189
      %v3197 = vadd.s32 %v3171, 4294967264
      %v3198 = vlaneseq
      %v3199 = vshrl.u32 %v3198, 7
      %v3200 = vsub.s32 %v3197, %v3199
      %v3201 = vrot.slane %v1989, %v3200
      %vm3202 = vcmask 326912
      %v3203 = vsel %vm3202, %v3201, %v3196
      %v3204 = vadd.s32 %v3171, 4294967256
      %v3205 = vlaneseq
      %v3206 = vshrl.u32 %v3205, 7
      %v3207 = vsub.s32 %v3204, %v3206
      %v3208 = vrot.slane %v1993, %v3207
      %vm3209 = vcmask 392512
      %v3210 = vsel %vm3209, %v3208, %v3203
      %v3211 = vlaneseq
      %v3212 = vshrl.u32 %v3211, 7
      %v3213 = vsub.s32 %v3171, %v3212
      %v3214 = vrot.slane %v1997, %v3213
      %v3215 = vlaneseq
      %v3216 = vshrl.u32 %v3215, 7
      %v3217 = vsub.s32 %v3176, %v3216
      %v3218 = vrot.slane %v2001, %v3217
      %v3219 = vsel %vm3181, %v3218, %v3214
      %v3220 = vlaneseq
      %v3221 = vshrl.u32 %v3220, 7
      %v3222 = vsub.s32 %v3183, %v3221
      %v3223 = vrot.slane %v2005, %v3222
      %v3224 = vsel %vm3188, %v3223, %v3219
      %v3225 = vlaneseq
      %v3226 = vshrl.u32 %v3225, 7
      %v3227 = vsub.s32 %v3190, %v3226
      %v3228 = vrot.slane %v2009, %v3227
      %v3229 = vsel %vm3195, %v3228, %v3224
      %v3230 = vlaneseq
      %v3231 = vshrl.u32 %v3230, 7
      %v3232 = vsub.s32 %v3197, %v3231
      %v3233 = vrot.slane %v2013, %v3232
      %v3234 = vsel %vm3202, %v3233, %v3229
      %v3235 = vlaneseq
      %v3236 = vshrl.u32 %v3235, 7
      %v3237 = vsub.s32 %v3204, %v3236
      %v3238 = vrot.slane %v2017, %v3237
      %v3239 = vsel %vm3209, %v3238, %v3234
      %v3240 = vlaneseq
      %v3241 = vshrl.u32 %v3240, 7
      %v3242 = vsub.s32 %v3171, %v3241
      %v3243 = vrot.slane %v2021, %v3242
      %v3244 = vlaneseq
      %v3245 = vshrl.u32 %v3244, 7
      %v3246 = vsub.s32 %v3176, %v3245
      %v3247 = vrot.slane %v2025, %v3246
      %v3248 = vsel %vm3181, %v3247, %v3243
      %v3249 = vlaneseq
      %v3250 = vshrl.u32 %v3249, 7
      %v3251 = vsub.s32 %v3183, %v3250
      %v3252 = vrot.slane %v2029, %v3251
      %v3253 = vsel %vm3188, %v3252, %v3248
      %v3254 = vlaneseq
      %v3255 = vshrl.u32 %v3254, 7
      %v3256 = vsub.s32 %v3190, %v3255
      %v3257 = vrot.slane %v2033, %v3256
      %v3258 = vsel %vm3195, %v3257, %v3253
      %v3259 = vlaneseq
      %v3260 = vshrl.u32 %v3259, 7
      %v3261 = vsub.s32 %v3197, %v3260
      %v3262 = vrot.slane %v2037, %v3261
      %v3263 = vsel %vm3202, %v3262, %v3258
      %v3264 = vlaneseq
      %v3265 = vshrl.u32 %v3264, 7
      %v3266 = vsub.s32 %v3204, %v3265
      %v3267 = vrot.slane %v2041, %v3266
      %v3268 = vsel %vm3209, %v3267, %v3263
      %v3269 = vlaneseq
      %v3270 = vshrl.u32 %v3269, 7
      %v3271 = vsub.s32 %v3171, %v3270
      %v3272 = vrot.slane %v2045, %v3271
      %v3273 = vlaneseq
      %v3274 = vshrl.u32 %v3273, 7
      %v3275 = vsub.s32 %v3176, %v3274
      %v3276 = vrot.slane %v2049, %v3275
      %v3277 = vsel %vm3181, %v3276, %v3272
      %v3278 = vlaneseq
      %v3279 = vshrl.u32 %v3278, 7
      %v3280 = vsub.s32 %v3183, %v3279
      %v3281 = vrot.slane %v2053, %v3280
      %v3282 = vsel %vm3188, %v3281, %v3277
      %v3283 = vlaneseq
      %v3284 = vshrl.u32 %v3283, 7
      %v3285 = vsub.s32 %v3190, %v3284
      %v3286 = vrot.slane %v2057, %v3285
      %v3287 = vsel %vm3195, %v3286, %v3282
      %v3288 = vlaneseq
      %v3289 = vshrl.u32 %v3288, 7
      %v3290 = vsub.s32 %v3197, %v3289
      %v3291 = vrot.slane %v2061, %v3290
      %v3292 = vsel %vm3202, %v3291, %v3287
      %v3293 = vlaneseq
      %v3294 = vshrl.u32 %v3293, 7
      %v3295 = vsub.s32 %v3204, %v3294
      %v3296 = vrot.slane %v2065, %v3295
      %v3297 = vsel %vm3209, %v3296, %v3292
      %v3298 = vlaneseq
      %v3299 = vshrl.u32 %v3298, 7
      %v3300 = vsub.s32 %v3171, %v3299
      %v3301 = vrot.slane %v2069, %v3300
      %v3302 = vlaneseq
      %v3303 = vshrl.u32 %v3302, 7
      %v3304 = vsub.s32 %v3176, %v3303
      %v3305 = vrot.slane %v2073, %v3304
      %v3306 = vsel %vm3181, %v3305, %v3301
      %v3307 = vlaneseq
      %v3308 = vshrl.u32 %v3307, 7
      %v3309 = vsub.s32 %v3183, %v3308
      %v3310 = vrot.slane %v2077, %v3309
      %v3311 = vsel %vm3188, %v3310, %v3306
      %v3312 = vlaneseq
      %v3313 = vshrl.u32 %v3312, 7
      %v3314 = vsub.s32 %v3190, %v3313
      %v3315 = vrot.slane %v2081, %v3314
      %v3316 = vsel %vm3195, %v3315, %v3311
      %v3317 = vlaneseq
      %v3318 = vshrl.u32 %v3317, 7
      %v3319 = vsub.s32 %v3197, %v3318
      %v3320 = vrot.slane %v2085, %v3319
      %v3321 = vsel %vm3202, %v3320, %v3316
      %v3322 = vlaneseq
      %v3323 = vshrl.u32 %v3322, 7
      %v3324 = vsub.s32 %v3204, %v3323
      %v3325 = vrot.slane %v2089, %v3324
      %v3326 = vsel %vm3209, %v3325, %v3321
      %v3327 = vlaneseq
      %v3328 = vshrl.u32 %v3327, 7
      %v3329 = vsub.s32 %v3171, %v3328
      %v3330 = vrot.slane %v2093, %v3329
      %v3331 = vlaneseq
      %v3332 = vshrl.u32 %v3331, 7
      %v3333 = vsub.s32 %v3176, %v3332
      %v3334 = vrot.slane %v2097, %v3333
      %v3335 = vsel %vm3181, %v3334, %v3330
      %v3336 = vlaneseq
      %v3337 = vshrl.u32 %v3336, 7
      %v3338 = vsub.s32 %v3183, %v3337
      %v3339 = vrot.slane %v2101, %v3338
      %v3340 = vsel %vm3188, %v3339, %v3335
      %v3341 = vlaneseq
      %v3342 = vshrl.u32 %v3341, 7
      %v3343 = vsub.s32 %v3190, %v3342
      %v3344 = vrot.slane %v2105, %v3343
      %v3345 = vsel %vm3195, %v3344, %v3340
      %v3346 = vlaneseq
      %v3347 = vshrl.u32 %v3346, 7
      %v3348 = vsub.s32 %v3197, %v3347
      %v3349 = vrot.slane %v2109, %v3348
      %v3350 = vsel %vm3202, %v3349, %v3345
      %v3351 = vlaneseq
      %v3352 = vshrl.u32 %v3351, 7
      %v3353 = vsub.s32 %v3204, %v3352
      %v3354 = vrot.slane %v2113, %v3353
      %v3355 = vsel %vm3209, %v3354, %v3350
      %v3356 = vlaneseq
      %v3357 = vshrl.u32 %v3356, 7
      %v3358 = vsub.s32 %v3171, %v3357
      %v3359 = vrot.slane %v2117, %v3358
      %v3360 = vlaneseq
      %v3361 = vshrl.u32 %v3360, 7
      %v3362 = vsub.s32 %v3176, %v3361
      %v3363 = vrot.slane %v2121, %v3362
      %v3364 = vsel %vm3181, %v3363, %v3359
      %v3365 = vlaneseq
      %v3366 = vshrl.u32 %v3365, 7
      %v3367 = vsub.s32 %v3183, %v3366
      %v3368 = vrot.slane %v2125, %v3367
      %v3369 = vsel %vm3188, %v3368, %v3364
      %v3370 = vlaneseq
      %v3371 = vshrl.u32 %v3370, 7
      %v3372 = vsub.s32 %v3190, %v3371
      %v3373 = vrot.slane %v2129, %v3372
      %v3374 = vsel %vm3195, %v3373, %v3369
      %v3375 = vlaneseq
      %v3376 = vshrl.u32 %v3375, 7
      %v3377 = vsub.s32 %v3197, %v3376
      %v3378 = vrot.slane %v2133, %v3377
      %v3379 = vsel %vm3202, %v3378, %v3374
      %v3380 = vlaneseq
      %v3381 = vshrl.u32 %v3380, 7
      %v3382 = vsub.s32 %v3204, %v3381
      %v3383 = vrot.slane %v2137, %v3382
      %v3384 = vsel %vm3209, %v3383, %v3379
      %v3385 = vlaneseq
      %v3386 = vshrl.u32 %v3385, 7
      %v3387 = vsub.s32 %v3171, %v3386
      %v3388 = vrot.slane %v2141, %v3387
      %v3389 = vlaneseq
      %v3390 = vshrl.u32 %v3389, 7
      %v3391 = vsub.s32 %v3176, %v3390
      %v3392 = vrot.slane %v2145, %v3391
      %v3393 = vsel %vm3181, %v3392, %v3388
      %v3394 = vlaneseq
      %v3395 = vshrl.u32 %v3394, 7
      %v3396 = vsub.s32 %v3183, %v3395
      %v3397 = vrot.slane %v2149, %v3396
      %v3398 = vsel %vm3188, %v3397, %v3393
      %v3399 = vlaneseq
      %v3400 = vshrl.u32 %v3399, 7
      %v3401 = vsub.s32 %v3190, %v3400
      %v3402 = vrot.slane %v2153, %v3401
      %v3403 = vsel %vm3195, %v3402, %v3398
      %v3404 = vlaneseq
      %v3405 = vshrl.u32 %v3404, 7
      %v3406 = vsub.s32 %v3197, %v3405
      %v3407 = vrot.slane %v2157, %v3406
      %v3408 = vsel %vm3202, %v3407, %v3403
      %v3409 = vlaneseq
      %v3410 = vshrl.u32 %v3409, 7
      %v3411 = vsub.s32 %v3204, %v3410
      %v3412 = vrot.slane %v2161, %v3411
      %v3413 = vsel %vm3209, %v3412, %v3408
      %v3414 = vlaneseq
      %v3415 = vshrl.u32 %v3414, 7
      %v3416 = vsub.s32 %v3171, %v3415
      %v3417 = vrot.slane %v2165, %v3416
      %v3418 = vlaneseq
      %v3419 = vshrl.u32 %v3418, 7
      %v3420 = vsub.s32 %v3176, %v3419
      %v3421 = vrot.slane %v2169, %v3420
      %v3422 = vsel %vm3181, %v3421, %v3417
      %v3423 = vlaneseq
      %v3424 = vshrl.u32 %v3423, 7
      %v3425 = vsub.s32 %v3183, %v3424
      %v3426 = vrot.slane %v2173, %v3425
      %v3427 = vsel %vm3188, %v3426, %v3422
      %v3428 = vlaneseq
      %v3429 = vshrl.u32 %v3428, 7
      %v3430 = vsub.s32 %v3190, %v3429
      %v3431 = vrot.slane %v2177, %v3430
      %v3432 = vsel %vm3195, %v3431, %v3427
      %v3433 = vlaneseq
      %v3434 = vshrl.u32 %v3433, 7
      %v3435 = vsub.s32 %v3197, %v3434
      %v3436 = vrot.slane %v2181, %v3435
      %v3437 = vsel %vm3202, %v3436, %v3432
      %v3438 = vlaneseq
      %v3439 = vshrl.u32 %v3438, 7
      %v3440 = vsub.s32 %v3204, %v3439
      %v3441 = vrot.slane %v2185, %v3440
      %v3442 = vsel %vm3209, %v3441, %v3437
      %v3443 = vlaneseq
      %v3444 = vshrl.u32 %v3443, 7
      %v3445 = vsub.s32 %v3171, %v3444
      %v3446 = vrot.slane %v2189, %v3445
      %v3447 = vlaneseq
      %v3448 = vshrl.u32 %v3447, 7
      %v3449 = vsub.s32 %v3176, %v3448
      %v3450 = vrot.slane %v2193, %v3449
      %v3451 = vsel %vm3181, %v3450, %v3446
      %v3452 = vlaneseq
      %v3453 = vshrl.u32 %v3452, 7
      %v3454 = vsub.s32 %v3183, %v3453
      %v3455 = vrot.slane %v2197, %v3454
      %v3456 = vsel %vm3188, %v3455, %v3451
      %v3457 = vlaneseq
      %v3458 = vshrl.u32 %v3457, 7
      %v3459 = vsub.s32 %v3190, %v3458
      %v3460 = vrot.slane %v2201, %v3459
      %v3461 = vsel %vm3195, %v3460, %v3456
      %v3462 = vlaneseq
      %v3463 = vshrl.u32 %v3462, 7
      %v3464 = vsub.s32 %v3197, %v3463
      %v3465 = vrot.slane %v2205, %v3464
      %v3466 = vsel %vm3202, %v3465, %v3461
      %v3467 = vlaneseq
      %v3468 = vshrl.u32 %v3467, 7
      %v3469 = vsub.s32 %v3204, %v3468
      %v3470 = vrot.slane %v2209, %v3469
      %v3471 = vsel %vm3209, %v3470, %v3466
      %v3472 = vlaneseq
      %v3473 = vshrl.u32 %v3472, 7
      %v3474 = vsub.s32 %v3171, %v3473
      %v3475 = vrot.slane %v2213, %v3474
      %v3476 = vlaneseq
      %v3477 = vshrl.u32 %v3476, 7
      %v3478 = vsub.s32 %v3176, %v3477
      %v3479 = vrot.slane %v2217, %v3478
      %v3480 = vsel %vm3181, %v3479, %v3475
      %v3481 = vlaneseq
      %v3482 = vshrl.u32 %v3481, 7
      %v3483 = vsub.s32 %v3183, %v3482
      %v3484 = vrot.slane %v2221, %v3483
      %v3485 = vsel %vm3188, %v3484, %v3480
      %v3486 = vlaneseq
      %v3487 = vshrl.u32 %v3486, 7
      %v3488 = vsub.s32 %v3190, %v3487
      %v3489 = vrot.slane %v2225, %v3488
      %v3490 = vsel %vm3195, %v3489, %v3485
      %v3491 = vlaneseq
      %v3492 = vshrl.u32 %v3491, 7
      %v3493 = vsub.s32 %v3197, %v3492
      %v3494 = vrot.slane %v2229, %v3493
      %v3495 = vsel %vm3202, %v3494, %v3490
      %v3496 = vlaneseq
      %v3497 = vshrl.u32 %v3496, 7
      %v3498 = vsub.s32 %v3204, %v3497
      %v3499 = vrot.slane %v2233, %v3498
      %v3500 = vsel %vm3209, %v3499, %v3495
      %v3501 = vlaneseq
      %v3502 = vshrl.u32 %v3501, 7
      %v3503 = vsub.s32 %v3171, %v3502
      %v3504 = vrot.slane %v2237, %v3503
      %v3505 = vlaneseq
      %v3506 = vshrl.u32 %v3505, 7
      %v3507 = vsub.s32 %v3176, %v3506
      %v3508 = vrot.slane %v2241, %v3507
      %v3509 = vsel %vm3181, %v3508, %v3504
      %v3510 = vlaneseq
      %v3511 = vshrl.u32 %v3510, 7
      %v3512 = vsub.s32 %v3183, %v3511
      %v3513 = vrot.slane %v2245, %v3512
      %v3514 = vsel %vm3188, %v3513, %v3509
      %v3515 = vlaneseq
      %v3516 = vshrl.u32 %v3515, 7
      %v3517 = vsub.s32 %v3190, %v3516
      %v3518 = vrot.slane %v2249, %v3517
      %v3519 = vsel %vm3195, %v3518, %v3514
      %v3520 = vlaneseq
      %v3521 = vshrl.u32 %v3520, 7
      %v3522 = vsub.s32 %v3197, %v3521
      %v3523 = vrot.slane %v2253, %v3522
      %v3524 = vsel %vm3202, %v3523, %v3519
      %v3525 = vlaneseq
      %v3526 = vshrl.u32 %v3525, 7
      %v3527 = vsub.s32 %v3204, %v3526
      %v3528 = vrot.slane %v2257, %v3527
      %v3529 = vsel %vm3209, %v3528, %v3524
      %v3530 = vlaneseq
      %v3531 = vshrl.u32 %v3530, 7
      %v3532 = vsub.s32 %v3171, %v3531
      %v3533 = vrot.slane %v2261, %v3532
      %v3534 = vlaneseq
      %v3535 = vshrl.u32 %v3534, 7
      %v3536 = vsub.s32 %v3176, %v3535
      %v3537 = vrot.slane %v2265, %v3536
      %v3538 = vsel %vm3181, %v3537, %v3533
      %v3539 = vlaneseq
      %v3540 = vshrl.u32 %v3539, 7
      %v3541 = vsub.s32 %v3183, %v3540
      %v3542 = vrot.slane %v2269, %v3541
      %v3543 = vsel %vm3188, %v3542, %v3538
      %v3544 = vlaneseq
      %v3545 = vshrl.u32 %v3544, 7
      %v3546 = vsub.s32 %v3190, %v3545
      %v3547 = vrot.slane %v2273, %v3546
      %v3548 = vsel %vm3195, %v3547, %v3543
      %v3549 = vlaneseq
      %v3550 = vshrl.u32 %v3549, 7
      %v3551 = vsub.s32 %v3197, %v3550
      %v3552 = vrot.slane %v2277, %v3551
      %v3553 = vsel %vm3202, %v3552, %v3548
      %v3554 = vlaneseq
      %v3555 = vshrl.u32 %v3554, 7
      %v3556 = vsub.s32 %v3204, %v3555
      %v3557 = vrot.slane %v2281, %v3556
      %v3558 = vsel %vm3209, %v3557, %v3553
      %v3559 = vlaneseq
      %v3560 = vshrl.u32 %v3559, 7
      %v3561 = vsub.s32 %v3171, %v3560
      %v3562 = vrot.slane %v2285, %v3561
      %v3563 = vlaneseq
      %v3564 = vshrl.u32 %v3563, 7
      %v3565 = vsub.s32 %v3176, %v3564
      %v3566 = vrot.slane %v2289, %v3565
      %v3567 = vsel %vm3181, %v3566, %v3562
      %v3568 = vlaneseq
      %v3569 = vshrl.u32 %v3568, 7
      %v3570 = vsub.s32 %v3183, %v3569
      %v3571 = vrot.slane %v2293, %v3570
      %v3572 = vsel %vm3188, %v3571, %v3567
      %v3573 = vlaneseq
      %v3574 = vshrl.u32 %v3573, 7
      %v3575 = vsub.s32 %v3190, %v3574
      %v3576 = vrot.slane %v2297, %v3575
      %v3577 = vsel %vm3195, %v3576, %v3572
      %v3578 = vlaneseq
      %v3579 = vshrl.u32 %v3578, 7
      %v3580 = vsub.s32 %v3197, %v3579
      %v3581 = vrot.slane %v2301, %v3580
      %v3582 = vsel %vm3202, %v3581, %v3577
      %v3583 = vlaneseq
      %v3584 = vshrl.u32 %v3583, 7
      %v3585 = vsub.s32 %v3204, %v3584
      %v3586 = vrot.slane %v2305, %v3585
      %v3587 = vsel %vm3209, %v3586, %v3582
      %v3588 = vlaneseq
      %v3589 = vshrl.u32 %v3588, 7
      %v3590 = vsub.s32 %v3171, %v3589
      %v3591 = vrot.slane %v2309, %v3590
      %v3592 = vlaneseq
      %v3593 = vshrl.u32 %v3592, 7
      %v3594 = vsub.s32 %v3176, %v3593
      %v3595 = vrot.slane %v2313, %v3594
      %v3596 = vsel %vm3181, %v3595, %v3591
      %v3597 = vlaneseq
      %v3598 = vshrl.u32 %v3597, 7
      %v3599 = vsub.s32 %v3183, %v3598
      %v3600 = vrot.slane %v2317, %v3599
      %v3601 = vsel %vm3188, %v3600, %v3596
      %v3602 = vlaneseq
      %v3603 = vshrl.u32 %v3602, 7
      %v3604 = vsub.s32 %v3190, %v3603
      %v3605 = vrot.slane %v2321, %v3604
      %v3606 = vsel %vm3195, %v3605, %v3601
      %v3607 = vlaneseq
      %v3608 = vshrl.u32 %v3607, 7
      %v3609 = vsub.s32 %v3197, %v3608
      %v3610 = vrot.slane %v2325, %v3609
      %v3611 = vsel %vm3202, %v3610, %v3606
      %v3612 = vlaneseq
      %v3613 = vshrl.u32 %v3612, 7
      %v3614 = vsub.s32 %v3204, %v3613
      %v3615 = vrot.slane %v2329, %v3614
      %v3616 = vsel %vm3209, %v3615, %v3611
      %v3617 = vlaneseq
      %v3618 = vshrl.u32 %v3617, 7
      %v3619 = vsub.s32 %v3171, %v3618
      %v3620 = vrot.slane %v2333, %v3619
      %v3621 = vlaneseq
      %v3622 = vshrl.u32 %v3621, 7
      %v3623 = vsub.s32 %v3176, %v3622
      %v3624 = vrot.slane %v2337, %v3623
      %v3625 = vsel %vm3181, %v3624, %v3620
      %v3626 = vlaneseq
      %v3627 = vshrl.u32 %v3626, 7
      %v3628 = vsub.s32 %v3183, %v3627
      %v3629 = vrot.slane %v2341, %v3628
      %v3630 = vsel %vm3188, %v3629, %v3625
      %v3631 = vlaneseq
      %v3632 = vshrl.u32 %v3631, 7
      %v3633 = vsub.s32 %v3190, %v3632
      %v3634 = vrot.slane %v2345, %v3633
      %v3635 = vsel %vm3195, %v3634, %v3630
      %v3636 = vlaneseq
      %v3637 = vshrl.u32 %v3636, 7
      %v3638 = vsub.s32 %v3197, %v3637
      %v3639 = vrot.slane %v2349, %v3638
      %v3640 = vsel %vm3202, %v3639, %v3635
      %v3641 = vlaneseq
      %v3642 = vshrl.u32 %v3641, 7
      %v3643 = vsub.s32 %v3204, %v3642
      %v3644 = vrot.slane %v2353, %v3643
      %v3645 = vsel %vm3209, %v3644, %v3640
      %v3646 = vlaneseq
      %v3647 = vshrl.u32 %v3646, 7
      %v3648 = vsub.s32 %v3171, %v3647
      %v3649 = vrot.slane %v2357, %v3648
      %v3650 = vlaneseq
      %v3651 = vshrl.u32 %v3650, 7
      %v3652 = vsub.s32 %v3176, %v3651
      %v3653 = vrot.slane %v2361, %v3652
      %v3654 = vsel %vm3181, %v3653, %v3649
      %v3655 = vlaneseq
      %v3656 = vshrl.u32 %v3655, 7
      %v3657 = vsub.s32 %v3183, %v3656
      %v3658 = vrot.slane %v2365, %v3657
      %v3659 = vsel %vm3188, %v3658, %v3654
      %v3660 = vlaneseq
      %v3661 = vshrl.u32 %v3660, 7
      %v3662 = vsub.s32 %v3190, %v3661
      %v3663 = vrot.slane %v2369, %v3662
      %v3664 = vsel %vm3195, %v3663, %v3659
      %v3665 = vlaneseq
      %v3666 = vshrl.u32 %v3665, 7
      %v3667 = vsub.s32 %v3197, %v3666
      %v3668 = vrot.slane %v2373, %v3667
      %v3669 = vsel %vm3202, %v3668, %v3664
      %v3670 = vlaneseq
      %v3671 = vshrl.u32 %v3670, 7
      %v3672 = vsub.s32 %v3204, %v3671
      %v3673 = vrot.slane %v2377, %v3672
      %v3674 = vsel %vm3209, %v3673, %v3669
      %v3675 = vlaneseq
      %v3676 = vshrl.u32 %v3675, 7
      %v3677 = vsub.s32 %v3171, %v3676
      %v3678 = vrot.slane %v2381, %v3677
      %v3679 = vlaneseq
      %v3680 = vshrl.u32 %v3679, 7
      %v3681 = vsub.s32 %v3176, %v3680
      %v3682 = vrot.slane %v2385, %v3681
      %v3683 = vsel %vm3181, %v3682, %v3678
      %v3684 = vlaneseq
      %v3685 = vshrl.u32 %v3684, 7
      %v3686 = vsub.s32 %v3183, %v3685
      %v3687 = vrot.slane %v2389, %v3686
      %v3688 = vsel %vm3188, %v3687, %v3683
      %v3689 = vlaneseq
      %v3690 = vshrl.u32 %v3689, 7
      %v3691 = vsub.s32 %v3190, %v3690
      %v3692 = vrot.slane %v2393, %v3691
      %v3693 = vsel %vm3195, %v3692, %v3688
      %v3694 = vlaneseq
      %v3695 = vshrl.u32 %v3694, 7
      %v3696 = vsub.s32 %v3197, %v3695
      %v3697 = vrot.slane %v2397, %v3696
      %v3698 = vsel %vm3202, %v3697, %v3693
      %v3699 = vlaneseq
      %v3700 = vshrl.u32 %v3699, 7
      %v3701 = vsub.s32 %v3204, %v3700
      %v3702 = vrot.slane %v2401, %v3701
      %v3703 = vsel %vm3209, %v3702, %v3698
      %v3704 = vlaneseq
      %v3705 = vshrl.u32 %v3704, 7
      %v3706 = vsub.s32 %v3171, %v3705
      %v3707 = vrot.slane %v2405, %v3706
      %v3708 = vlaneseq
      %v3709 = vshrl.u32 %v3708, 7
      %v3710 = vsub.s32 %v3176, %v3709
      %v3711 = vrot.slane %v2409, %v3710
      %v3712 = vsel %vm3181, %v3711, %v3707
      %v3713 = vlaneseq
      %v3714 = vshrl.u32 %v3713, 7
      %v3715 = vsub.s32 %v3183, %v3714
      %v3716 = vrot.slane %v2413, %v3715
      %v3717 = vsel %vm3188, %v3716, %v3712
      %v3718 = vlaneseq
      %v3719 = vshrl.u32 %v3718, 7
      %v3720 = vsub.s32 %v3190, %v3719
      %v3721 = vrot.slane %v2417, %v3720
      %v3722 = vsel %vm3195, %v3721, %v3717
      %v3723 = vlaneseq
      %v3724 = vshrl.u32 %v3723, 7
      %v3725 = vsub.s32 %v3197, %v3724
      %v3726 = vrot.slane %v2421, %v3725
      %v3727 = vsel %vm3202, %v3726, %v3722
      %v3728 = vlaneseq
      %v3729 = vshrl.u32 %v3728, 7
      %v3730 = vsub.s32 %v3204, %v3729
      %v3731 = vrot.slane %v2425, %v3730
      %v3732 = vsel %vm3209, %v3731, %v3727
      %v3733 = vlaneseq
      %v3734 = vshrl.u32 %v3733, 7
      %v3735 = vsub.s32 %v3171, %v3734
      %v3736 = vrot.slane %v2429, %v3735
      %v3737 = vlaneseq
      %v3738 = vshrl.u32 %v3737, 7
      %v3739 = vsub.s32 %v3176, %v3738
      %v3740 = vrot.slane %v2433, %v3739
      %v3741 = vsel %vm3181, %v3740, %v3736
      %v3742 = vlaneseq
      %v3743 = vshrl.u32 %v3742, 7
      %v3744 = vsub.s32 %v3183, %v3743
      %v3745 = vrot.slane %v2437, %v3744
      %v3746 = vsel %vm3188, %v3745, %v3741
      %v3747 = vlaneseq
      %v3748 = vshrl.u32 %v3747, 7
      %v3749 = vsub.s32 %v3190, %v3748
      %v3750 = vrot.slane %v2441, %v3749
      %v3751 = vsel %vm3195, %v3750, %v3746
      %v3752 = vlaneseq
      %v3753 = vshrl.u32 %v3752, 7
      %v3754 = vsub.s32 %v3197, %v3753
      %v3755 = vrot.slane %v2445, %v3754
      %v3756 = vsel %vm3202, %v3755, %v3751
      %v3757 = vlaneseq
      %v3758 = vshrl.u32 %v3757, 7
      %v3759 = vsub.s32 %v3204, %v3758
      %v3760 = vrot.slane %v2449, %v3759
      %v3761 = vsel %vm3209, %v3760, %v3756
      %v3762 = vlaneseq
      %v3763 = vshrl.u32 %v3762, 7
      %v3764 = vsub.s32 %v3171, %v3763
      %v3765 = vrot.slane %v2453, %v3764
      %v3766 = vlaneseq
      %v3767 = vshrl.u32 %v3766, 7
      %v3768 = vsub.s32 %v3176, %v3767
      %v3769 = vrot.slane %v2457, %v3768
      %v3770 = vsel %vm3181, %v3769, %v3765
      %v3771 = vlaneseq
      %v3772 = vshrl.u32 %v3771, 7
      %v3773 = vsub.s32 %v3183, %v3772
      %v3774 = vrot.slane %v2461, %v3773
      %v3775 = vsel %vm3188, %v3774, %v3770
      %v3776 = vlaneseq
      %v3777 = vshrl.u32 %v3776, 7
      %v3778 = vsub.s32 %v3190, %v3777
      %v3779 = vrot.slane %v2465, %v3778
      %v3780 = vsel %vm3195, %v3779, %v3775
      %v3781 = vlaneseq
      %v3782 = vshrl.u32 %v3781, 7
      %v3783 = vsub.s32 %v3197, %v3782
      %v3784 = vrot.slane %v2469, %v3783
      %v3785 = vsel %vm3202, %v3784, %v3780
      %v3786 = vlaneseq
      %v3787 = vshrl.u32 %v3786, 7
      %v3788 = vsub.s32 %v3204, %v3787
      %v3789 = vrot.slane %v2473, %v3788
      %v3790 = vsel %vm3209, %v3789, %v3785
      %v3791 = vlaneseq
      %v3792 = vshrl.u32 %v3791, 7
      %v3793 = vsub.s32 %v3171, %v3792
      %v3794 = vrot.slane %v2477, %v3793
      %v3795 = vlaneseq
      %v3796 = vshrl.u32 %v3795, 7
      %v3797 = vsub.s32 %v3176, %v3796
      %v3798 = vrot.slane %v2481, %v3797
      %v3799 = vsel %vm3181, %v3798, %v3794
      %v3800 = vlaneseq
      %v3801 = vshrl.u32 %v3800, 7
      %v3802 = vsub.s32 %v3183, %v3801
      %v3803 = vrot.slane %v2485, %v3802
      %v3804 = vsel %vm3188, %v3803, %v3799
      %v3805 = vlaneseq
      %v3806 = vshrl.u32 %v3805, 7
      %v3807 = vsub.s32 %v3190, %v3806
      %v3808 = vrot.slane %v2489, %v3807
      %v3809 = vsel %vm3195, %v3808, %v3804
      %v3810 = vlaneseq
      %v3811 = vshrl.u32 %v3810, 7
      %v3812 = vsub.s32 %v3197, %v3811
      %v3813 = vrot.slane %v2493, %v3812
      %v3814 = vsel %vm3202, %v3813, %v3809
      %v3815 = vlaneseq
      %v3816 = vshrl.u32 %v3815, 7
      %v3817 = vsub.s32 %v3204, %v3816
      %v3818 = vrot.slane %v2497, %v3817
      %v3819 = vsel %vm3209, %v3818, %v3814
      %v3820 = vlaneseq
      %v3821 = vshrl.u32 %v3820, 7
      %v3822 = vsub.s32 %v3171, %v3821
      %v3823 = vrot.slane %v2501, %v3822
      %v3824 = vlaneseq
      %v3825 = vshrl.u32 %v3824, 7
      %v3826 = vsub.s32 %v3176, %v3825
      %v3827 = vrot.slane %v2505, %v3826
      %v3828 = vsel %vm3181, %v3827, %v3823
      %v3829 = vlaneseq
      %v3830 = vshrl.u32 %v3829, 7
      %v3831 = vsub.s32 %v3183, %v3830
      %v3832 = vrot.slane %v2509, %v3831
      %v3833 = vsel %vm3188, %v3832, %v3828
      %v3834 = vlaneseq
      %v3835 = vshrl.u32 %v3834, 7
      %v3836 = vsub.s32 %v3190, %v3835
      %v3837 = vrot.slane %v2513, %v3836
      %v3838 = vsel %vm3195, %v3837, %v3833
      %v3839 = vlaneseq
      %v3840 = vshrl.u32 %v3839, 7
      %v3841 = vsub.s32 %v3197, %v3840
      %v3842 = vrot.slane %v2517, %v3841
      %v3843 = vsel %vm3202, %v3842, %v3838
      %v3844 = vlaneseq
      %v3845 = vshrl.u32 %v3844, 7
      %v3846 = vsub.s32 %v3204, %v3845
      %v3847 = vrot.slane %v2521, %v3846
      %v3848 = vsel %vm3209, %v3847, %v3843
      %v3849 = vlaneseq
      %v3850 = vshrl.u32 %v3849, 7
      %v3851 = vsub.s32 %v3171, %v3850
      %v3852 = vrot.slane %v2525, %v3851
      %v3853 = vlaneseq
      %v3854 = vshrl.u32 %v3853, 7
      %v3855 = vsub.s32 %v3176, %v3854
      %v3856 = vrot.slane %v2529, %v3855
      %v3857 = vsel %vm3181, %v3856, %v3852
      %v3858 = vlaneseq
      %v3859 = vshrl.u32 %v3858, 7
      %v3860 = vsub.s32 %v3183, %v3859
      %v3861 = vrot.slane %v2533, %v3860
      %v3862 = vsel %vm3188, %v3861, %v3857
      %v3863 = vlaneseq
      %v3864 = vshrl.u32 %v3863, 7
      %v3865 = vsub.s32 %v3190, %v3864
      %v3866 = vrot.slane %v2537, %v3865
      %v3867 = vsel %vm3195, %v3866, %v3862
      %v3868 = vlaneseq
      %v3869 = vshrl.u32 %v3868, 7
      %v3870 = vsub.s32 %v3197, %v3869
      %v3871 = vrot.slane %v2541, %v3870
      %v3872 = vsel %vm3202, %v3871, %v3867
      %v3873 = vlaneseq
      %v3874 = vshrl.u32 %v3873, 7
      %v3875 = vsub.s32 %v3204, %v3874
      %v3876 = vrot.slane %v2545, %v3875
      %v3877 = vsel %vm3209, %v3876, %v3872
      %v3878 = vlaneseq
      %v3879 = vshrl.u32 %v3878, 7
      %v3880 = vsub.s32 %v3171, %v3879
      %v3881 = vrot.slane %v2549, %v3880
      %v3882 = vlaneseq
      %v3883 = vshrl.u32 %v3882, 7
      %v3884 = vsub.s32 %v3176, %v3883
      %v3885 = vrot.slane %v2553, %v3884
      %v3886 = vsel %vm3181, %v3885, %v3881
      %v3887 = vlaneseq
      %v3888 = vshrl.u32 %v3887, 7
      %v3889 = vsub.s32 %v3183, %v3888
      %v3890 = vrot.slane %v2557, %v3889
      %v3891 = vsel %vm3188, %v3890, %v3886
      %v3892 = vlaneseq
      %v3893 = vshrl.u32 %v3892, 7
      %v3894 = vsub.s32 %v3190, %v3893
      %v3895 = vrot.slane %v2561, %v3894
      %v3896 = vsel %vm3195, %v3895, %v3891
      %v3897 = vlaneseq
      %v3898 = vshrl.u32 %v3897, 7
      %v3899 = vsub.s32 %v3197, %v3898
      %v3900 = vrot.slane %v2565, %v3899
      %v3901 = vsel %vm3202, %v3900, %v3896
      %v3902 = vlaneseq
      %v3903 = vshrl.u32 %v3902, 7
      %v3904 = vsub.s32 %v3204, %v3903
      %v3905 = vrot.slane %v2569, %v3904
      %v3906 = vsel %vm3209, %v3905, %v3901
      %v3907 = vlaneseq
      %v3908 = vshrl.u32 %v3907, 7
      %v3909 = vsub.s32 %v3171, %v3908
      %v3910 = vrot.slane %v2573, %v3909
      %v3911 = vlaneseq
      %v3912 = vshrl.u32 %v3911, 7
      %v3913 = vsub.s32 %v3176, %v3912
      %v3914 = vrot.slane %v2577, %v3913
      %v3915 = vsel %vm3181, %v3914, %v3910
      %v3916 = vlaneseq
      %v3917 = vshrl.u32 %v3916, 7
      %v3918 = vsub.s32 %v3183, %v3917
      %v3919 = vrot.slane %v2581, %v3918
      %v3920 = vsel %vm3188, %v3919, %v3915
      %v3921 = vlaneseq
      %v3922 = vshrl.u32 %v3921, 7
      %v3923 = vsub.s32 %v3190, %v3922
      %v3924 = vrot.slane %v2585, %v3923
      %v3925 = vsel %vm3195, %v3924, %v3920
      %v3926 = vlaneseq
      %v3927 = vshrl.u32 %v3926, 7
      %v3928 = vsub.s32 %v3197, %v3927
      %v3929 = vrot.slane %v2589, %v3928
      %v3930 = vsel %vm3202, %v3929, %v3925
      %v3931 = vlaneseq
      %v3932 = vshrl.u32 %v3931, 7
      %v3933 = vsub.s32 %v3204, %v3932
      %v3934 = vrot.slane %v2593, %v3933
      %v3935 = vsel %vm3209, %v3934, %v3930
      %v3936 = vlaneseq
      %v3937 = vshrl.u32 %v3936, 7
      %v3938 = vsub.s32 %v3171, %v3937
      %v3939 = vrot.slane %v2597, %v3938
      %v3940 = vlaneseq
      %v3941 = vshrl.u32 %v3940, 7
      %v3942 = vsub.s32 %v3176, %v3941
      %v3943 = vrot.slane %v2601, %v3942
      %v3944 = vsel %vm3181, %v3943, %v3939
      %v3945 = vlaneseq
      %v3946 = vshrl.u32 %v3945, 7
      %v3947 = vsub.s32 %v3183, %v3946
      %v3948 = vrot.slane %v2605, %v3947
      %v3949 = vsel %vm3188, %v3948, %v3944
      %v3950 = vlaneseq
      %v3951 = vshrl.u32 %v3950, 7
      %v3952 = vsub.s32 %v3190, %v3951
      %v3953 = vrot.slane %v2609, %v3952
      %v3954 = vsel %vm3195, %v3953, %v3949
      %v3955 = vlaneseq
      %v3956 = vshrl.u32 %v3955, 7
      %v3957 = vsub.s32 %v3197, %v3956
      %v3958 = vrot.slane %v2613, %v3957
      %v3959 = vsel %vm3202, %v3958, %v3954
      %v3960 = vlaneseq
      %v3961 = vshrl.u32 %v3960, 7
      %v3962 = vsub.s32 %v3204, %v3961
      %v3963 = vrot.slane %v2617, %v3962
      %v3964 = vsel %vm3209, %v3963, %v3959
      %v3965 = vlaneseq
      %v3966 = vshrl.u32 %v3965, 7
      %v3967 = vsub.s32 %v3171, %v3966
      %v3968 = vrot.slane %v2621, %v3967
      %v3969 = vlaneseq
      %v3970 = vshrl.u32 %v3969, 7
      %v3971 = vsub.s32 %v3176, %v3970
      %v3972 = vrot.slane %v2625, %v3971
      %v3973 = vsel %vm3181, %v3972, %v3968
      %v3974 = vlaneseq
      %v3975 = vshrl.u32 %v3974, 7
      %v3976 = vsub.s32 %v3183, %v3975
      %v3977 = vrot.slane %v2629, %v3976
      %v3978 = vsel %vm3188, %v3977, %v3973
      %v3979 = vlaneseq
      %v3980 = vshrl.u32 %v3979, 7
      %v3981 = vsub.s32 %v3190, %v3980
      %v3982 = vrot.slane %v2633, %v3981
      %v3983 = vsel %vm3195, %v3982, %v3978
      %v3984 = vlaneseq
      %v3985 = vshrl.u32 %v3984, 7
      %v3986 = vsub.s32 %v3197, %v3985
      %v3987 = vrot.slane %v2637, %v3986
      %v3988 = vsel %vm3202, %v3987, %v3983
      %v3989 = vlaneseq
      %v3990 = vshrl.u32 %v3989, 7
      %v3991 = vsub.s32 %v3204, %v3990
      %v3992 = vrot.slane %v2641, %v3991
      %v3993 = vsel %vm3209, %v3992, %v3988
      %v3994 = vlaneseq
      %v3995 = vshrl.u32 %v3994, 7
      %v3996 = vsub.s32 %v3171, %v3995
      %v3997 = vrot.slane %v2645, %v3996
      %v3998 = vlaneseq
      %v3999 = vshrl.u32 %v3998, 7
      %v4000 = vsub.s32 %v3176, %v3999
      %v4001 = vrot.slane %v2649, %v4000
      %v4002 = vsel %vm3181, %v4001, %v3997
      %v4003 = vlaneseq
      %v4004 = vshrl.u32 %v4003, 7
      %v4005 = vsub.s32 %v3183, %v4004
      %v4006 = vrot.slane %v2653, %v4005
      %v4007 = vsel %vm3188, %v4006, %v4002
      %v4008 = vlaneseq
      %v4009 = vshrl.u32 %v4008, 7
      %v4010 = vsub.s32 %v3190, %v4009
      %v4011 = vrot.slane %v2657, %v4010
      %v4012 = vsel %vm3195, %v4011, %v4007
      %v4013 = vlaneseq
      %v4014 = vshrl.u32 %v4013, 7
      %v4015 = vsub.s32 %v3197, %v4014
      %v4016 = vrot.slane %v2661, %v4015
      %v4017 = vsel %vm3202, %v4016, %v4012
      %v4018 = vlaneseq
      %v4019 = vshrl.u32 %v4018, 7
      %v4020 = vsub.s32 %v3204, %v4019
      %v4021 = vrot.slane %v2665, %v4020
      %v4022 = vsel %vm3209, %v4021, %v4017
      %v4023 = vlaneseq
      %v4024 = vshrl.u32 %v4023, 7
      %v4025 = vsub.s32 %v3171, %v4024
      %v4026 = vrot.slane %v2669, %v4025
      %v4027 = vlaneseq
      %v4028 = vshrl.u32 %v4027, 7
      %v4029 = vsub.s32 %v3176, %v4028
      %v4030 = vrot.slane %v2673, %v4029
      %v4031 = vsel %vm3181, %v4030, %v4026
      %v4032 = vlaneseq
      %v4033 = vshrl.u32 %v4032, 7
      %v4034 = vsub.s32 %v3183, %v4033
      %v4035 = vrot.slane %v2677, %v4034
      %v4036 = vsel %vm3188, %v4035, %v4031
      %v4037 = vlaneseq
      %v4038 = vshrl.u32 %v4037, 7
      %v4039 = vsub.s32 %v3190, %v4038
      %v4040 = vrot.slane %v2681, %v4039
      %v4041 = vsel %vm3195, %v4040, %v4036
      %v4042 = vlaneseq
      %v4043 = vshrl.u32 %v4042, 7
      %v4044 = vsub.s32 %v3197, %v4043
      %v4045 = vrot.slane %v2685, %v4044
      %v4046 = vsel %vm3202, %v4045, %v4041
      %v4047 = vlaneseq
      %v4048 = vshrl.u32 %v4047, 7
      %v4049 = vsub.s32 %v3204, %v4048
      %v4050 = vrot.slane %v2689, %v4049
      %v4051 = vsel %vm3209, %v4050, %v4046
      %v4052 = vlaneseq
      %v4053 = vshrl.u32 %v4052, 7
      %v4054 = vsub.s32 %v3171, %v4053
      %v4055 = vrot.slane %v2693, %v4054
      %v4056 = vlaneseq
      %v4057 = vshrl.u32 %v4056, 7
      %v4058 = vsub.s32 %v3176, %v4057
      %v4059 = vrot.slane %v2697, %v4058
      %v4060 = vsel %vm3181, %v4059, %v4055
      %v4061 = vlaneseq
      %v4062 = vshrl.u32 %v4061, 7
      %v4063 = vsub.s32 %v3183, %v4062
      %v4064 = vrot.slane %v2701, %v4063
      %v4065 = vsel %vm3188, %v4064, %v4060
      %v4066 = vlaneseq
      %v4067 = vshrl.u32 %v4066, 7
      %v4068 = vsub.s32 %v3190, %v4067
      %v4069 = vrot.slane %v2705, %v4068
      %v4070 = vsel %vm3195, %v4069, %v4065
      %v4071 = vlaneseq
      %v4072 = vshrl.u32 %v4071, 7
      %v4073 = vsub.s32 %v3197, %v4072
      %v4074 = vrot.slane %v2709, %v4073
      %v4075 = vsel %vm3202, %v4074, %v4070
      %v4076 = vlaneseq
      %v4077 = vshrl.u32 %v4076, 7
      %v4078 = vsub.s32 %v3204, %v4077
      %v4079 = vrot.slane %v2713, %v4078
      %v4080 = vsel %vm3209, %v4079, %v4075
      %v4081 = vlaneseq
      %v4082 = vshrl.u32 %v4081, 7
      %v4083 = vsub.s32 %v3171, %v4082
      %v4084 = vrot.slane %v2717, %v4083
      %v4085 = vlaneseq
      %v4086 = vshrl.u32 %v4085, 7
      %v4087 = vsub.s32 %v3176, %v4086
      %v4088 = vrot.slane %v2721, %v4087
      %v4089 = vsel %vm3181, %v4088, %v4084
      %v4090 = vlaneseq
      %v4091 = vshrl.u32 %v4090, 7
      %v4092 = vsub.s32 %v3183, %v4091
      %v4093 = vrot.slane %v2725, %v4092
      %v4094 = vsel %vm3188, %v4093, %v4089
      %v4095 = vlaneseq
      %v4096 = vshrl.u32 %v4095, 7
      %v4097 = vsub.s32 %v3190, %v4096
      %v4098 = vrot.slane %v2729, %v4097
      %v4099 = vsel %vm3195, %v4098, %v4094
      %v4100 = vlaneseq
      %v4101 = vshrl.u32 %v4100, 7
      %v4102 = vsub.s32 %v3197, %v4101
      %v4103 = vrot.slane %v2733, %v4102
      %v4104 = vsel %vm3202, %v4103, %v4099
      %v4105 = vlaneseq
      %v4106 = vshrl.u32 %v4105, 7
      %v4107 = vsub.s32 %v3204, %v4106
      %v4108 = vrot.slane %v2737, %v4107
      %v4109 = vsel %vm3209, %v4108, %v4104
      %v4110 = vlaneseq
      %v4111 = vshrl.u32 %v4110, 7
      %v4112 = vsub.s32 %v3171, %v4111
      %v4113 = vrot.slane %v2741, %v4112
      %v4114 = vlaneseq
      %v4115 = vshrl.u32 %v4114, 7
      %v4116 = vsub.s32 %v3176, %v4115
      %v4117 = vrot.slane %v2745, %v4116
      %v4118 = vsel %vm3181, %v4117, %v4113
      %v4119 = vlaneseq
      %v4120 = vshrl.u32 %v4119, 7
      %v4121 = vsub.s32 %v3183, %v4120
      %v4122 = vrot.slane %v2749, %v4121
      %v4123 = vsel %vm3188, %v4122, %v4118
      %v4124 = vlaneseq
      %v4125 = vshrl.u32 %v4124, 7
      %v4126 = vsub.s32 %v3190, %v4125
      %v4127 = vrot.slane %v2753, %v4126
      %v4128 = vsel %vm3195, %v4127, %v4123
      %v4129 = vlaneseq
      %v4130 = vshrl.u32 %v4129, 7
      %v4131 = vsub.s32 %v3197, %v4130
      %v4132 = vrot.slane %v2757, %v4131
      %v4133 = vsel %vm3202, %v4132, %v4128
      %v4134 = vlaneseq
      %v4135 = vshrl.u32 %v4134, 7
      %v4136 = vsub.s32 %v3204, %v4135
      %v4137 = vrot.slane %v2761, %v4136
      %v4138 = vsel %vm3209, %v4137, %v4133
      %v4139 = vlaneseq
      %v4140 = vshrl.u32 %v4139, 7
      %v4141 = vsub.s32 %v3171, %v4140
      %v4142 = vrot.slane %v2765, %v4141
      %v4143 = vlaneseq
      %v4144 = vshrl.u32 %v4143, 7
      %v4145 = vsub.s32 %v3176, %v4144
      %v4146 = vrot.slane %v2769, %v4145
      %v4147 = vsel %vm3181, %v4146, %v4142
      %v4148 = vlaneseq
      %v4149 = vshrl.u32 %v4148, 7
      %v4150 = vsub.s32 %v3183, %v4149
      %v4151 = vrot.slane %v2773, %v4150
      %v4152 = vsel %vm3188, %v4151, %v4147
      %v4153 = vlaneseq
      %v4154 = vshrl.u32 %v4153, 7
      %v4155 = vsub.s32 %v3190, %v4154
      %v4156 = vrot.slane %v2777, %v4155
      %v4157 = vsel %vm3195, %v4156, %v4152
      %v4158 = vlaneseq
      %v4159 = vshrl.u32 %v4158, 7
      %v4160 = vsub.s32 %v3197, %v4159
      %v4161 = vrot.slane %v2781, %v4160
      %v4162 = vsel %vm3202, %v4161, %v4157
      %v4163 = vlaneseq
      %v4164 = vshrl.u32 %v4163, 7
      %v4165 = vsub.s32 %v3204, %v4164
      %v4166 = vrot.slane %v2785, %v4165
      %v4167 = vsel %vm3209, %v4166, %v4162
      %v4168 = vlaneseq
      %v4169 = vshrl.u32 %v4168, 7
      %v4170 = vsub.s32 %v3171, %v4169
      %v4171 = vrot.slane %v2789, %v4170
      %v4172 = vlaneseq
      %v4173 = vshrl.u32 %v4172, 7
      %v4174 = vsub.s32 %v3176, %v4173
      %v4175 = vrot.slane %v2793, %v4174
      %v4176 = vsel %vm3181, %v4175, %v4171
      %v4177 = vlaneseq
      %v4178 = vshrl.u32 %v4177, 7
      %v4179 = vsub.s32 %v3183, %v4178
      %v4180 = vrot.slane %v2797, %v4179
      %v4181 = vsel %vm3188, %v4180, %v4176
      %v4182 = vlaneseq
      %v4183 = vshrl.u32 %v4182, 7
      %v4184 = vsub.s32 %v3190, %v4183
      %v4185 = vrot.slane %v2801, %v4184
      %v4186 = vsel %vm3195, %v4185, %v4181
      %v4187 = vlaneseq
      %v4188 = vshrl.u32 %v4187, 7
      %v4189 = vsub.s32 %v3197, %v4188
      %v4190 = vrot.slane %v2805, %v4189
      %v4191 = vsel %vm3202, %v4190, %v4186
      %v4192 = vlaneseq
      %v4193 = vshrl.u32 %v4192, 7
      %v4194 = vsub.s32 %v3204, %v4193
      %v4195 = vrot.slane %v2809, %v4194
      %v4196 = vsel %vm3209, %v4195, %v4191
      %v4197 = vlaneseq
      %v4198 = vshrl.u32 %v4197, 7
      %v4199 = vsub.s32 %v3171, %v4198
      %v4200 = vrot.slane %v2813, %v4199
      %v4201 = vlaneseq
      %v4202 = vshrl.u32 %v4201, 7
      %v4203 = vsub.s32 %v3176, %v4202
      %v4204 = vrot.slane %v2817, %v4203
      %v4205 = vsel %vm3181, %v4204, %v4200
      %v4206 = vlaneseq
      %v4207 = vshrl.u32 %v4206, 7
      %v4208 = vsub.s32 %v3183, %v4207
      %v4209 = vrot.slane %v2821, %v4208
      %v4210 = vsel %vm3188, %v4209, %v4205
      %v4211 = vlaneseq
      %v4212 = vshrl.u32 %v4211, 7
      %v4213 = vsub.s32 %v3190, %v4212
      %v4214 = vrot.slane %v2825, %v4213
      %v4215 = vsel %vm3195, %v4214, %v4210
      %v4216 = vlaneseq
      %v4217 = vshrl.u32 %v4216, 7
      %v4218 = vsub.s32 %v3197, %v4217
      %v4219 = vrot.slane %v2829, %v4218
      %v4220 = vsel %vm3202, %v4219, %v4215
      %v4221 = vlaneseq
      %v4222 = vshrl.u32 %v4221, 7
      %v4223 = vsub.s32 %v3204, %v4222
      %v4224 = vrot.slane %v2833, %v4223
      %v4225 = vsel %vm3209, %v4224, %v4220
      %v4226 = vlaneseq
      %v4227 = vshrl.u32 %v4226, 7
      %v4228 = vsub.s32 %v3171, %v4227
      %v4229 = vrot.slane %v2837, %v4228
      %v4230 = vlaneseq
      %v4231 = vshrl.u32 %v4230, 7
      %v4232 = vsub.s32 %v3176, %v4231
      %v4233 = vrot.slane %v2841, %v4232
      %v4234 = vsel %vm3181, %v4233, %v4229
      %v4235 = vlaneseq
      %v4236 = vshrl.u32 %v4235, 7
      %v4237 = vsub.s32 %v3183, %v4236
      %v4238 = vrot.slane %v2845, %v4237
      %v4239 = vsel %vm3188, %v4238, %v4234
      %v4240 = vlaneseq
      %v4241 = vshrl.u32 %v4240, 7
      %v4242 = vsub.s32 %v3190, %v4241
      %v4243 = vrot.slane %v2849, %v4242
      %v4244 = vsel %vm3195, %v4243, %v4239
      %v4245 = vlaneseq
      %v4246 = vshrl.u32 %v4245, 7
      %v4247 = vsub.s32 %v3197, %v4246
      %v4248 = vrot.slane %v2853, %v4247
      %v4249 = vsel %vm3202, %v4248, %v4244
      %v4250 = vlaneseq
      %v4251 = vshrl.u32 %v4250, 7
      %v4252 = vsub.s32 %v3204, %v4251
      %v4253 = vrot.slane %v2857, %v4252
      %v4254 = vsel %vm3209, %v4253, %v4249
      %v4255 = vlaneseq
      %v4256 = vshrl.u32 %v4255, 7
      %v4257 = vsub.s32 %v3171, %v4256
      %v4258 = vrot.slane %v2861, %v4257
      %v4259 = vlaneseq
      %v4260 = vshrl.u32 %v4259, 7
      %v4261 = vsub.s32 %v3176, %v4260
      %v4262 = vrot.slane %v2865, %v4261
      %v4263 = vsel %vm3181, %v4262, %v4258
      %v4264 = vlaneseq
      %v4265 = vshrl.u32 %v4264, 7
      %v4266 = vsub.s32 %v3183, %v4265
      %v4267 = vrot.slane %v2869, %v4266
      %v4268 = vsel %vm3188, %v4267, %v4263
      %v4269 = vlaneseq
      %v4270 = vshrl.u32 %v4269, 7
      %v4271 = vsub.s32 %v3190, %v4270
      %v4272 = vrot.slane %v2873, %v4271
      %v4273 = vsel %vm3195, %v4272, %v4268
      %v4274 = vlaneseq
      %v4275 = vshrl.u32 %v4274, 7
      %v4276 = vsub.s32 %v3197, %v4275
      %v4277 = vrot.slane %v2877, %v4276
      %v4278 = vsel %vm3202, %v4277, %v4273
      %v4279 = vlaneseq
      %v4280 = vshrl.u32 %v4279, 7
      %v4281 = vsub.s32 %v3204, %v4280
      %v4282 = vrot.slane %v2881, %v4281
      %v4283 = vsel %vm3209, %v4282, %v4278
      %v4284 = vlaneseq
      %v4285 = vshrl.u32 %v4284, 7
      %v4286 = vsub.s32 %v3171, %v4285
      %v4287 = vrot.slane %v2885, %v4286
      %v4288 = vlaneseq
      %v4289 = vshrl.u32 %v4288, 7
      %v4290 = vsub.s32 %v3176, %v4289
      %v4291 = vrot.slane %v2889, %v4290
      %v4292 = vsel %vm3181, %v4291, %v4287
      %v4293 = vlaneseq
      %v4294 = vshrl.u32 %v4293, 7
      %v4295 = vsub.s32 %v3183, %v4294
      %v4296 = vrot.slane %v2893, %v4295
      %v4297 = vsel %vm3188, %v4296, %v4292
      %v4298 = vlaneseq
      %v4299 = vshrl.u32 %v4298, 7
      %v4300 = vsub.s32 %v3190, %v4299
      %v4301 = vrot.slane %v2897, %v4300
      %v4302 = vsel %vm3195, %v4301, %v4297
      %v4303 = vlaneseq
      %v4304 = vshrl.u32 %v4303, 7
      %v4305 = vsub.s32 %v3197, %v4304
      %v4306 = vrot.slane %v2901, %v4305
      %v4307 = vsel %vm3202, %v4306, %v4302
      %v4308 = vlaneseq
      %v4309 = vshrl.u32 %v4308, 7
      %v4310 = vsub.s32 %v3204, %v4309
      %v4311 = vrot.slane %v2905, %v4310
      %v4312 = vsel %vm3209, %v4311, %v4307
      %v4313 = vlaneseq
      %v4314 = vshrl.u32 %v4313, 7
      %v4315 = vsub.s32 %v3171, %v4314
      %v4316 = vrot.slane %v2909, %v4315
      %v4317 = vlaneseq
      %v4318 = vshrl.u32 %v4317, 7
      %v4319 = vsub.s32 %v3176, %v4318
      %v4320 = vrot.slane %v2913, %v4319
      %v4321 = vsel %vm3181, %v4320, %v4316
      %v4322 = vlaneseq
      %v4323 = vshrl.u32 %v4322, 7
      %v4324 = vsub.s32 %v3183, %v4323
      %v4325 = vrot.slane %v2917, %v4324
      %v4326 = vsel %vm3188, %v4325, %v4321
      %v4327 = vlaneseq
      %v4328 = vshrl.u32 %v4327, 7
      %v4329 = vsub.s32 %v3190, %v4328
      %v4330 = vrot.slane %v2921, %v4329
      %v4331 = vsel %vm3195, %v4330, %v4326
      %v4332 = vlaneseq
      %v4333 = vshrl.u32 %v4332, 7
      %v4334 = vsub.s32 %v3197, %v4333
      %v4335 = vrot.slane %v2925, %v4334
      %v4336 = vsel %vm3202, %v4335, %v4331
      %v4337 = vlaneseq
      %v4338 = vshrl.u32 %v4337, 7
      %v4339 = vsub.s32 %v3204, %v4338
      %v4340 = vrot.slane %v2929, %v4339
      %v4341 = vsel %vm3209, %v4340, %v4336
      %vm4342 = vcmask 1041409
      %v4343 = vsel %vm4342, %v3239, %v3210
      %vm4344 = vcmask 1042434
      %v4345 = vsel %vm4344, %v3268, %v4343
      %vm4346 = vcmask 1043459
      %v4347 = vsel %vm4346, %v3297, %v4345
      %vm4348 = vcmask 1044484
      %v4349 = vsel %vm4348, %v3326, %v4347
      %vm4350 = vcmask 1045509
      %v4351 = vsel %vm4350, %v3355, %v4349
      %vm4352 = vcmask 1046534
      %v4353 = vsel %vm4352, %v3384, %v4351
      %vm4354 = vcmask 1047559
      %v4355 = vsel %vm4354, %v3413, %v4353
      %v4356 = vsel %vm4342, %v3471, %v3442
      %v4357 = vsel %vm4344, %v3500, %v4356
      %v4358 = vsel %vm4346, %v3529, %v4357
      %v4359 = vsel %vm4348, %v3558, %v4358
      %v4360 = vsel %vm4350, %v3587, %v4359
      %v4361 = vsel %vm4352, %v3616, %v4360
      %v4362 = vsel %vm4354, %v3645, %v4361
      %v4363 = vsel %vm4342, %v3703, %v3674
      %v4364 = vsel %vm4344, %v3732, %v4363
      %v4365 = vsel %vm4346, %v3761, %v4364
      %v4366 = vsel %vm4348, %v3790, %v4365
      %v4367 = vsel %vm4350, %v3819, %v4366
      %v4368 = vsel %vm4352, %v3848, %v4367
      %v4369 = vsel %vm4354, %v3877, %v4368
      %v4370 = vsel %vm4342, %v3935, %v3906
      %v4371 = vsel %vm4344, %v3964, %v4370
      %v4372 = vsel %vm4346, %v3993, %v4371
      %v4373 = vsel %vm4348, %v4022, %v4372
      %v4374 = vsel %vm4350, %v4051, %v4373
      %v4375 = vsel %vm4352, %v4080, %v4374
      %v4376 = vsel %vm4354, %v4109, %v4375
      %v4377 = vsel %vm4342, %v4167, %v4138
      %v4378 = vsel %vm4344, %v4196, %v4377
      %v4379 = vsel %vm4346, %v4225, %v4378
      %v4380 = vsel %vm4348, %v4254, %v4379
      %v4381 = vsel %vm4350, %v4283, %v4380
      %v4382 = vsel %vm4352, %v4312, %v4381
      %v4383 = vsel %vm4354, %v4341, %v4382
      %vm4389 = vcmask 392192
      %v4390 = vsel %vm4389, %v4355, 0.0
      %4391 = vadd.xlane.f32.xlu0 %v4390
      %v4392 = vpop.xlane.xlu0 %4391
      %v4393 = vsel %vm4389, %v4362, 0.0
      %4394 = vadd.xlane.f32.xlu0 %v4393
      %v4395 = vpop.xlane.xlu0 %4394
      %v4396 = vsel %vm4389, %v4369, 0.0
      %4397 = vadd.xlane.f32.xlu0 %v4396
      %v4398 = vpop.xlane.xlu0 %4397
      %v4399 = vsel %vm4389, %v4376, 0.0
      %4400 = vadd.xlane.f32.xlu0 %v4399
      %v4401 = vpop.xlane.xlu0 %4400
      %v4402 = vsel %vm4389, %v4383, 0.0
      %4403 = vadd.xlane.f32.xlu0 %v4402
      %v4404 = vpop.xlane.xlu0 %4403
      %v4405 = vld [vmem:[%s3] sm:$0xff]
      %v4406 = vld [vmem:[%s3 + $0x8] sm:$0xff]
      %v4407 = vld [vmem:[%s3 + $0x10] sm:$0xff]
      %v4408 = vld [vmem:[%s3 + $0x18] sm:$0xff]
      %v4409 = vld [vmem:[%s3 + $0x20] sm:$0xff]
      %v4410 = vadd.f32 %v4392, %v4405
      %v4411 = vadd.f32 %v4395, %v4406
      %v4412 = vadd.f32 %v4398, %v4407
      %v4413 = vadd.f32 %v4401, %v4408
      %v4414 = vadd.f32 %v4404, %v4409
      %v4415 = vmax.f32 %v4410, 0.0
      %v4416 = vmax.f32 %v4411, 0.0
      %v4417 = vmax.f32 %v4412, 0.0
      %v4418 = vmax.f32 %v4413, 0.0
      %v4419 = vmax.f32 %v4414, 0.0
      %v4420 = vld [vmem:[%s4] sm:$0xff]
      %v4421 = vld [vmem:[%s4 + $0x8] sm:$0x3]
      %v4422 = vld [vmem:[%s5] sm:$0xff]
      %v4423 = vld [vmem:[%s5 + $0x8] sm:$0x3]
      %vm4424 = vcmask 326656
      %v4426 = vsel %vm4424, %v4420, 0
      %v4429 = vsel %vm4424, %v4421, 0
      %4431 = vmatprep.subr.mxu0 0.0
      %4432 = vmatpush1.msra.mxu0 0.0
      %4433 = vmatprep.subr.mxu0 0.0
      %4434 = vmatpush1.msra.mxu0 0.0
      %4435 = vmatprep.subr.mxu0 0.0
      %4436 = vmatpush1.msra.mxu0 0.0
      %4437 = vmatprep.subr.mxu0 0.0
      %4438 = vmatpush1.msra.mxu0 0.0
      %4439 = vmatprep.subr.mxu0 0.0
      %4440 = vmatpush1.msra.mxu0 0.0
      %4441 = vmatprep.subr.mxu0 0.0
      %4442 = vmatpush1.msra.mxu0 0.0
      %4443 = vmatprep.subr.mxu0 0.0
      %4444 = vmatpush1.msra.mxu0 0.0
      %4445 = vmatprep.subr.mxu0 0.0
      %4446 = vmatpush1.msra.mxu0 0.0
      %4447 = vmatprep.subr.mxu0 0.0
      %4448 = vmatpush1.msra.mxu0 0.0
      %4449 = vmatprep.subr.mxu0 0.0
      %4450 = vmatpush1.msra.mxu0 0.0
      %4451 = vmatprep.subr.mxu0 0.0
      %4452 = vmatpush1.msra.mxu0 0.0
      %4453 = vmatprep.subr.mxu0 0.0
      %4454 = vmatpush1.msra.mxu0 %v4419
      %4455 = vmatprep.subr.mxu0 0.0
      %4456 = vmatpush1.msra.mxu0 %v4418
      %4457 = vmatprep.subr.mxu0 0.0
      %4458 = vmatpush1.msra.mxu0 %v4417
      %4459 = vmatprep.subr.mxu0 0.0
      %4460 = vmatpush1.msra.mxu0 %v4416
      %4461 = vmatprep.subr.mxu0 0.0
      %4462 = vmatpush1.msra.mxu0 %v4415
      %4463 = vmatprep.subr.mxu0 0.0
      %4464 = vmatpush2.msra.mxu0 0.0
      %4465 = vmatprep.subr.mxu0 0.0
      %4466 = vmatpush2.msra.mxu0 0.0
      %4467 = vmatprep.subr.mxu0 0.0
      %4468 = vmatpush2.msra.mxu0 0.0
      %4469 = vmatprep.subr.mxu0 0.0
      %4470 = vmatpush2.msra.mxu0 0.0
      %4471 = vmatprep.subr.mxu0 0.0
      %4472 = vmatpush2.msra.mxu0 0.0
      %4473 = vmatprep.subr.mxu0 0.0
      %4474 = vmatpush2.msra.mxu0 0.0
      %4475 = vmatprep.subr.mxu0 0.0
      %4476 = vmatpush2.msra.mxu0 0.0
      %4477 = vmatprep.subr.mxu0 0.0
      %4478 = vmatpush2.msra.mxu0 0.0
      %4479 = vmatprep.subr.mxu0 0.0
      %4480 = vmatpush2.msra.mxu0 0.0
      %4481 = vmatprep.subr.mxu0 0.0
      %4482 = vmatpush2.msra.mxu0 0.0
      %4483 = vmatprep.subr.mxu0 0.0
      %4484 = vmatpush2.msra.mxu0 0.0
      %4485 = vmatprep.subr.mxu0 0.0
      %4486 = vmatpush2.msra.mxu0 0.0
      %4487 = vmatprep.subr.mxu0 0.0
      %4488 = vmatpush2.msra.mxu0 0.0
      %4489 = vmatprep.subr.mxu0 0.0
      %4490 = vmatpush2.msra.mxu0 0.0
      %4491 = vmatprep.subr.mxu0 0.0
      %4492 = vmatpush2.msra.mxu0 0.0
      %4493 = vmatprep.subr.mxu0 0.0
      %4494 = vmatpush2.msra.mxu0 0.0
      %4495 = vmatprep.mubr.f32.mxu0 0.0
      %4496 = vmatmul.mubr.f32.gmra.mxu0 %v4426
      %v4497 = vpop.f32.mrf.mxu0
      %v4498 = vadd.f32 %v4422, %v4497
      %v4499 = vpop.f32.mrf.mxu0
      %4500 = vmatprep.mubr.f32.mxu0 0.0
      %4501 = vmatmul.mubr.f32.gmra.mxu0 %v4429
      %v4502 = vpop.f32.mrf.mxu0
      %v4503 = vadd.f32 %v4423, %v4502
      %v4504 = vpop.f32.mrf.mxu0
      %4505 = vdwg.mxu0
      %v4506 = vmax.f32 %v4498, 0.0
      %v4507 = vmax.f32 %v4503, 0.0
      %vm4508 = vcmask 7168
      %4509 = vst.msk [vmem:[%s251] sm:$0xff] %vm4508, %v4506
      %vm4510 = vcmask 1024
      %4511 = vst.msk [vmem:[%s251 + $0x8] sm:$0x3] %vm4510, %v4507
      %p4512 = scmp.lt.s32.totalorder %s17, 1
      %s4513 = scalar_select %p4512, %s17, 1
      %s4514 = smul.addr %s4513, 2
      %s4515 = smul.addr %s4514, 8
      %s4516 = scalar_lea.vmem %s6, %s4515
      // Predicated region
      $region45: #{a_call__.1} parent=43 // pred_check
        %p4517 = pneg %p166
      $region46: #{a_call__.1} parent=43 // pred_check_branch
        %4519 = sbr.rel (%p4517) target = $region48
      $region47: #{a_call__.1} parent=43 // pred_region
        _
      $region48: #{a_call__.1} parent=43 // pred_fallthru
        _
    $region44: #{a_call__.1} parent=5 // pred_fallthru
      _
    %p4520 = scmp.le.s32.totalorder 2, %s12
    // Predicated region
    $region49: #{a_call__.1} parent=5 // pred_check
      %p4521 = pneg %p4520
    $region50: #{a_call__.1} parent=5 // pred_check_branch
      %4523 = sbr.rel (%p4521) target = $region52
    $region51: #{a_call__.1} parent=5 // pred_region
      %s4524 = ssub.s32 %s12, 2
      // Predicated region
      $region53: #{a_call__.1} parent=51 // pred_check
        %p4525 = pneg %p172
      $region54: #{a_call__.1} parent=51 // pred_check_branch
        %4527 = sbr.rel (%p4525) target = $region56
      $region55: #{a_call__.1} parent=51 // pred_region
        %p4528 = scmp.lt.s32.totalorder %s18, 1
        %s4529 = scalar_select %p4528, %s18, 1
        %s4530 = smul.addr %s4529, 2
        %s4531 = smul.addr %s4530, 8
        %s4532 = scalar_lea.vmem %s6, %s4531
      $region56: #{a_call__.1} parent=51 // pred_fallthru
        _
    $region52: #{a_call__.1} parent=5 // pred_fallthru
      _
  $region6: #{a_call__.1} parent=0 // loop_footer
    %s16 = sadd.s32 1, %s12
  $region7: #{a_call__.1} parent=0 // loop_footer_branch
    %11 = sbr.rel target = $region3
  $region8: #{a_call__.1} parent=0 // loop_exit
    _

</llo_original>
